<compile_context>
chip_gen: v5e
topology: v5e:2x2
jax: 0.10.0
libtpu: 0.0.40
codegen_flags: <defaults>
</compile_context>

<pallas_src>
import functools
import math

import jax
import jax.numpy as jnp
from jax.experimental import pallas as pl
from jax.experimental.pallas import tpu as pltpu

D_IN = 768 + 64          # 832
D_IN_PAD = 7 * 128       # 896: padded K of the first GEMM (full 128-lane tiles)
D_HID = 512
D_OUT = 768

VMEM_LIMIT_BYTES = 48 * 1024 * 1024   # fits v5e/v6e (128 MiB) and v7x (64 MiB)


def _round_up(x, n):
    return ((x + n - 1) // n) * n


def _silu_f32(x):
    # x * sigmoid(x) = x / (1 + exp(-x)); exp and the approximate reciprocal
    # both run on the EUP slot (free relative to the MXU/VALU-bound bundles).
    return x * pl.reciprocal(1.0 + jnp.exp(-x), approx=True)


def mlp_kernel(x_ref, w1_ref, b1_ref, w2_ref, b2_ref, w3_ref, b3_ref, o_ref):
    # x_ref: (tm, D_IN_PAD) bf16; weights bf16, biases f32, all VMEM-resident.
    x = x_ref[...]                                                  # bf16

    h1 = jnp.dot(x, w1_ref[...], preferred_element_type=jnp.float32)
    h1 = _silu_f32(h1 + b1_ref[...]).astype(jnp.bfloat16)

    h2 = jnp.dot(h1, w2_ref[...], preferred_element_type=jnp.float32)
    h2 = _silu_f32(h2 + b2_ref[...]).astype(jnp.bfloat16)

    out = jnp.dot(h2, w3_ref[...], preferred_element_type=jnp.float32)
    out = out + b3_ref[...]

    o_ref[...] = out.astype(o_ref.dtype)


def prepare_params(params, compute_dtype=jnp.bfloat16):
    """One-time param prep: bf16 weights (w1 K-padded 832->896), f32 2D biases."""
    w1, b1, w2, b2, w3, b3 = params
    w1 = jnp.pad(w1.astype(compute_dtype), ((0, D_IN_PAD - D_IN), (0, 0)))
    w2 = w2.astype(compute_dtype)
    w3 = w3.astype(compute_dtype)
    b1 = b1.astype(jnp.float32).reshape(1, D_HID)
    b2 = b2.astype(jnp.float32).reshape(1, D_HID)
    b3 = b3.astype(jnp.float32).reshape(1, D_OUT)
    return (w1, b1, w2, b2, w3, b3)


@functools.partial(jax.jit, static_argnames=("tm",))
def mlp_forward(boxes, prepared_params, *, tm=None):
    w1, b1, w2, b2, w3, b3 = prepared_params
    orig_shape = boxes.shape
    out_dtype = boxes.dtype

    x = boxes.reshape(-1, D_IN)
    m = x.shape[0]

    # ---- row-tile selection (multiple of 16: bf16 sublane packing) ----------
    rows = _round_up(max(m, 1), 16)
    if tm is None:
        tm = 512                       # ~13 MB VMEM footprint, pipelines well
    tm = max(16, min(int(tm), 1024))
    tm = (tm // 16) * 16
    if rows <= tm:
        # Small batch: shrink the tile to the batch.  Medium batch: split it
        # so the grid has >= 2 parallel steps (pipelining + v7x dual-TC).
        tm = _round_up(-(-rows // 2), 16) if rows >= 256 else rows
    m_pad = _round_up(m, tm)
    grid = (m_pad // tm,)

    # ---- input prep: bf16, zero-pad rows to m_pad and K to 896 --------------
    x = jnp.pad(x.astype(jnp.bfloat16),
                ((0, m_pad - m), (0, D_IN_PAD - D_IN)))

    out_itemsize = jnp.dtype(out_dtype).itemsize
    weight_bytes = 2 * (D_IN_PAD * D_HID + D_HID * D_HID + D_HID * D_OUT)
    cost = pl.CostEstimate(
        flops=2 * m_pad * (D_IN_PAD * D_HID + D_HID * D_HID + D_HID * D_OUT),
        transcendentals=4 * m_pad * D_HID,     # exp + rcp for the two SiLUs
        bytes_accessed=(2 * m_pad * D_IN_PAD            # bf16 x
                        + out_itemsize * m_pad * D_OUT  # output
                        + weight_bytes
                        + 4 * (2 * D_HID + D_OUT)),     # f32 biases
    )

    out = pl.pallas_call(
        mlp_kernel,
        out_shape=jax.ShapeDtypeStruct((m_pad, D_OUT), out_dtype),
        grid_spec=pltpu.PrefetchScalarGridSpec(
            num_scalar_prefetch=0,
            grid=grid,
            in_specs=[
                pl.BlockSpec((tm, D_IN_PAD), lambda i: (i, 0)),      # x tile
                pl.BlockSpec((D_IN_PAD, D_HID), lambda i: (0, 0)),   # w1 (full)
                pl.BlockSpec((1, D_HID), lambda i: (0, 0)),          # b1
                pl.BlockSpec((D_HID, D_HID), lambda i: (0, 0)),      # w2
                pl.BlockSpec((1, D_HID), lambda i: (0, 0)),          # b2
                pl.BlockSpec((D_HID, D_OUT), lambda i: (0, 0)),      # w3
                pl.BlockSpec((1, D_OUT), lambda i: (0, 0)),          # b3
            ],
            out_specs=pl.BlockSpec((tm, D_OUT), lambda i: (i, 0)),
        ),
        compiler_params=pltpu.CompilerParams(
            dimension_semantics=("parallel",),
            vmem_limit_bytes=VMEM_LIMIT_BYTES,
        ),
        cost_estimate=cost,
    )(x, w1, b1, w2, b2, w3, b3)

    out = out[:m]
    return out.reshape(*orig_shape[:-1], D_OUT)


def init_params(key, dtype=jnp.float32):
    """Deterministic init mimicking PyTorch nn.Linear defaults
    (uniform(-1/sqrt(fan_in), 1/sqrt(fan_in)))."""
    keys = jax.random.split(key, 6)

    def linear(kw, kb, fan_in, fan_out):
        bound = 1.0 / math.sqrt(fan_in)
        w = jax.random.uniform(kw, (fan_in, fan_out), dtype, -bound, bound)
        b = jax.random.uniform(kb, (fan_out,), dtype, -bound, bound)
        return w, b

    w1, b1 = linear(keys[0], keys[1], D_IN, D_HID)
    w2, b2 = linear(keys[2], keys[3], D_HID, D_HID)
    w3, b3 = linear(keys[4], keys[5], D_HID, D_OUT)
    return (w1, b1, w2, b2, w3, b3)


def mlp_reference(boxes, params):
    w1, b1, w2, b2, w3, b3 = params
    h = jax.nn.silu(boxes @ w1 + b1)
    h = jax.nn.silu(h @ w2 + b2)
    return h @ w3 + b3


if __name__ == "__main__":
    key = jax.random.PRNGKey(0)
    k_param, k_in = jax.random.split(key)

    params = init_params(k_param)                 # f32 (PyTorch semantics)
    kernel_params = prepare_params(params)        # bf16 weights, padded w1

    # boxes: (batch=2, num_boxes=8, 768+64)
    boxes = jax.random.normal(k_in, (2, 8, D_IN), dtype=jnp.float32)

    out = mlp_forward(boxes, kernel_params)
    out = jax.block_until_ready(out)

    ref = mlp_reference(boxes, params)
    assert out.shape == (2, 8, D_OUT), out.shape
    # bf16 matmul inputs + approx reciprocal vs the pure-f32 reference:
    # relaxed tolerance (accumulation and SiLU are still f32).
    max_err = float(jnp.max(jnp.abs(out - ref)))
    assert max_err < 5e-2, max_err

    print("KERNEL_OK")
</pallas_src>

<mosaic_0001>
module attributes {stable_mosaic.version = 11 : i64} {
  func.func @mlp_kernel(%arg0: i32, %arg1: memref<16x896xbf16, #tpu.memory_space<vmem>>, %arg2: memref<896x512xbf16, #tpu.memory_space<vmem>>, %arg3: memref<1x512xf32, #tpu.memory_space<vmem>>, %arg4: memref<512x512xbf16, #tpu.memory_space<vmem>>, %arg5: memref<1x512xf32, #tpu.memory_space<vmem>>, %arg6: memref<512x768xbf16, #tpu.memory_space<vmem>>, %arg7: memref<1x768xf32, #tpu.memory_space<vmem>>, %arg8: memref<16x768xf32, #tpu.memory_space<vmem>>) attributes {dimension_semantics = [#tpu.dimension_semantics<parallel>], iteration_bounds = array<i64: 1>, scalar_prefetch = 0 : i64, scratch_operands = 0 : i64, tpu.core_type = #tpu.core_type<tc>, window_params = [{transform_indices = @transform_0, window_bounds = array<i64: 16, 896>}, {pipeline_mode = #tpu.pipeline_mode<synchronous>, transform_indices = @transform_1, window_bounds = array<i64: 896, 512>}, {pipeline_mode = #tpu.pipeline_mode<synchronous>, transform_indices = @transform_2, window_bounds = array<i64: 1, 512>}, {pipeline_mode = #tpu.pipeline_mode<synchronous>, transform_indices = @transform_3, window_bounds = array<i64: 512, 512>}, {pipeline_mode = #tpu.pipeline_mode<synchronous>, transform_indices = @transform_4, window_bounds = array<i64: 1, 512>}, {pipeline_mode = #tpu.pipeline_mode<synchronous>, transform_indices = @transform_5, window_bounds = array<i64: 512, 768>}, {pipeline_mode = #tpu.pipeline_mode<synchronous>, transform_indices = @transform_6, window_bounds = array<i64: 1, 768>}, {transform_indices = @transform_7, window_bounds = array<i64: 16, 768>}]} {
    %c0 = arith.constant 0 : index
    %c0_0 = arith.constant 0 : index
    %0 = vector.load %arg1[%c0, %c0_0] : memref<16x896xbf16, #tpu.memory_space<vmem>>, vector<16x896xbf16>
    %c0_1 = arith.constant 0 : index
    %c0_2 = arith.constant 0 : index
    %1 = vector.load %arg2[%c0_1, %c0_2] : memref<896x512xbf16, #tpu.memory_space<vmem>>, vector<896x512xbf16>
    %cst = arith.constant dense<0.000000e+00> : vector<16x512xf32>
    %2 = tpu.matmul %0, %1, %cst {dimension_numbers = #tpu.dot_dimension_numbers<[1], [0], [0], [1], [0, 0, 1, 1], [], []>} : vector<16x896xbf16>, vector<896x512xbf16>, vector<16x512xf32> -> vector<16x512xf32>
    %c0_3 = arith.constant 0 : index
    %c0_4 = arith.constant 0 : index
    %3 = vector.load %arg3[%c0_3, %c0_4] : memref<1x512xf32, #tpu.memory_space<vmem>>, vector<1x512xf32>
    %4 = vector.broadcast %3 : vector<1x512xf32> to vector<16x512xf32>
    %5 = arith.addf %2, %4 : vector<16x512xf32>
    %cst_5 = arith.constant 0.000000e+00 : f32
    %6 = vector.broadcast %cst_5 : f32 to vector<16x512xf32>
    %7 = arith.subf %6, %5 : vector<16x512xf32>
    %8 = math.exp %7 : vector<16x512xf32>
    %cst_6 = arith.constant 1.000000e+00 : f32
    %9 = vector.broadcast %cst_6 : f32 to vector<16x512xf32>
    %10 = arith.addf %9, %8 : vector<16x512xf32>
    %11 = tpu.reciprocal %10 {approx = true} : vector<16x512xf32> -> vector<16x512xf32>
    %12 = arith.mulf %5, %11 : vector<16x512xf32>
    %13 = arith.truncf %12 : vector<16x512xf32> to vector<16x512xbf16>
    %c0_7 = arith.constant 0 : index
    %c0_8 = arith.constant 0 : index
    %14 = vector.load %arg4[%c0_7, %c0_8] : memref<512x512xbf16, #tpu.memory_space<vmem>>, vector<512x512xbf16>
    %cst_9 = arith.constant dense<0.000000e+00> : vector<16x512xf32>
    %15 = tpu.matmul %13, %14, %cst_9 {dimension_numbers = #tpu.dot_dimension_numbers<[1], [0], [0], [1], [0, 0, 1, 1], [], []>} : vector<16x512xbf16>, vector<512x512xbf16>, vector<16x512xf32> -> vector<16x512xf32>
    %c0_10 = arith.constant 0 : index
    %c0_11 = arith.constant 0 : index
    %16 = vector.load %arg5[%c0_10, %c0_11] : memref<1x512xf32, #tpu.memory_space<vmem>>, vector<1x512xf32>
    %17 = vector.broadcast %16 : vector<1x512xf32> to vector<16x512xf32>
    %18 = arith.addf %15, %17 : vector<16x512xf32>
    %cst_12 = arith.constant 0.000000e+00 : f32
    %19 = vector.broadcast %cst_12 : f32 to vector<16x512xf32>
    %20 = arith.subf %19, %18 : vector<16x512xf32>
    %21 = math.exp %20 : vector<16x512xf32>
    %cst_13 = arith.constant 1.000000e+00 : f32
    %22 = vector.broadcast %cst_13 : f32 to vector<16x512xf32>
    %23 = arith.addf %22, %21 : vector<16x512xf32>
    %24 = tpu.reciprocal %23 {approx = true} : vector<16x512xf32> -> vector<16x512xf32>
    %25 = arith.mulf %18, %24 : vector<16x512xf32>
    %26 = arith.truncf %25 : vector<16x512xf32> to vector<16x512xbf16>
    %c0_14 = arith.constant 0 : index
    %c0_15 = arith.constant 0 : index
    %27 = vector.load %arg6[%c0_14, %c0_15] : memref<512x768xbf16, #tpu.memory_space<vmem>>, vector<512x768xbf16>
    %cst_16 = arith.constant dense<0.000000e+00> : vector<16x768xf32>
    %28 = tpu.matmul %26, %27, %cst_16 {dimension_numbers = #tpu.dot_dimension_numbers<[1], [0], [0], [1], [0, 0, 1, 1], [], []>} : vector<16x512xbf16>, vector<512x768xbf16>, vector<16x768xf32> -> vector<16x768xf32>
    %c0_17 = arith.constant 0 : index
    %c0_18 = arith.constant 0 : index
    %29 = vector.load %arg7[%c0_17, %c0_18] : memref<1x768xf32, #tpu.memory_space<vmem>>, vector<1x768xf32>
    %30 = vector.broadcast %29 : vector<1x768xf32> to vector<16x768xf32>
    %31 = arith.addf %28, %30 : vector<16x768xf32>
    %c0_19 = arith.constant 0 : index
    %c0_20 = arith.constant 0 : index
    %32 = vector.load %arg8[%c0_19, %c0_20] : memref<16x768xf32, #tpu.memory_space<vmem>>, vector<16x768xf32>
    tpu.vector_store %arg8[%c0_19, %c0_20], %31 {strides = array<i32>} : memref<16x768xf32, #tpu.memory_space<vmem>>, vector<16x768xf32>,
    return
  }
  func.func @transform_0(%arg0: i32) -> (i32, i32) {
    %c0_i32 = arith.constant 0 : i32
    %c0_i32_0 = arith.constant 0 : i32
    return %arg0, %c0_i32 : i32, i32
  }
  func.func @transform_1(%arg0: i32) -> (i32, i32) {
    %c0_i32 = arith.constant 0 : i32
    %c0_i32_0 = arith.constant 0 : i32
    %c0_i32_1 = arith.constant 0 : i32
    return %c0_i32, %c0_i32_0 : i32, i32
  }
  func.func @transform_2(%arg0: i32) -> (i32, i32) {
    %c0_i32 = arith.constant 0 : i32
    %c0_i32_0 = arith.constant 0 : i32
    %c0_i32_1 = arith.constant 0 : i32
    return %c0_i32, %c0_i32_0 : i32, i32
  }
  func.func @transform_3(%arg0: i32) -> (i32, i32) {
    %c0_i32 = arith.constant 0 : i32
    %c0_i32_0 = arith.constant 0 : i32
    %c0_i32_1 = arith.constant 0 : i32
    return %c0_i32, %c0_i32_0 : i32, i32
  }
  func.func @transform_4(%arg0: i32) -> (i32, i32) {
    %c0_i32 = arith.constant 0 : i32
    %c0_i32_0 = arith.constant 0 : i32
    %c0_i32_1 = arith.constant 0 : i32
    return %c0_i32, %c0_i32_0 : i32, i32
  }
  func.func @transform_5(%arg0: i32) -> (i32, i32) {
    %c0_i32 = arith.constant 0 : i32
    %c0_i32_0 = arith.constant 0 : i32
    %c0_i32_1 = arith.constant 0 : i32
    return %c0_i32, %c0_i32_0 : i32, i32
  }
  func.func @transform_6(%arg0: i32) -> (i32, i32) {
    %c0_i32 = arith.constant 0 : i32
    %c0_i32_0 = arith.constant 0 : i32
    %c0_i32_1 = arith.constant 0 : i32
    return %c0_i32, %c0_i32_0 : i32, i32
  }
  func.func @transform_7(%arg0: i32) -> (i32, i32) {
    %c0_i32 = arith.constant 0 : i32
    %c0_i32_0 = arith.constant 0 : i32
    return %arg0, %c0_i32 : i32, i32
  }
}

</mosaic_0001>

<llo_original>
// kernel: mlp_forward.1
$region0: #{mlp_forward.1}
  #allocation0 [shape = 'u32[]', space=smem, size = 0x4, offset = 0x4, fixed_abs, tag = 'smem constant byte address 0x4 - core index']
  #allocation1 [shape = 'u32[72,128]{1,0:T(1,128)}', space=vmem, size = 0x9000, scoped, tag = 'internal scratch']
  %s0 = inlined_call_operand.vmem [shape: bf16[16,896], index: 0, kind: input, shape index: {}]
  %s1 = inlined_call_operand.hbm [shape: bf16[896,512], index: 1, kind: input, shape index: {}]
  %s2 = inlined_call_operand.vmem [shape: f32[1,512], index: 2, kind: input, shape index: {}]
  %s3 = inlined_call_operand.hbm [shape: bf16[512,512], index: 3, kind: input, shape index: {}]
  %s4 = inlined_call_operand.vmem [shape: f32[1,512], index: 4, kind: input, shape index: {}]
  %s5 = inlined_call_operand.hbm [shape: bf16[512,768], index: 5, kind: input, shape index: {}]
  %s6 = inlined_call_operand.vmem [shape: f32[1,768], index: 6, kind: input, shape index: {}]
  %s7 = inlined_call_operand.hbm [shape: f32[16,768], index: 7, kind: output, shape index: {}]
  %s8 = sld [smem:[#allocation0]]
  $region50: #{mlp_forward.1} parent=0
    _
  %s10 = ssub.s32 1, %s8
  %s11 = scalar_select 0, %s10, %s8
  $region1: #{mlp_forward.1} parent=0
    #allocation2 [shape = 'u8[917504]{0}', space=vmem, size = 0xe0000, scoped, tag = 'input window, operand 1, single buffered']
    #allocation3 [shape = 's32[1]{0}', space=sflag, size = 0x4, scoped, tag = 'scoped memory for mlp_forward.1']
    #allocation4 [shape = 's32[1]{0}', space=sflag, size = 0x4, scoped, tag = 'scoped memory for mlp_forward.1']
    #allocation5 [shape = 'u8[524288]{0}', space=vmem, size = 0x80000, scoped, tag = 'input window, operand 3, single buffered']
    #allocation6 [shape = 's32[1]{0}', space=sflag, size = 0x4, scoped, tag = 'scoped memory for mlp_forward.1']
    #allocation7 [shape = 'u8[786432]{0}', space=vmem, size = 0xc0000, scoped, tag = 'input window, operand 5, single buffered']
    #allocation8 [shape = 'u8[49152]{0}', space=vmem, size = 0xc000, scoped, tag = 'output window, operand 0, single buffered']
    %12 = vsyncpa [#allocation3], 0
    %13 = vsyncpa [#allocation6], 0
    %14 = vsyncpa [#allocation4], 0
    // Predicated region
    $region2: #{mlp_forward.1} parent=1 // pred_check
      _
    $region3: #{mlp_forward.1} parent=1 // pred_check_branch
      %16 = sbr.rel (0) target = $region5
    $region4: #{mlp_forward.1} parent=1 // pred_region
      _
    $region5: #{mlp_forward.1} parent=1 // pred_fallthru
      _
    // Predicated region
    $region6: #{mlp_forward.1} parent=1 // pred_check
      _
    $region7: #{mlp_forward.1} parent=1 // pred_check_branch
      %18 = sbr.rel (0) target = $region9
    $region8: #{mlp_forward.1} parent=1 // pred_region
      %20 = vsyncadd [#allocation3], 0
      %s21 = sshll.u32 %s1, 4
      %s22 = int_to_ptr.hbm [resolvable:$true] %s21
      %s23 = sshll.u32 [#allocation2], 4
      %s24 = int_to_ptr.vmem [resolvable:$true] %s23
      %29 = dma.hbm_to_vmem [thread:$0]  %s22, 28672, %s24, [#allocation3], 256, 256, 16
    $region9: #{mlp_forward.1} parent=1 // pred_fallthru
      _
    // Predicated region
    $region10: #{mlp_forward.1} parent=1 // pred_check
      _
    $region11: #{mlp_forward.1} parent=1 // pred_check_branch
      %31 = sbr.rel (0) target = $region13
    $region12: #{mlp_forward.1} parent=1 // pred_region
      _
    $region13: #{mlp_forward.1} parent=1 // pred_fallthru
      _
    // Predicated region
    $region14: #{mlp_forward.1} parent=1 // pred_check
      _
    $region15: #{mlp_forward.1} parent=1 // pred_check_branch
      %33 = sbr.rel (0) target = $region17
    $region16: #{mlp_forward.1} parent=1 // pred_region
      %35 = vsyncadd [#allocation6], 0
      %s36 = sshll.u32 %s3, 4
      %s37 = int_to_ptr.hbm [resolvable:$true] %s36
      %s38 = sshll.u32 [#allocation5], 4
      %s39 = int_to_ptr.vmem [resolvable:$true] %s38
      %44 = dma.hbm_to_vmem [thread:$0]  %s37, 16384, %s39, [#allocation6], 256, 256, 16
    $region17: #{mlp_forward.1} parent=1 // pred_fallthru
      _
    // Predicated region
    $region18: #{mlp_forward.1} parent=1 // pred_check
      _
    $region19: #{mlp_forward.1} parent=1 // pred_check_branch
      %46 = sbr.rel (0) target = $region21
    $region20: #{mlp_forward.1} parent=1 // pred_region
      _
    $region21: #{mlp_forward.1} parent=1 // pred_fallthru
      _
    // Predicated region
    $region22: #{mlp_forward.1} parent=1 // pred_check
      _
    $region23: #{mlp_forward.1} parent=1 // pred_check_branch
      %48 = sbr.rel (0) target = $region25
    $region24: #{mlp_forward.1} parent=1 // pred_region
      %50 = vsyncadd [#allocation6], 0
      %s51 = sshll.u32 %s5, 4
      %s52 = int_to_ptr.hbm [resolvable:$true] %s51
      %s53 = sshll.u32 [#allocation7], 4
      %s54 = int_to_ptr.vmem [resolvable:$true] %s53
      %59 = dma.hbm_to_vmem [thread:$0]  %s52, 24576, %s54, [#allocation6], 384, 384, 24
    $region25: #{mlp_forward.1} parent=1 // pred_fallthru
      _
    // Predicated region
    $region26: #{mlp_forward.1} parent=1 // pred_check
      _
    $region27: #{mlp_forward.1} parent=1 // pred_check_branch
      %61 = sbr.rel (0) target = $region29
    $region28: #{mlp_forward.1} parent=1 // pred_region
      _
    $region29: #{mlp_forward.1} parent=1 // pred_fallthru
      _
    // Predicated region
    $region30: #{mlp_forward.1} parent=1 // pred_check
      _
    $region31: #{mlp_forward.1} parent=1 // pred_check_branch
      %63 = sbr.rel (0) target = $region33
    $region32: #{mlp_forward.1} parent=1 // pred_region
      %65 = dma.done [#allocation3], 28672
    $region33: #{mlp_forward.1} parent=1 // pred_fallthru
      _
    // Predicated region
    $region34: #{mlp_forward.1} parent=1 // pred_check
      _
    $region35: #{mlp_forward.1} parent=1 // pred_check_branch
      %67 = sbr.rel (0) target = $region37
    $region36: #{mlp_forward.1} parent=1 // pred_region
      %69 = dma.done [#allocation6], 16384
    $region37: #{mlp_forward.1} parent=1 // pred_fallthru
      _
    // Predicated region
    $region38: #{mlp_forward.1} parent=1 // pred_check
      _
    $region39: #{mlp_forward.1} parent=1 // pred_check_branch
      %71 = sbr.rel (0) target = $region41
    $region40: #{mlp_forward.1} parent=1 // pred_region
      %73 = dma.done [#allocation6], 24576
    $region41: #{mlp_forward.1} parent=1 // pred_fallthru
      _
    %v74 = vld [vmem:[%s0] sm:$0xff]
    %v75 = vld [vmem:[%s0 + $0x8] sm:$0xff]
    %v76 = vld [vmem:[%s0 + $0x10] sm:$0xff]
    %v77 = vld [vmem:[%s0 + $0x18] sm:$0xf]
    %v78 = vld [vmem:[%s0 + $0x1c] sm:$0xff]
    %v79 = vld [vmem:[%s0 + $0x24] sm:$0xff]
    %v80 = vld [vmem:[%s0 + $0x2c] sm:$0xff]
    %v81 = vld [vmem:[%s0 + $0x34] sm:$0xf]
    %v82 = vld [vmem:[#allocation2] sm:$0xff]
    %v83 = vld [vmem:[#allocation2 + $0x8] sm:$0xff]
    %v84 = vld [vmem:[#allocation2 + $0x10] sm:$0xff]
    %v85 = vld [vmem:[#allocation2 + $0x18] sm:$0xff]
    %v86 = vld [vmem:[#allocation2 + $0x20] sm:$0xff]
    %v87 = vld [vmem:[#allocation2 + $0x28] sm:$0xff]
    %v88 = vld [vmem:[#allocation2 + $0x30] sm:$0xff]
    %v89 = vld [vmem:[#allocation2 + $0x38] sm:$0xff]
    %v90 = vld [vmem:[#allocation2 + $0x40] sm:$0xff]
    %v91 = vld [vmem:[#allocation2 + $0x48] sm:$0xff]
    %v92 = vld [vmem:[#allocation2 + $0x50] sm:$0xff]
    %v93 = vld [vmem:[#allocation2 + $0x58] sm:$0xff]
    %v94 = vld [vmem:[#allocation2 + $0x60] sm:$0xff]
    %v95 = vld [vmem:[#allocation2 + $0x68] sm:$0xff]
    %v96 = vld [vmem:[#allocation2 + $0x70] sm:$0xff]
    %v97 = vld [vmem:[#allocation2 + $0x78] sm:$0xff]
    %v98 = vld [vmem:[#allocation2 + $0x80] sm:$0xff]
    %v99 = vld [vmem:[#allocation2 + $0x88] sm:$0xff]
    %v100 = vld [vmem:[#allocation2 + $0x90] sm:$0xff]
    %v101 = vld [vmem:[#allocation2 + $0x98] sm:$0xff]
    %v102 = vld [vmem:[#allocation2 + $0xa0] sm:$0xff]
    %v103 = vld [vmem:[#allocation2 + $0xa8] sm:$0xff]
    %v104 = vld [vmem:[#allocation2 + $0xb0] sm:$0xff]
    %v105 = vld [vmem:[#allocation2 + $0xb8] sm:$0xff]
    %v106 = vld [vmem:[#allocation2 + $0xc0] sm:$0xff]
    %v107 = vld [vmem:[#allocation2 + $0xc8] sm:$0xff]
    %v108 = vld [vmem:[#allocation2 + $0xd0] sm:$0xff]
    %v109 = vld [vmem:[#allocation2 + $0xd8] sm:$0xff]
    %v110 = vld [vmem:[#allocation2 + $0xe0] sm:$0xff]
    %v111 = vld [vmem:[#allocation2 + $0xe8] sm:$0xff]
    %v112 = vld [vmem:[#allocation2 + $0xf0] sm:$0xff]
    %v113 = vld [vmem:[#allocation2 + $0xf8] sm:$0xff]
    %v114 = vld [vmem:[#allocation2 + $0x100] sm:$0xff]
    %v115 = vld [vmem:[#allocation2 + $0x108] sm:$0xff]
    %v116 = vld [vmem:[#allocation2 + $0x110] sm:$0xff]
    %v117 = vld [vmem:[#allocation2 + $0x118] sm:$0xff]
    %v118 = vld [vmem:[#allocation2 + $0x120] sm:$0xff]
    %v119 = vld [vmem:[#allocation2 + $0x128] sm:$0xff]
    %v120 = vld [vmem:[#allocation2 + $0x130] sm:$0xff]
    %v121 = vld [vmem:[#allocation2 + $0x138] sm:$0xff]
    %v122 = vld [vmem:[#allocation2 + $0x140] sm:$0xff]
    %v123 = vld [vmem:[#allocation2 + $0x148] sm:$0xff]
    %v124 = vld [vmem:[#allocation2 + $0x150] sm:$0xff]
    %v125 = vld [vmem:[#allocation2 + $0x158] sm:$0xff]
    %v126 = vld [vmem:[#allocation2 + $0x160] sm:$0xff]
    %v127 = vld [vmem:[#allocation2 + $0x168] sm:$0xff]
    %v128 = vld [vmem:[#allocation2 + $0x170] sm:$0xff]
    %v129 = vld [vmem:[#allocation2 + $0x178] sm:$0xff]
    %v130 = vld [vmem:[#allocation2 + $0x180] sm:$0xff]
    %v131 = vld [vmem:[#allocation2 + $0x188] sm:$0xff]
    %v132 = vld [vmem:[#allocation2 + $0x190] sm:$0xff]
    %v133 = vld [vmem:[#allocation2 + $0x198] sm:$0xff]
    %v134 = vld [vmem:[#allocation2 + $0x1a0] sm:$0xff]
    %v135 = vld [vmem:[#allocation2 + $0x1a8] sm:$0xff]
    %v136 = vld [vmem:[#allocation2 + $0x1b0] sm:$0xff]
    %v137 = vld [vmem:[#allocation2 + $0x1b8] sm:$0xff]
    %v138 = vld [vmem:[#allocation2 + $0x1c0] sm:$0xff]
    %v139 = vld [vmem:[#allocation2 + $0x1c8] sm:$0xff]
    %v140 = vld [vmem:[#allocation2 + $0x1d0] sm:$0xff]
    %v141 = vld [vmem:[#allocation2 + $0x1d8] sm:$0xff]
    %v142 = vld [vmem:[#allocation2 + $0x1e0] sm:$0xff]
    %v143 = vld [vmem:[#allocation2 + $0x1e8] sm:$0xff]
    %v144 = vld [vmem:[#allocation2 + $0x1f0] sm:$0xff]
    %v145 = vld [vmem:[#allocation2 + $0x1f8] sm:$0xff]
    %v146 = vld [vmem:[#allocation2 + $0x200] sm:$0xff]
    %v147 = vld [vmem:[#allocation2 + $0x208] sm:$0xff]
    %v148 = vld [vmem:[#allocation2 + $0x210] sm:$0xff]
    %v149 = vld [vmem:[#allocation2 + $0x218] sm:$0xff]
    %v150 = vld [vmem:[#allocation2 + $0x220] sm:$0xff]
    %v151 = vld [vmem:[#allocation2 + $0x228] sm:$0xff]
    %v152 = vld [vmem:[#allocation2 + $0x230] sm:$0xff]
    %v153 = vld [vmem:[#allocation2 + $0x238] sm:$0xff]
    %v154 = vld [vmem:[#allocation2 + $0x240] sm:$0xff]
    %v155 = vld [vmem:[#allocation2 + $0x248] sm:$0xff]
    %v156 = vld [vmem:[#allocation2 + $0x250] sm:$0xff]
    %v157 = vld [vmem:[#allocation2 + $0x258] sm:$0xff]
    %v158 = vld [vmem:[#allocation2 + $0x260] sm:$0xff]
    %v159 = vld [vmem:[#allocation2 + $0x268] sm:$0xff]
    %v160 = vld [vmem:[#allocation2 + $0x270] sm:$0xff]
    %v161 = vld [vmem:[#allocation2 + $0x278] sm:$0xff]
    %v162 = vld [vmem:[#allocation2 + $0x280] sm:$0xff]
    %v163 = vld [vmem:[#allocation2 + $0x288] sm:$0xff]
    %v164 = vld [vmem:[#allocation2 + $0x290] sm:$0xff]
    %v165 = vld [vmem:[#allocation2 + $0x298] sm:$0xff]
    %v166 = vld [vmem:[#allocation2 + $0x2a0] sm:$0xff]
    %v167 = vld [vmem:[#allocation2 + $0x2a8] sm:$0xff]
    %v168 = vld [vmem:[#allocation2 + $0x2b0] sm:$0xff]
    %v169 = vld [vmem:[#allocation2 + $0x2b8] sm:$0xff]
    %v170 = vld [vmem:[#allocation2 + $0x2c0] sm:$0xff]
    %v171 = vld [vmem:[#allocation2 + $0x2c8] sm:$0xff]
    %v172 = vld [vmem:[#allocation2 + $0x2d0] sm:$0xff]
    %v173 = vld [vmem:[#allocation2 + $0x2d8] sm:$0xff]
    %v174 = vld [vmem:[#allocation2 + $0x2e0] sm:$0xff]
    %v175 = vld [vmem:[#allocation2 + $0x2e8] sm:$0xff]
    %v176 = vld [vmem:[#allocation2 + $0x2f0] sm:$0xff]
    %v177 = vld [vmem:[#allocation2 + $0x2f8] sm:$0xff]
    %v178 = vld [vmem:[#allocation2 + $0x300] sm:$0xff]
    %v179 = vld [vmem:[#allocation2 + $0x308] sm:$0xff]
    %v180 = vld [vmem:[#allocation2 + $0x310] sm:$0xff]
    %v181 = vld [vmem:[#allocation2 + $0x318] sm:$0xff]
    %v182 = vld [vmem:[#allocation2 + $0x320] sm:$0xff]
    %v183 = vld [vmem:[#allocation2 + $0x328] sm:$0xff]
    %v184 = vld [vmem:[#allocation2 + $0x330] sm:$0xff]
    %v185 = vld [vmem:[#allocation2 + $0x338] sm:$0xff]
    %v186 = vld [vmem:[#allocation2 + $0x340] sm:$0xff]
    %v187 = vld [vmem:[#allocation2 + $0x348] sm:$0xff]
    %v188 = vld [vmem:[#allocation2 + $0x350] sm:$0xff]
    %v189 = vld [vmem:[#allocation2 + $0x358] sm:$0xff]
    %v190 = vld [vmem:[#allocation2 + $0x360] sm:$0xff]
    %v191 = vld [vmem:[#allocation2 + $0x368] sm:$0xff]
    %v192 = vld [vmem:[#allocation2 + $0x370] sm:$0xff]
    %v193 = vld [vmem:[#allocation2 + $0x378] sm:$0xff]
    %v194 = vld [vmem:[#allocation2 + $0x380] sm:$0xff]
    %v195 = vld [vmem:[#allocation2 + $0x388] sm:$0xff]
    %v196 = vld [vmem:[#allocation2 + $0x390] sm:$0xff]
    %v197 = vld [vmem:[#allocation2 + $0x398] sm:$0xff]
    %v198 = vld [vmem:[#allocation2 + $0x3a0] sm:$0xff]
    %v199 = vld [vmem:[#allocation2 + $0x3a8] sm:$0xff]
    %v200 = vld [vmem:[#allocation2 + $0x3b0] sm:$0xff]
    %v201 = vld [vmem:[#allocation2 + $0x3b8] sm:$0xff]
    %v202 = vld [vmem:[#allocation2 + $0x3c0] sm:$0xff]
    %v203 = vld [vmem:[#allocation2 + $0x3c8] sm:$0xff]
    %v204 = vld [vmem:[#allocation2 + $0x3d0] sm:$0xff]
    %v205 = vld [vmem:[#allocation2 + $0x3d8] sm:$0xff]
    %v206 = vld [vmem:[#allocation2 + $0x3e0] sm:$0xff]
    %v207 = vld [vmem:[#allocation2 + $0x3e8] sm:$0xff]
    %v208 = vld [vmem:[#allocation2 + $0x3f0] sm:$0xff]
    %v209 = vld [vmem:[#allocation2 + $0x3f8] sm:$0xff]
    %v210 = vld [vmem:[#allocation2 + $0x400] sm:$0xff]
    %v211 = vld [vmem:[#allocation2 + $0x408] sm:$0xff]
    %v212 = vld [vmem:[#allocation2 + $0x410] sm:$0xff]
    %v213 = vld [vmem:[#allocation2 + $0x418] sm:$0xff]
    %v214 = vld [vmem:[#allocation2 + $0x420] sm:$0xff]
    %v215 = vld [vmem:[#allocation2 + $0x428] sm:$0xff]
    %v216 = vld [vmem:[#allocation2 + $0x430] sm:$0xff]
    %v217 = vld [vmem:[#allocation2 + $0x438] sm:$0xff]
    %v218 = vld [vmem:[#allocation2 + $0x440] sm:$0xff]
    %v219 = vld [vmem:[#allocation2 + $0x448] sm:$0xff]
    %v220 = vld [vmem:[#allocation2 + $0x450] sm:$0xff]
    %v221 = vld [vmem:[#allocation2 + $0x458] sm:$0xff]
    %v222 = vld [vmem:[#allocation2 + $0x460] sm:$0xff]
    %v223 = vld [vmem:[#allocation2 + $0x468] sm:$0xff]
    %v224 = vld [vmem:[#allocation2 + $0x470] sm:$0xff]
    %v225 = vld [vmem:[#allocation2 + $0x478] sm:$0xff]
    %v226 = vld [vmem:[#allocation2 + $0x480] sm:$0xff]
    %v227 = vld [vmem:[#allocation2 + $0x488] sm:$0xff]
    %v228 = vld [vmem:[#allocation2 + $0x490] sm:$0xff]
    %v229 = vld [vmem:[#allocation2 + $0x498] sm:$0xff]
    %v230 = vld [vmem:[#allocation2 + $0x4a0] sm:$0xff]
    %v231 = vld [vmem:[#allocation2 + $0x4a8] sm:$0xff]
    %v232 = vld [vmem:[#allocation2 + $0x4b0] sm:$0xff]
    %v233 = vld [vmem:[#allocation2 + $0x4b8] sm:$0xff]
    %v234 = vld [vmem:[#allocation2 + $0x4c0] sm:$0xff]
    %v235 = vld [vmem:[#allocation2 + $0x4c8] sm:$0xff]
    %v236 = vld [vmem:[#allocation2 + $0x4d0] sm:$0xff]
    %v237 = vld [vmem:[#allocation2 + $0x4d8] sm:$0xff]
    %v238 = vld [vmem:[#allocation2 + $0x4e0] sm:$0xff]
    %v239 = vld [vmem:[#allocation2 + $0x4e8] sm:$0xff]
    %v240 = vld [vmem:[#allocation2 + $0x4f0] sm:$0xff]
    %v241 = vld [vmem:[#allocation2 + $0x4f8] sm:$0xff]
    %v242 = vld [vmem:[#allocation2 + $0x500] sm:$0xff]
    %v243 = vld [vmem:[#allocation2 + $0x508] sm:$0xff]
    %v244 = vld [vmem:[#allocation2 + $0x510] sm:$0xff]
    %v245 = vld [vmem:[#allocation2 + $0x518] sm:$0xff]
    %v246 = vld [vmem:[#allocation2 + $0x520] sm:$0xff]
    %v247 = vld [vmem:[#allocation2 + $0x528] sm:$0xff]
    %v248 = vld [vmem:[#allocation2 + $0x530] sm:$0xff]
    %v249 = vld [vmem:[#allocation2 + $0x538] sm:$0xff]
    %v250 = vld [vmem:[#allocation2 + $0x540] sm:$0xff]
    %v251 = vld [vmem:[#allocation2 + $0x548] sm:$0xff]
    %v252 = vld [vmem:[#allocation2 + $0x550] sm:$0xff]
    %v253 = vld [vmem:[#allocation2 + $0x558] sm:$0xff]
    %v254 = vld [vmem:[#allocation2 + $0x560] sm:$0xff]
    %v255 = vld [vmem:[#allocation2 + $0x568] sm:$0xff]
    %v256 = vld [vmem:[#allocation2 + $0x570] sm:$0xff]
    %v257 = vld [vmem:[#allocation2 + $0x578] sm:$0xff]
    %v258 = vld [vmem:[#allocation2 + $0x580] sm:$0xff]
    %v259 = vld [vmem:[#allocation2 + $0x588] sm:$0xff]
    %v260 = vld [vmem:[#allocation2 + $0x590] sm:$0xff]
    %v261 = vld [vmem:[#allocation2 + $0x598] sm:$0xff]
    %v262 = vld [vmem:[#allocation2 + $0x5a0] sm:$0xff]
    %v263 = vld [vmem:[#allocation2 + $0x5a8] sm:$0xff]
    %v264 = vld [vmem:[#allocation2 + $0x5b0] sm:$0xff]
    %v265 = vld [vmem:[#allocation2 + $0x5b8] sm:$0xff]
    %v266 = vld [vmem:[#allocation2 + $0x5c0] sm:$0xff]
    %v267 = vld [vmem:[#allocation2 + $0x5c8] sm:$0xff]
    %v268 = vld [vmem:[#allocation2 + $0x5d0] sm:$0xff]
    %v269 = vld [vmem:[#allocation2 + $0x5d8] sm:$0xff]
    %v270 = vld [vmem:[#allocation2 + $0x5e0] sm:$0xff]
    %v271 = vld [vmem:[#allocation2 + $0x5e8] sm:$0xff]
    %v272 = vld [vmem:[#allocation2 + $0x5f0] sm:$0xff]
    %v273 = vld [vmem:[#allocation2 + $0x5f8] sm:$0xff]
    %v274 = vld [vmem:[#allocation2 + $0x600] sm:$0xff]
    %v275 = vld [vmem:[#allocation2 + $0x608] sm:$0xff]
    %v276 = vld [vmem:[#allocation2 + $0x610] sm:$0xff]
    %v277 = vld [vmem:[#allocation2 + $0x618] sm:$0xff]
    %v278 = vld [vmem:[#allocation2 + $0x620] sm:$0xff]
    %v279 = vld [vmem:[#allocation2 + $0x628] sm:$0xff]
    %v280 = vld [vmem:[#allocation2 + $0x630] sm:$0xff]
    %v281 = vld [vmem:[#allocation2 + $0x638] sm:$0xff]
    %v282 = vld [vmem:[#allocation2 + $0x640] sm:$0xff]
    %v283 = vld [vmem:[#allocation2 + $0x648] sm:$0xff]
    %v284 = vld [vmem:[#allocation2 + $0x650] sm:$0xff]
    %v285 = vld [vmem:[#allocation2 + $0x658] sm:$0xff]
    %v286 = vld [vmem:[#allocation2 + $0x660] sm:$0xff]
    %v287 = vld [vmem:[#allocation2 + $0x668] sm:$0xff]
    %v288 = vld [vmem:[#allocation2 + $0x670] sm:$0xff]
    %v289 = vld [vmem:[#allocation2 + $0x678] sm:$0xff]
    %v290 = vld [vmem:[#allocation2 + $0x680] sm:$0xff]
    %v291 = vld [vmem:[#allocation2 + $0x688] sm:$0xff]
    %v292 = vld [vmem:[#allocation2 + $0x690] sm:$0xff]
    %v293 = vld [vmem:[#allocation2 + $0x698] sm:$0xff]
    %v294 = vld [vmem:[#allocation2 + $0x6a0] sm:$0xff]
    %v295 = vld [vmem:[#allocation2 + $0x6a8] sm:$0xff]
    %v296 = vld [vmem:[#allocation2 + $0x6b0] sm:$0xff]
    %v297 = vld [vmem:[#allocation2 + $0x6b8] sm:$0xff]
    %v298 = vld [vmem:[#allocation2 + $0x6c0] sm:$0xff]
    %v299 = vld [vmem:[#allocation2 + $0x6c8] sm:$0xff]
    %v300 = vld [vmem:[#allocation2 + $0x6d0] sm:$0xff]
    %v301 = vld [vmem:[#allocation2 + $0x6d8] sm:$0xff]
    %v302 = vld [vmem:[#allocation2 + $0x6e0] sm:$0xff]
    %v303 = vld [vmem:[#allocation2 + $0x6e8] sm:$0xff]
    %v304 = vld [vmem:[#allocation2 + $0x6f0] sm:$0xff]
    %v305 = vld [vmem:[#allocation2 + $0x6f8] sm:$0xff]
    %v306 = vld [vmem:[%s2] sm:$0xf]
    %v308 = vperm.slane %v306, 0
    %v309 = vperm.slane %v306, 1
    %v310 = vperm.slane %v306, 2
    %v311 = vperm.slane %v306, 3
    %v324 = vunpack.c.l.b16 %v74
    %v325 = vunpack.c.h.b16 %v74
    %v326 = vunpack.c.l.b16 %v75
    %v327 = vunpack.c.h.b16 %v75
    %v328 = vunpack.c.l.b16 %v76
    %v329 = vunpack.c.h.b16 %v76
    %v330 = vunpack.c.l.b16 %v77
    %v331 = vunpack.c.l.b16 %v78
    %v332 = vunpack.c.h.b16 %v78
    %v333 = vunpack.c.l.b16 %v79
    %v334 = vunpack.c.h.b16 %v79
    %v335 = vunpack.c.l.b16 %v80
    %v336 = vunpack.c.h.b16 %v80
    %v337 = vunpack.c.l.b16 %v81
    %v338 = vpack.c.b16 %v331, %v324
    %v339 = vpack.c.b16 %v332, %v325
    %v340 = vpack.c.b16 %v333, %v326
    %v341 = vpack.c.b16 %v334, %v327
    %v342 = vpack.c.b16 %v335, %v328
    %v343 = vpack.c.b16 %v336, %v329
    %v344 = vpack.c.b16 %v337, %v330
    %v576 = vunpack.c.l.b16 %v82
    %v577 = vunpack.c.h.b16 %v82
    %v578 = vunpack.c.l.b16 %v83
    %v579 = vunpack.c.h.b16 %v83
    %v580 = vunpack.c.l.b16 %v84
    %v581 = vunpack.c.h.b16 %v84
    %v582 = vunpack.c.l.b16 %v85
    %v583 = vunpack.c.h.b16 %v85
    %v584 = vunpack.c.l.b16 %v86
    %v585 = vunpack.c.h.b16 %v86
    %v586 = vunpack.c.l.b16 %v87
    %v587 = vunpack.c.h.b16 %v87
    %v588 = vunpack.c.l.b16 %v88
    %v589 = vunpack.c.h.b16 %v88
    %v590 = vunpack.c.l.b16 %v89
    %v591 = vunpack.c.h.b16 %v89
    %v592 = vunpack.c.l.b16 %v90
    %v593 = vunpack.c.h.b16 %v90
    %v594 = vunpack.c.l.b16 %v91
    %v595 = vunpack.c.h.b16 %v91
    %v596 = vunpack.c.l.b16 %v92
    %v597 = vunpack.c.h.b16 %v92
    %v598 = vunpack.c.l.b16 %v93
    %v599 = vunpack.c.h.b16 %v93
    %v600 = vunpack.c.l.b16 %v94
    %v601 = vunpack.c.h.b16 %v94
    %v602 = vunpack.c.l.b16 %v95
    %v603 = vunpack.c.h.b16 %v95
    %v604 = vunpack.c.l.b16 %v96
    %v605 = vunpack.c.h.b16 %v96
    %v606 = vunpack.c.l.b16 %v97
    %v607 = vunpack.c.h.b16 %v97
    %v608 = vunpack.c.l.b16 %v98
    %v609 = vunpack.c.h.b16 %v98
    %v610 = vunpack.c.l.b16 %v99
    %v611 = vunpack.c.h.b16 %v99
    %v612 = vunpack.c.l.b16 %v100
    %v613 = vunpack.c.h.b16 %v100
    %v614 = vunpack.c.l.b16 %v101
    %v615 = vunpack.c.h.b16 %v101
    %v616 = vunpack.c.l.b16 %v102
    %v617 = vunpack.c.h.b16 %v102
    %v618 = vunpack.c.l.b16 %v103
    %v619 = vunpack.c.h.b16 %v103
    %v620 = vunpack.c.l.b16 %v104
    %v621 = vunpack.c.h.b16 %v104
    %v622 = vunpack.c.l.b16 %v105
    %v623 = vunpack.c.h.b16 %v105
    %v624 = vunpack.c.l.b16 %v106
    %v625 = vunpack.c.h.b16 %v106
    %v626 = vunpack.c.l.b16 %v107
    %v627 = vunpack.c.h.b16 %v107
    %v628 = vunpack.c.l.b16 %v108
    %v629 = vunpack.c.h.b16 %v108
    %v630 = vunpack.c.l.b16 %v109
    %v631 = vunpack.c.h.b16 %v109
    %v632 = vunpack.c.l.b16 %v110
    %v633 = vunpack.c.h.b16 %v110
    %v634 = vunpack.c.l.b16 %v111
    %v635 = vunpack.c.h.b16 %v111
    %v636 = vunpack.c.l.b16 %v112
    %v637 = vunpack.c.h.b16 %v112
    %v638 = vunpack.c.l.b16 %v113
    %v639 = vunpack.c.h.b16 %v113
    %v640 = vunpack.c.l.b16 %v114
    %v641 = vunpack.c.h.b16 %v114
    %v642 = vunpack.c.l.b16 %v115
    %v643 = vunpack.c.h.b16 %v115
    %v644 = vunpack.c.l.b16 %v116
    %v645 = vunpack.c.h.b16 %v116
    %v646 = vunpack.c.l.b16 %v117
    %v647 = vunpack.c.h.b16 %v117
    %v648 = vunpack.c.l.b16 %v118
    %v649 = vunpack.c.h.b16 %v118
    %v650 = vunpack.c.l.b16 %v119
    %v651 = vunpack.c.h.b16 %v119
    %v652 = vunpack.c.l.b16 %v120
    %v653 = vunpack.c.h.b16 %v120
    %v654 = vunpack.c.l.b16 %v121
    %v655 = vunpack.c.h.b16 %v121
    %v656 = vunpack.c.l.b16 %v122
    %v657 = vunpack.c.h.b16 %v122
    %v658 = vunpack.c.l.b16 %v123
    %v659 = vunpack.c.h.b16 %v123
    %v660 = vunpack.c.l.b16 %v124
    %v661 = vunpack.c.h.b16 %v124
    %v662 = vunpack.c.l.b16 %v125
    %v663 = vunpack.c.h.b16 %v125
    %v664 = vunpack.c.l.b16 %v126
    %v665 = vunpack.c.h.b16 %v126
    %v666 = vunpack.c.l.b16 %v127
    %v667 = vunpack.c.h.b16 %v127
    %v668 = vunpack.c.l.b16 %v128
    %v669 = vunpack.c.h.b16 %v128
    %v670 = vunpack.c.l.b16 %v129
    %v671 = vunpack.c.h.b16 %v129
    %v672 = vunpack.c.l.b16 %v130
    %v673 = vunpack.c.h.b16 %v130
    %v674 = vunpack.c.l.b16 %v131
    %v675 = vunpack.c.h.b16 %v131
    %v676 = vunpack.c.l.b16 %v132
    %v677 = vunpack.c.h.b16 %v132
    %v678 = vunpack.c.l.b16 %v133
    %v679 = vunpack.c.h.b16 %v133
    %v680 = vunpack.c.l.b16 %v134
    %v681 = vunpack.c.h.b16 %v134
    %v682 = vunpack.c.l.b16 %v135
    %v683 = vunpack.c.h.b16 %v135
    %v684 = vunpack.c.l.b16 %v136
    %v685 = vunpack.c.h.b16 %v136
    %v686 = vunpack.c.l.b16 %v137
    %v687 = vunpack.c.h.b16 %v137
    %v688 = vunpack.c.l.b16 %v138
    %v689 = vunpack.c.h.b16 %v138
    %v690 = vunpack.c.l.b16 %v139
    %v691 = vunpack.c.h.b16 %v139
    %v692 = vunpack.c.l.b16 %v140
    %v693 = vunpack.c.h.b16 %v140
    %v694 = vunpack.c.l.b16 %v141
    %v695 = vunpack.c.h.b16 %v141
    %v696 = vunpack.c.l.b16 %v142
    %v697 = vunpack.c.h.b16 %v142
    %v698 = vunpack.c.l.b16 %v143
    %v699 = vunpack.c.h.b16 %v143
    %v700 = vunpack.c.l.b16 %v144
    %v701 = vunpack.c.h.b16 %v144
    %v702 = vunpack.c.l.b16 %v145
    %v703 = vunpack.c.h.b16 %v145
    %v704 = vunpack.c.l.b16 %v146
    %v705 = vunpack.c.h.b16 %v146
    %v706 = vunpack.c.l.b16 %v147
    %v707 = vunpack.c.h.b16 %v147
    %v708 = vunpack.c.l.b16 %v148
    %v709 = vunpack.c.h.b16 %v148
    %v710 = vunpack.c.l.b16 %v149
    %v711 = vunpack.c.h.b16 %v149
    %v712 = vunpack.c.l.b16 %v150
    %v713 = vunpack.c.h.b16 %v150
    %v714 = vunpack.c.l.b16 %v151
    %v715 = vunpack.c.h.b16 %v151
    %v716 = vunpack.c.l.b16 %v152
    %v717 = vunpack.c.h.b16 %v152
    %v718 = vunpack.c.l.b16 %v153
    %v719 = vunpack.c.h.b16 %v153
    %v720 = vunpack.c.l.b16 %v154
    %v721 = vunpack.c.h.b16 %v154
    %v722 = vunpack.c.l.b16 %v155
    %v723 = vunpack.c.h.b16 %v155
    %v724 = vunpack.c.l.b16 %v156
    %v725 = vunpack.c.h.b16 %v156
    %v726 = vunpack.c.l.b16 %v157
    %v727 = vunpack.c.h.b16 %v157
    %v728 = vunpack.c.l.b16 %v158
    %v729 = vunpack.c.h.b16 %v158
    %v730 = vunpack.c.l.b16 %v159
    %v731 = vunpack.c.h.b16 %v159
    %v732 = vunpack.c.l.b16 %v160
    %v733 = vunpack.c.h.b16 %v160
    %v734 = vunpack.c.l.b16 %v161
    %v735 = vunpack.c.h.b16 %v161
    %v736 = vunpack.c.l.b16 %v162
    %v737 = vunpack.c.h.b16 %v162
    %v738 = vunpack.c.l.b16 %v163
    %v739 = vunpack.c.h.b16 %v163
    %v740 = vunpack.c.l.b16 %v164
    %v741 = vunpack.c.h.b16 %v164
    %v742 = vunpack.c.l.b16 %v165
    %v743 = vunpack.c.h.b16 %v165
    %v744 = vunpack.c.l.b16 %v166
    %v745 = vunpack.c.h.b16 %v166
    %v746 = vunpack.c.l.b16 %v167
    %v747 = vunpack.c.h.b16 %v167
    %v748 = vunpack.c.l.b16 %v168
    %v749 = vunpack.c.h.b16 %v168
    %v750 = vunpack.c.l.b16 %v169
    %v751 = vunpack.c.h.b16 %v169
    %v752 = vunpack.c.l.b16 %v170
    %v753 = vunpack.c.h.b16 %v170
    %v754 = vunpack.c.l.b16 %v171
    %v755 = vunpack.c.h.b16 %v171
    %v756 = vunpack.c.l.b16 %v172
    %v757 = vunpack.c.h.b16 %v172
    %v758 = vunpack.c.l.b16 %v173
    %v759 = vunpack.c.h.b16 %v173
    %v760 = vunpack.c.l.b16 %v174
    %v761 = vunpack.c.h.b16 %v174
    %v762 = vunpack.c.l.b16 %v175
    %v763 = vunpack.c.h.b16 %v175
    %v764 = vunpack.c.l.b16 %v176
    %v765 = vunpack.c.h.b16 %v176
    %v766 = vunpack.c.l.b16 %v177
    %v767 = vunpack.c.h.b16 %v177
    %v768 = vunpack.c.l.b16 %v178
    %v769 = vunpack.c.h.b16 %v178
    %v770 = vunpack.c.l.b16 %v179
    %v771 = vunpack.c.h.b16 %v179
    %v772 = vunpack.c.l.b16 %v180
    %v773 = vunpack.c.h.b16 %v180
    %v774 = vunpack.c.l.b16 %v181
    %v775 = vunpack.c.h.b16 %v181
    %v776 = vunpack.c.l.b16 %v182
    %v777 = vunpack.c.h.b16 %v182
    %v778 = vunpack.c.l.b16 %v183
    %v779 = vunpack.c.h.b16 %v183
    %v780 = vunpack.c.l.b16 %v184
    %v781 = vunpack.c.h.b16 %v184
    %v782 = vunpack.c.l.b16 %v185
    %v783 = vunpack.c.h.b16 %v185
    %v784 = vunpack.c.l.b16 %v186
    %v785 = vunpack.c.h.b16 %v186
    %v786 = vunpack.c.l.b16 %v187
    %v787 = vunpack.c.h.b16 %v187
    %v788 = vunpack.c.l.b16 %v188
    %v789 = vunpack.c.h.b16 %v188
    %v790 = vunpack.c.l.b16 %v189
    %v791 = vunpack.c.h.b16 %v189
    %v792 = vunpack.c.l.b16 %v190
    %v793 = vunpack.c.h.b16 %v190
    %v794 = vunpack.c.l.b16 %v191
    %v795 = vunpack.c.h.b16 %v191
    %v796 = vunpack.c.l.b16 %v192
    %v797 = vunpack.c.h.b16 %v192
    %v798 = vunpack.c.l.b16 %v193
    %v799 = vunpack.c.h.b16 %v193
    %v800 = vunpack.c.l.b16 %v194
    %v801 = vunpack.c.h.b16 %v194
    %v802 = vunpack.c.l.b16 %v195
    %v803 = vunpack.c.h.b16 %v195
    %v804 = vunpack.c.l.b16 %v196
    %v805 = vunpack.c.h.b16 %v196
    %v806 = vunpack.c.l.b16 %v197
    %v807 = vunpack.c.h.b16 %v197
    %v808 = vunpack.c.l.b16 %v198
    %v809 = vunpack.c.h.b16 %v198
    %v810 = vunpack.c.l.b16 %v199
    %v811 = vunpack.c.h.b16 %v199
    %v812 = vunpack.c.l.b16 %v200
    %v813 = vunpack.c.h.b16 %v200
    %v814 = vunpack.c.l.b16 %v201
    %v815 = vunpack.c.h.b16 %v201
    %v816 = vunpack.c.l.b16 %v202
    %v817 = vunpack.c.h.b16 %v202
    %v818 = vunpack.c.l.b16 %v203
    %v819 = vunpack.c.h.b16 %v203
    %v820 = vunpack.c.l.b16 %v204
    %v821 = vunpack.c.h.b16 %v204
    %v822 = vunpack.c.l.b16 %v205
    %v823 = vunpack.c.h.b16 %v205
    %v824 = vunpack.c.l.b16 %v206
    %v825 = vunpack.c.h.b16 %v206
    %v826 = vunpack.c.l.b16 %v207
    %v827 = vunpack.c.h.b16 %v207
    %v828 = vunpack.c.l.b16 %v208
    %v829 = vunpack.c.h.b16 %v208
    %v830 = vunpack.c.l.b16 %v209
    %v831 = vunpack.c.h.b16 %v209
    %v832 = vunpack.c.l.b16 %v210
    %v833 = vunpack.c.h.b16 %v210
    %v834 = vunpack.c.l.b16 %v211
    %v835 = vunpack.c.h.b16 %v211
    %v836 = vunpack.c.l.b16 %v212
    %v837 = vunpack.c.h.b16 %v212
    %v838 = vunpack.c.l.b16 %v213
    %v839 = vunpack.c.h.b16 %v213
    %v840 = vunpack.c.l.b16 %v214
    %v841 = vunpack.c.h.b16 %v214
    %v842 = vunpack.c.l.b16 %v215
    %v843 = vunpack.c.h.b16 %v215
    %v844 = vunpack.c.l.b16 %v216
    %v845 = vunpack.c.h.b16 %v216
    %v846 = vunpack.c.l.b16 %v217
    %v847 = vunpack.c.h.b16 %v217
    %v848 = vunpack.c.l.b16 %v218
    %v849 = vunpack.c.h.b16 %v218
    %v850 = vunpack.c.l.b16 %v219
    %v851 = vunpack.c.h.b16 %v219
    %v852 = vunpack.c.l.b16 %v220
    %v853 = vunpack.c.h.b16 %v220
    %v854 = vunpack.c.l.b16 %v221
    %v855 = vunpack.c.h.b16 %v221
    %v856 = vunpack.c.l.b16 %v222
    %v857 = vunpack.c.h.b16 %v222
    %v858 = vunpack.c.l.b16 %v223
    %v859 = vunpack.c.h.b16 %v223
    %v860 = vunpack.c.l.b16 %v224
    %v861 = vunpack.c.h.b16 %v224
    %v862 = vunpack.c.l.b16 %v225
    %v863 = vunpack.c.h.b16 %v225
    %v864 = vunpack.c.l.b16 %v226
    %v865 = vunpack.c.h.b16 %v226
    %v866 = vunpack.c.l.b16 %v227
    %v867 = vunpack.c.h.b16 %v227
    %v868 = vunpack.c.l.b16 %v228
    %v869 = vunpack.c.h.b16 %v228
    %v870 = vunpack.c.l.b16 %v229
    %v871 = vunpack.c.h.b16 %v229
    %v872 = vunpack.c.l.b16 %v230
    %v873 = vunpack.c.h.b16 %v230
    %v874 = vunpack.c.l.b16 %v231
    %v875 = vunpack.c.h.b16 %v231
    %v876 = vunpack.c.l.b16 %v232
    %v877 = vunpack.c.h.b16 %v232
    %v878 = vunpack.c.l.b16 %v233
    %v879 = vunpack.c.h.b16 %v233
    %v880 = vunpack.c.l.b16 %v234
    %v881 = vunpack.c.h.b16 %v234
    %v882 = vunpack.c.l.b16 %v235
    %v883 = vunpack.c.h.b16 %v235
    %v884 = vunpack.c.l.b16 %v236
    %v885 = vunpack.c.h.b16 %v236
    %v886 = vunpack.c.l.b16 %v237
    %v887 = vunpack.c.h.b16 %v237
    %v888 = vunpack.c.l.b16 %v238
    %v889 = vunpack.c.h.b16 %v238
    %v890 = vunpack.c.l.b16 %v239
    %v891 = vunpack.c.h.b16 %v239
    %v892 = vunpack.c.l.b16 %v240
    %v893 = vunpack.c.h.b16 %v240
    %v894 = vunpack.c.l.b16 %v241
    %v895 = vunpack.c.h.b16 %v241
    %v896 = vunpack.c.l.b16 %v242
    %v897 = vunpack.c.h.b16 %v242
    %v898 = vunpack.c.l.b16 %v243
    %v899 = vunpack.c.h.b16 %v243
    %v900 = vunpack.c.l.b16 %v244
    %v901 = vunpack.c.h.b16 %v244
    %v902 = vunpack.c.l.b16 %v245
    %v903 = vunpack.c.h.b16 %v245
    %v904 = vunpack.c.l.b16 %v246
    %v905 = vunpack.c.h.b16 %v246
    %v906 = vunpack.c.l.b16 %v247
    %v907 = vunpack.c.h.b16 %v247
    %v908 = vunpack.c.l.b16 %v248
    %v909 = vunpack.c.h.b16 %v248
    %v910 = vunpack.c.l.b16 %v249
    %v911 = vunpack.c.h.b16 %v249
    %v912 = vunpack.c.l.b16 %v250
    %v913 = vunpack.c.h.b16 %v250
    %v914 = vunpack.c.l.b16 %v251
    %v915 = vunpack.c.h.b16 %v251
    %v916 = vunpack.c.l.b16 %v252
    %v917 = vunpack.c.h.b16 %v252
    %v918 = vunpack.c.l.b16 %v253
    %v919 = vunpack.c.h.b16 %v253
    %v920 = vunpack.c.l.b16 %v254
    %v921 = vunpack.c.h.b16 %v254
    %v922 = vunpack.c.l.b16 %v255
    %v923 = vunpack.c.h.b16 %v255
    %v924 = vunpack.c.l.b16 %v256
    %v925 = vunpack.c.h.b16 %v256
    %v926 = vunpack.c.l.b16 %v257
    %v927 = vunpack.c.h.b16 %v257
    %v928 = vunpack.c.l.b16 %v258
    %v929 = vunpack.c.h.b16 %v258
    %v930 = vunpack.c.l.b16 %v259
    %v931 = vunpack.c.h.b16 %v259
    %v932 = vunpack.c.l.b16 %v260
    %v933 = vunpack.c.h.b16 %v260
    %v934 = vunpack.c.l.b16 %v261
    %v935 = vunpack.c.h.b16 %v261
    %v936 = vunpack.c.l.b16 %v262
    %v937 = vunpack.c.h.b16 %v262
    %v938 = vunpack.c.l.b16 %v263
    %v939 = vunpack.c.h.b16 %v263
    %v940 = vunpack.c.l.b16 %v264
    %v941 = vunpack.c.h.b16 %v264
    %v942 = vunpack.c.l.b16 %v265
    %v943 = vunpack.c.h.b16 %v265
    %v944 = vunpack.c.l.b16 %v266
    %v945 = vunpack.c.h.b16 %v266
    %v946 = vunpack.c.l.b16 %v267
    %v947 = vunpack.c.h.b16 %v267
    %v948 = vunpack.c.l.b16 %v268
    %v949 = vunpack.c.h.b16 %v268
    %v950 = vunpack.c.l.b16 %v269
    %v951 = vunpack.c.h.b16 %v269
    %v952 = vunpack.c.l.b16 %v270
    %v953 = vunpack.c.h.b16 %v270
    %v954 = vunpack.c.l.b16 %v271
    %v955 = vunpack.c.h.b16 %v271
    %v956 = vunpack.c.l.b16 %v272
    %v957 = vunpack.c.h.b16 %v272
    %v958 = vunpack.c.l.b16 %v273
    %v959 = vunpack.c.h.b16 %v273
    %v960 = vunpack.c.l.b16 %v274
    %v961 = vunpack.c.h.b16 %v274
    %v962 = vunpack.c.l.b16 %v275
    %v963 = vunpack.c.h.b16 %v275
    %v964 = vunpack.c.l.b16 %v276
    %v965 = vunpack.c.h.b16 %v276
    %v966 = vunpack.c.l.b16 %v277
    %v967 = vunpack.c.h.b16 %v277
    %v968 = vunpack.c.l.b16 %v278
    %v969 = vunpack.c.h.b16 %v278
    %v970 = vunpack.c.l.b16 %v279
    %v971 = vunpack.c.h.b16 %v279
    %v972 = vunpack.c.l.b16 %v280
    %v973 = vunpack.c.h.b16 %v280
    %v974 = vunpack.c.l.b16 %v281
    %v975 = vunpack.c.h.b16 %v281
    %v976 = vunpack.c.l.b16 %v282
    %v977 = vunpack.c.h.b16 %v282
    %v978 = vunpack.c.l.b16 %v283
    %v979 = vunpack.c.h.b16 %v283
    %v980 = vunpack.c.l.b16 %v284
    %v981 = vunpack.c.h.b16 %v284
    %v982 = vunpack.c.l.b16 %v285
    %v983 = vunpack.c.h.b16 %v285
    %v984 = vunpack.c.l.b16 %v286
    %v985 = vunpack.c.h.b16 %v286
    %v986 = vunpack.c.l.b16 %v287
    %v987 = vunpack.c.h.b16 %v287
    %v988 = vunpack.c.l.b16 %v288
    %v989 = vunpack.c.h.b16 %v288
    %v990 = vunpack.c.l.b16 %v289
    %v991 = vunpack.c.h.b16 %v289
    %v992 = vunpack.c.l.b16 %v290
    %v993 = vunpack.c.h.b16 %v290
    %v994 = vunpack.c.l.b16 %v291
    %v995 = vunpack.c.h.b16 %v291
    %v996 = vunpack.c.l.b16 %v292
    %v997 = vunpack.c.h.b16 %v292
    %v998 = vunpack.c.l.b16 %v293
    %v999 = vunpack.c.h.b16 %v293
    %v1000 = vunpack.c.l.b16 %v294
    %v1001 = vunpack.c.h.b16 %v294
    %v1002 = vunpack.c.l.b16 %v295
    %v1003 = vunpack.c.h.b16 %v295
    %v1004 = vunpack.c.l.b16 %v296
    %v1005 = vunpack.c.h.b16 %v296
    %v1006 = vunpack.c.l.b16 %v297
    %v1007 = vunpack.c.h.b16 %v297
    %v1008 = vunpack.c.l.b16 %v298
    %v1009 = vunpack.c.h.b16 %v298
    %v1010 = vunpack.c.l.b16 %v299
    %v1011 = vunpack.c.h.b16 %v299
    %v1012 = vunpack.c.l.b16 %v300
    %v1013 = vunpack.c.h.b16 %v300
    %v1014 = vunpack.c.l.b16 %v301
    %v1015 = vunpack.c.h.b16 %v301
    %v1016 = vunpack.c.l.b16 %v302
    %v1017 = vunpack.c.h.b16 %v302
    %v1018 = vunpack.c.l.b16 %v303
    %v1019 = vunpack.c.h.b16 %v303
    %v1020 = vunpack.c.l.b16 %v304
    %v1021 = vunpack.c.h.b16 %v304
    %v1022 = vunpack.c.l.b16 %v305
    %v1023 = vunpack.c.h.b16 %v305
    %v1024 = vpack.c.b16 %v580, %v576
    %v1025 = vpack.c.b16 %v581, %v577
    %v1026 = vpack.c.b16 %v582, %v578
    %v1027 = vpack.c.b16 %v583, %v579
    %v1028 = vpack.c.b16 %v588, %v584
    %v1029 = vpack.c.b16 %v589, %v585
    %v1030 = vpack.c.b16 %v590, %v586
    %v1031 = vpack.c.b16 %v591, %v587
    %v1032 = vpack.c.b16 %v596, %v592
    %v1033 = vpack.c.b16 %v597, %v593
    %v1034 = vpack.c.b16 %v598, %v594
    %v1035 = vpack.c.b16 %v599, %v595
    %v1036 = vpack.c.b16 %v604, %v600
    %v1037 = vpack.c.b16 %v605, %v601
    %v1038 = vpack.c.b16 %v606, %v602
    %v1039 = vpack.c.b16 %v607, %v603
    %v1040 = vpack.c.b16 %v612, %v608
    %v1041 = vpack.c.b16 %v613, %v609
    %v1042 = vpack.c.b16 %v614, %v610
    %v1043 = vpack.c.b16 %v615, %v611
    %v1044 = vpack.c.b16 %v620, %v616
    %v1045 = vpack.c.b16 %v621, %v617
    %v1046 = vpack.c.b16 %v622, %v618
    %v1047 = vpack.c.b16 %v623, %v619
    %v1048 = vpack.c.b16 %v628, %v624
    %v1049 = vpack.c.b16 %v629, %v625
    %v1050 = vpack.c.b16 %v630, %v626
    %v1051 = vpack.c.b16 %v631, %v627
    %v1052 = vpack.c.b16 %v636, %v632
    %v1053 = vpack.c.b16 %v637, %v633
    %v1054 = vpack.c.b16 %v638, %v634
    %v1055 = vpack.c.b16 %v639, %v635
    %v1056 = vpack.c.b16 %v644, %v640
    %v1057 = vpack.c.b16 %v645, %v641
    %v1058 = vpack.c.b16 %v646, %v642
    %v1059 = vpack.c.b16 %v647, %v643
    %v1060 = vpack.c.b16 %v652, %v648
    %v1061 = vpack.c.b16 %v653, %v649
    %v1062 = vpack.c.b16 %v654, %v650
    %v1063 = vpack.c.b16 %v655, %v651
    %v1064 = vpack.c.b16 %v660, %v656
    %v1065 = vpack.c.b16 %v661, %v657
    %v1066 = vpack.c.b16 %v662, %v658
    %v1067 = vpack.c.b16 %v663, %v659
    %v1068 = vpack.c.b16 %v668, %v664
    %v1069 = vpack.c.b16 %v669, %v665
    %v1070 = vpack.c.b16 %v670, %v666
    %v1071 = vpack.c.b16 %v671, %v667
    %v1072 = vpack.c.b16 %v676, %v672
    %v1073 = vpack.c.b16 %v677, %v673
    %v1074 = vpack.c.b16 %v678, %v674
    %v1075 = vpack.c.b16 %v679, %v675
    %v1076 = vpack.c.b16 %v684, %v680
    %v1077 = vpack.c.b16 %v685, %v681
    %v1078 = vpack.c.b16 %v686, %v682
    %v1079 = vpack.c.b16 %v687, %v683
    %v1080 = vpack.c.b16 %v692, %v688
    %v1081 = vpack.c.b16 %v693, %v689
    %v1082 = vpack.c.b16 %v694, %v690
    %v1083 = vpack.c.b16 %v695, %v691
    %v1084 = vpack.c.b16 %v700, %v696
    %v1085 = vpack.c.b16 %v701, %v697
    %v1086 = vpack.c.b16 %v702, %v698
    %v1087 = vpack.c.b16 %v703, %v699
    %v1088 = vpack.c.b16 %v708, %v704
    %v1089 = vpack.c.b16 %v709, %v705
    %v1090 = vpack.c.b16 %v710, %v706
    %v1091 = vpack.c.b16 %v711, %v707
    %v1092 = vpack.c.b16 %v716, %v712
    %v1093 = vpack.c.b16 %v717, %v713
    %v1094 = vpack.c.b16 %v718, %v714
    %v1095 = vpack.c.b16 %v719, %v715
    %v1096 = vpack.c.b16 %v724, %v720
    %v1097 = vpack.c.b16 %v725, %v721
    %v1098 = vpack.c.b16 %v726, %v722
    %v1099 = vpack.c.b16 %v727, %v723
    %v1100 = vpack.c.b16 %v732, %v728
    %v1101 = vpack.c.b16 %v733, %v729
    %v1102 = vpack.c.b16 %v734, %v730
    %v1103 = vpack.c.b16 %v735, %v731
    %v1104 = vpack.c.b16 %v740, %v736
    %v1105 = vpack.c.b16 %v741, %v737
    %v1106 = vpack.c.b16 %v742, %v738
    %v1107 = vpack.c.b16 %v743, %v739
    %v1108 = vpack.c.b16 %v748, %v744
    %v1109 = vpack.c.b16 %v749, %v745
    %v1110 = vpack.c.b16 %v750, %v746
    %v1111 = vpack.c.b16 %v751, %v747
    %v1112 = vpack.c.b16 %v756, %v752
    %v1113 = vpack.c.b16 %v757, %v753
    %v1114 = vpack.c.b16 %v758, %v754
    %v1115 = vpack.c.b16 %v759, %v755
    %v1116 = vpack.c.b16 %v764, %v760
    %v1117 = vpack.c.b16 %v765, %v761
    %v1118 = vpack.c.b16 %v766, %v762
    %v1119 = vpack.c.b16 %v767, %v763
    %v1120 = vpack.c.b16 %v772, %v768
    %v1121 = vpack.c.b16 %v773, %v769
    %v1122 = vpack.c.b16 %v774, %v770
    %v1123 = vpack.c.b16 %v775, %v771
    %v1124 = vpack.c.b16 %v780, %v776
    %v1125 = vpack.c.b16 %v781, %v777
    %v1126 = vpack.c.b16 %v782, %v778
    %v1127 = vpack.c.b16 %v783, %v779
    %v1128 = vpack.c.b16 %v788, %v784
    %v1129 = vpack.c.b16 %v789, %v785
    %v1130 = vpack.c.b16 %v790, %v786
    %v1131 = vpack.c.b16 %v791, %v787
    %v1132 = vpack.c.b16 %v796, %v792
    %v1133 = vpack.c.b16 %v797, %v793
    %v1134 = vpack.c.b16 %v798, %v794
    %v1135 = vpack.c.b16 %v799, %v795
    %v1136 = vpack.c.b16 %v804, %v800
    %v1137 = vpack.c.b16 %v805, %v801
    %v1138 = vpack.c.b16 %v806, %v802
    %v1139 = vpack.c.b16 %v807, %v803
    %v1140 = vpack.c.b16 %v812, %v808
    %v1141 = vpack.c.b16 %v813, %v809
    %v1142 = vpack.c.b16 %v814, %v810
    %v1143 = vpack.c.b16 %v815, %v811
    %v1144 = vpack.c.b16 %v820, %v816
    %v1145 = vpack.c.b16 %v821, %v817
    %v1146 = vpack.c.b16 %v822, %v818
    %v1147 = vpack.c.b16 %v823, %v819
    %v1148 = vpack.c.b16 %v828, %v824
    %v1149 = vpack.c.b16 %v829, %v825
    %v1150 = vpack.c.b16 %v830, %v826
    %v1151 = vpack.c.b16 %v831, %v827
    %v1152 = vpack.c.b16 %v836, %v832
    %v1153 = vpack.c.b16 %v837, %v833
    %v1154 = vpack.c.b16 %v838, %v834
    %v1155 = vpack.c.b16 %v839, %v835
    %v1156 = vpack.c.b16 %v844, %v840
    %v1157 = vpack.c.b16 %v845, %v841
    %v1158 = vpack.c.b16 %v846, %v842
    %v1159 = vpack.c.b16 %v847, %v843
    %v1160 = vpack.c.b16 %v852, %v848
    %v1161 = vpack.c.b16 %v853, %v849
    %v1162 = vpack.c.b16 %v854, %v850
    %v1163 = vpack.c.b16 %v855, %v851
    %v1164 = vpack.c.b16 %v860, %v856
    %v1165 = vpack.c.b16 %v861, %v857
    %v1166 = vpack.c.b16 %v862, %v858
    %v1167 = vpack.c.b16 %v863, %v859
    %v1168 = vpack.c.b16 %v868, %v864
    %v1169 = vpack.c.b16 %v869, %v865
    %v1170 = vpack.c.b16 %v870, %v866
    %v1171 = vpack.c.b16 %v871, %v867
    %v1172 = vpack.c.b16 %v876, %v872
    %v1173 = vpack.c.b16 %v877, %v873
    %v1174 = vpack.c.b16 %v878, %v874
    %v1175 = vpack.c.b16 %v879, %v875
    %v1176 = vpack.c.b16 %v884, %v880
    %v1177 = vpack.c.b16 %v885, %v881
    %v1178 = vpack.c.b16 %v886, %v882
    %v1179 = vpack.c.b16 %v887, %v883
    %v1180 = vpack.c.b16 %v892, %v888
    %v1181 = vpack.c.b16 %v893, %v889
    %v1182 = vpack.c.b16 %v894, %v890
    %v1183 = vpack.c.b16 %v895, %v891
    %v1184 = vpack.c.b16 %v900, %v896
    %v1185 = vpack.c.b16 %v901, %v897
    %v1186 = vpack.c.b16 %v902, %v898
    %v1187 = vpack.c.b16 %v903, %v899
    %v1188 = vpack.c.b16 %v908, %v904
    %v1189 = vpack.c.b16 %v909, %v905
    %v1190 = vpack.c.b16 %v910, %v906
    %v1191 = vpack.c.b16 %v911, %v907
    %v1192 = vpack.c.b16 %v916, %v912
    %v1193 = vpack.c.b16 %v917, %v913
    %v1194 = vpack.c.b16 %v918, %v914
    %v1195 = vpack.c.b16 %v919, %v915
    %v1196 = vpack.c.b16 %v924, %v920
    %v1197 = vpack.c.b16 %v925, %v921
    %v1198 = vpack.c.b16 %v926, %v922
    %v1199 = vpack.c.b16 %v927, %v923
    %v1200 = vpack.c.b16 %v932, %v928
    %v1201 = vpack.c.b16 %v933, %v929
    %v1202 = vpack.c.b16 %v934, %v930
    %v1203 = vpack.c.b16 %v935, %v931
    %v1204 = vpack.c.b16 %v940, %v936
    %v1205 = vpack.c.b16 %v941, %v937
    %v1206 = vpack.c.b16 %v942, %v938
    %v1207 = vpack.c.b16 %v943, %v939
    %v1208 = vpack.c.b16 %v948, %v944
    %v1209 = vpack.c.b16 %v949, %v945
    %v1210 = vpack.c.b16 %v950, %v946
    %v1211 = vpack.c.b16 %v951, %v947
    %v1212 = vpack.c.b16 %v956, %v952
    %v1213 = vpack.c.b16 %v957, %v953
    %v1214 = vpack.c.b16 %v958, %v954
    %v1215 = vpack.c.b16 %v959, %v955
    %v1216 = vpack.c.b16 %v964, %v960
    %v1217 = vpack.c.b16 %v965, %v961
    %v1218 = vpack.c.b16 %v966, %v962
    %v1219 = vpack.c.b16 %v967, %v963
    %v1220 = vpack.c.b16 %v972, %v968
    %v1221 = vpack.c.b16 %v973, %v969
    %v1222 = vpack.c.b16 %v974, %v970
    %v1223 = vpack.c.b16 %v975, %v971
    %v1224 = vpack.c.b16 %v980, %v976
    %v1225 = vpack.c.b16 %v981, %v977
    %v1226 = vpack.c.b16 %v982, %v978
    %v1227 = vpack.c.b16 %v983, %v979
    %v1228 = vpack.c.b16 %v988, %v984
    %v1229 = vpack.c.b16 %v989, %v985
    %v1230 = vpack.c.b16 %v990, %v986
    %v1231 = vpack.c.b16 %v991, %v987
    %v1232 = vpack.c.b16 %v996, %v992
    %v1233 = vpack.c.b16 %v997, %v993
    %v1234 = vpack.c.b16 %v998, %v994
    %v1235 = vpack.c.b16 %v999, %v995
    %v1236 = vpack.c.b16 %v1004, %v1000
    %v1237 = vpack.c.b16 %v1005, %v1001
    %v1238 = vpack.c.b16 %v1006, %v1002
    %v1239 = vpack.c.b16 %v1007, %v1003
    %v1240 = vpack.c.b16 %v1012, %v1008
    %v1241 = vpack.c.b16 %v1013, %v1009
    %v1242 = vpack.c.b16 %v1014, %v1010
    %v1243 = vpack.c.b16 %v1015, %v1011
    %v1244 = vpack.c.b16 %v1020, %v1016
    %v1245 = vpack.c.b16 %v1021, %v1017
    %v1246 = vpack.c.b16 %v1022, %v1018
    %v1247 = vpack.c.b16 %v1023, %v1019
    %1472 = vmatpush.bf16.msra.mxu0 %v1052
    %1473 = vmatpush.bf16.msra.mxu0 %v1048
    %1474 = vmatpush.bf16.msra.mxu0 %v1044
    %1475 = vmatpush.bf16.msra.mxu0 %v1040
    %1476 = vmatpush.bf16.msra.mxu0 %v1036
    %1477 = vmatpush.bf16.msra.mxu0 %v1032
    %1478 = vmatpush.bf16.msra.mxu0 %v1028
    %1479 = vmatpush.bf16.msra.mxu0 %v1024
    %1480 = vmatmul.bf16.gmra.mxu0 %v338
    %v1481 = vpop.f32.mrf.mxu0
    %v1482 = vadd.f32 %v308, %v1481
    %v1483 = vpop.f32.mrf.mxu0
    %v1484 = vadd.f32 %v308, %v1483
    %1485 = vdwg.mxu0
    %1486 = vmatpush.bf16.msra.mxu0 %v1084
    %1487 = vmatpush.bf16.msra.mxu0 %v1080
    %1488 = vmatpush.bf16.msra.mxu0 %v1076
    %1489 = vmatpush.bf16.msra.mxu0 %v1072
    %1490 = vmatpush.bf16.msra.mxu0 %v1068
    %1491 = vmatpush.bf16.msra.mxu0 %v1064
    %1492 = vmatpush.bf16.msra.mxu0 %v1060
    %1493 = vmatpush.bf16.msra.mxu0 %v1056
    %1494 = vmatmul.bf16.gmra.mxu0 %v339
    %v1495 = vpop.f32.mrf.mxu0
    %v1496 = vadd.f32 %v1482, %v1495
    %v1497 = vpop.f32.mrf.mxu0
    %v1498 = vadd.f32 %v1484, %v1497
    %1499 = vdwg.mxu0
    %1500 = vmatpush.bf16.msra.mxu0 %v1116
    %1501 = vmatpush.bf16.msra.mxu0 %v1112
    %1502 = vmatpush.bf16.msra.mxu0 %v1108
    %1503 = vmatpush.bf16.msra.mxu0 %v1104
    %1504 = vmatpush.bf16.msra.mxu0 %v1100
    %1505 = vmatpush.bf16.msra.mxu0 %v1096
    %1506 = vmatpush.bf16.msra.mxu0 %v1092
    %1507 = vmatpush.bf16.msra.mxu0 %v1088
    %1508 = vmatmul.bf16.gmra.mxu0 %v340
    %v1509 = vpop.f32.mrf.mxu0
    %v1510 = vadd.f32 %v1496, %v1509
    %v1511 = vpop.f32.mrf.mxu0
    %v1512 = vadd.f32 %v1498, %v1511
    %1513 = vdwg.mxu0
    %1514 = vmatpush.bf16.msra.mxu0 %v1148
    %1515 = vmatpush.bf16.msra.mxu0 %v1144
    %1516 = vmatpush.bf16.msra.mxu0 %v1140
    %1517 = vmatpush.bf16.msra.mxu0 %v1136
    %1518 = vmatpush.bf16.msra.mxu0 %v1132
    %1519 = vmatpush.bf16.msra.mxu0 %v1128
    %1520 = vmatpush.bf16.msra.mxu0 %v1124
    %1521 = vmatpush.bf16.msra.mxu0 %v1120
    %1522 = vmatmul.bf16.gmra.mxu0 %v341
    %v1523 = vpop.f32.mrf.mxu0
    %v1524 = vadd.f32 %v1510, %v1523
    %v1525 = vpop.f32.mrf.mxu0
    %v1526 = vadd.f32 %v1512, %v1525
    %1527 = vdwg.mxu0
    %1528 = vmatpush.bf16.msra.mxu0 %v1180
    %1529 = vmatpush.bf16.msra.mxu0 %v1176
    %1530 = vmatpush.bf16.msra.mxu0 %v1172
    %1531 = vmatpush.bf16.msra.mxu0 %v1168
    %1532 = vmatpush.bf16.msra.mxu0 %v1164
    %1533 = vmatpush.bf16.msra.mxu0 %v1160
    %1534 = vmatpush.bf16.msra.mxu0 %v1156
    %1535 = vmatpush.bf16.msra.mxu0 %v1152
    %1536 = vmatmul.bf16.gmra.mxu0 %v342
    %v1537 = vpop.f32.mrf.mxu0
    %v1538 = vadd.f32 %v1524, %v1537
    %v1539 = vpop.f32.mrf.mxu0
    %v1540 = vadd.f32 %v1526, %v1539
    %1541 = vdwg.mxu0
    %1542 = vmatpush.bf16.msra.mxu0 %v1212
    %1543 = vmatpush.bf16.msra.mxu0 %v1208
    %1544 = vmatpush.bf16.msra.mxu0 %v1204
    %1545 = vmatpush.bf16.msra.mxu0 %v1200
    %1546 = vmatpush.bf16.msra.mxu0 %v1196
    %1547 = vmatpush.bf16.msra.mxu0 %v1192
    %1548 = vmatpush.bf16.msra.mxu0 %v1188
    %1549 = vmatpush.bf16.msra.mxu0 %v1184
    %1550 = vmatmul.bf16.gmra.mxu0 %v343
    %v1551 = vpop.f32.mrf.mxu0
    %v1552 = vadd.f32 %v1538, %v1551
    %v1553 = vpop.f32.mrf.mxu0
    %v1554 = vadd.f32 %v1540, %v1553
    %1555 = vdwg.mxu0
    %1556 = vmatpush.bf16.msra.mxu0 %v1244
    %1557 = vmatpush.bf16.msra.mxu0 %v1240
    %1558 = vmatpush.bf16.msra.mxu0 %v1236
    %1559 = vmatpush.bf16.msra.mxu0 %v1232
    %1560 = vmatpush.bf16.msra.mxu0 %v1228
    %1561 = vmatpush.bf16.msra.mxu0 %v1224
    %1562 = vmatpush.bf16.msra.mxu0 %v1220
    %1563 = vmatpush.bf16.msra.mxu0 %v1216
    %1564 = vmatmul.bf16.gmra.mxu0 %v344
    %v1565 = vpop.f32.mrf.mxu0
    %v1566 = vadd.f32 %v1552, %v1565
    %v1567 = vpop.f32.mrf.mxu0
    %v1568 = vadd.f32 %v1554, %v1567
    %1569 = vdwg.mxu0
    %1570 = vmatpush.bf16.msra.mxu0 %v1053
    %1571 = vmatpush.bf16.msra.mxu0 %v1049
    %1572 = vmatpush.bf16.msra.mxu0 %v1045
    %1573 = vmatpush.bf16.msra.mxu0 %v1041
    %1574 = vmatpush.bf16.msra.mxu0 %v1037
    %1575 = vmatpush.bf16.msra.mxu0 %v1033
    %1576 = vmatpush.bf16.msra.mxu0 %v1029
    %1577 = vmatpush.bf16.msra.mxu0 %v1025
    %1578 = vmatmul.bf16.gmra.mxu0 %v338
    %v1579 = vpop.f32.mrf.mxu0
    %v1580 = vadd.f32 %v309, %v1579
    %v1581 = vpop.f32.mrf.mxu0
    %v1582 = vadd.f32 %v309, %v1581
    %1583 = vdwg.mxu0
    %1584 = vmatpush.bf16.msra.mxu0 %v1085
    %1585 = vmatpush.bf16.msra.mxu0 %v1081
    %1586 = vmatpush.bf16.msra.mxu0 %v1077
    %1587 = vmatpush.bf16.msra.mxu0 %v1073
    %1588 = vmatpush.bf16.msra.mxu0 %v1069
    %1589 = vmatpush.bf16.msra.mxu0 %v1065
    %1590 = vmatpush.bf16.msra.mxu0 %v1061
    %1591 = vmatpush.bf16.msra.mxu0 %v1057
    %1592 = vmatmul.bf16.gmra.mxu0 %v339
    %v1593 = vpop.f32.mrf.mxu0
    %v1594 = vadd.f32 %v1580, %v1593
    %v1595 = vpop.f32.mrf.mxu0
    %v1596 = vadd.f32 %v1582, %v1595
    %1597 = vdwg.mxu0
    %1598 = vmatpush.bf16.msra.mxu0 %v1117
    %1599 = vmatpush.bf16.msra.mxu0 %v1113
    %1600 = vmatpush.bf16.msra.mxu0 %v1109
    %1601 = vmatpush.bf16.msra.mxu0 %v1105
    %1602 = vmatpush.bf16.msra.mxu0 %v1101
    %1603 = vmatpush.bf16.msra.mxu0 %v1097
    %1604 = vmatpush.bf16.msra.mxu0 %v1093
    %1605 = vmatpush.bf16.msra.mxu0 %v1089
    %1606 = vmatmul.bf16.gmra.mxu0 %v340
    %v1607 = vpop.f32.mrf.mxu0
    %v1608 = vadd.f32 %v1594, %v1607
    %v1609 = vpop.f32.mrf.mxu0
    %v1610 = vadd.f32 %v1596, %v1609
    %1611 = vdwg.mxu0
    %1612 = vmatpush.bf16.msra.mxu0 %v1149
    %1613 = vmatpush.bf16.msra.mxu0 %v1145
    %1614 = vmatpush.bf16.msra.mxu0 %v1141
    %1615 = vmatpush.bf16.msra.mxu0 %v1137
    %1616 = vmatpush.bf16.msra.mxu0 %v1133
    %1617 = vmatpush.bf16.msra.mxu0 %v1129
    %1618 = vmatpush.bf16.msra.mxu0 %v1125
    %1619 = vmatpush.bf16.msra.mxu0 %v1121
    %1620 = vmatmul.bf16.gmra.mxu0 %v341
    %v1621 = vpop.f32.mrf.mxu0
    %v1622 = vadd.f32 %v1608, %v1621
    %v1623 = vpop.f32.mrf.mxu0
    %v1624 = vadd.f32 %v1610, %v1623
    %1625 = vdwg.mxu0
    %1626 = vmatpush.bf16.msra.mxu0 %v1181
    %1627 = vmatpush.bf16.msra.mxu0 %v1177
    %1628 = vmatpush.bf16.msra.mxu0 %v1173
    %1629 = vmatpush.bf16.msra.mxu0 %v1169
    %1630 = vmatpush.bf16.msra.mxu0 %v1165
    %1631 = vmatpush.bf16.msra.mxu0 %v1161
    %1632 = vmatpush.bf16.msra.mxu0 %v1157
    %1633 = vmatpush.bf16.msra.mxu0 %v1153
    %1634 = vmatmul.bf16.gmra.mxu0 %v342
    %v1635 = vpop.f32.mrf.mxu0
    %v1636 = vadd.f32 %v1622, %v1635
    %v1637 = vpop.f32.mrf.mxu0
    %v1638 = vadd.f32 %v1624, %v1637
    %1639 = vdwg.mxu0
    %1640 = vmatpush.bf16.msra.mxu0 %v1213
    %1641 = vmatpush.bf16.msra.mxu0 %v1209
    %1642 = vmatpush.bf16.msra.mxu0 %v1205
    %1643 = vmatpush.bf16.msra.mxu0 %v1201
    %1644 = vmatpush.bf16.msra.mxu0 %v1197
    %1645 = vmatpush.bf16.msra.mxu0 %v1193
    %1646 = vmatpush.bf16.msra.mxu0 %v1189
    %1647 = vmatpush.bf16.msra.mxu0 %v1185
    %1648 = vmatmul.bf16.gmra.mxu0 %v343
    %v1649 = vpop.f32.mrf.mxu0
    %v1650 = vadd.f32 %v1636, %v1649
    %v1651 = vpop.f32.mrf.mxu0
    %v1652 = vadd.f32 %v1638, %v1651
    %1653 = vdwg.mxu0
    %1654 = vmatpush.bf16.msra.mxu0 %v1245
    %1655 = vmatpush.bf16.msra.mxu0 %v1241
    %1656 = vmatpush.bf16.msra.mxu0 %v1237
    %1657 = vmatpush.bf16.msra.mxu0 %v1233
    %1658 = vmatpush.bf16.msra.mxu0 %v1229
    %1659 = vmatpush.bf16.msra.mxu0 %v1225
    %1660 = vmatpush.bf16.msra.mxu0 %v1221
    %1661 = vmatpush.bf16.msra.mxu0 %v1217
    %1662 = vmatmul.bf16.gmra.mxu0 %v344
    %v1663 = vpop.f32.mrf.mxu0
    %v1664 = vadd.f32 %v1650, %v1663
    %v1665 = vpop.f32.mrf.mxu0
    %v1666 = vadd.f32 %v1652, %v1665
    %1667 = vdwg.mxu0
    %1668 = vmatpush.bf16.msra.mxu0 %v1054
    %1669 = vmatpush.bf16.msra.mxu0 %v1050
    %1670 = vmatpush.bf16.msra.mxu0 %v1046
    %1671 = vmatpush.bf16.msra.mxu0 %v1042
    %1672 = vmatpush.bf16.msra.mxu0 %v1038
    %1673 = vmatpush.bf16.msra.mxu0 %v1034
    %1674 = vmatpush.bf16.msra.mxu0 %v1030
    %1675 = vmatpush.bf16.msra.mxu0 %v1026
    %1676 = vmatmul.bf16.gmra.mxu0 %v338
    %v1677 = vpop.f32.mrf.mxu0
    %v1678 = vadd.f32 %v310, %v1677
    %v1679 = vpop.f32.mrf.mxu0
    %v1680 = vadd.f32 %v310, %v1679
    %1681 = vdwg.mxu0
    %1682 = vmatpush.bf16.msra.mxu0 %v1086
    %1683 = vmatpush.bf16.msra.mxu0 %v1082
    %1684 = vmatpush.bf16.msra.mxu0 %v1078
    %1685 = vmatpush.bf16.msra.mxu0 %v1074
    %1686 = vmatpush.bf16.msra.mxu0 %v1070
    %1687 = vmatpush.bf16.msra.mxu0 %v1066
    %1688 = vmatpush.bf16.msra.mxu0 %v1062
    %1689 = vmatpush.bf16.msra.mxu0 %v1058
    %1690 = vmatmul.bf16.gmra.mxu0 %v339
    %v1691 = vpop.f32.mrf.mxu0
    %v1692 = vadd.f32 %v1678, %v1691
    %v1693 = vpop.f32.mrf.mxu0
    %v1694 = vadd.f32 %v1680, %v1693
    %1695 = vdwg.mxu0
    %1696 = vmatpush.bf16.msra.mxu0 %v1118
    %1697 = vmatpush.bf16.msra.mxu0 %v1114
    %1698 = vmatpush.bf16.msra.mxu0 %v1110
    %1699 = vmatpush.bf16.msra.mxu0 %v1106
    %1700 = vmatpush.bf16.msra.mxu0 %v1102
    %1701 = vmatpush.bf16.msra.mxu0 %v1098
    %1702 = vmatpush.bf16.msra.mxu0 %v1094
    %1703 = vmatpush.bf16.msra.mxu0 %v1090
    %1704 = vmatmul.bf16.gmra.mxu0 %v340
    %v1705 = vpop.f32.mrf.mxu0
    %v1706 = vadd.f32 %v1692, %v1705
    %v1707 = vpop.f32.mrf.mxu0
    %v1708 = vadd.f32 %v1694, %v1707
    %1709 = vdwg.mxu0
    %1710 = vmatpush.bf16.msra.mxu0 %v1150
    %1711 = vmatpush.bf16.msra.mxu0 %v1146
    %1712 = vmatpush.bf16.msra.mxu0 %v1142
    %1713 = vmatpush.bf16.msra.mxu0 %v1138
    %1714 = vmatpush.bf16.msra.mxu0 %v1134
    %1715 = vmatpush.bf16.msra.mxu0 %v1130
    %1716 = vmatpush.bf16.msra.mxu0 %v1126
    %1717 = vmatpush.bf16.msra.mxu0 %v1122
    %1718 = vmatmul.bf16.gmra.mxu0 %v341
    %v1719 = vpop.f32.mrf.mxu0
    %v1720 = vadd.f32 %v1706, %v1719
    %v1721 = vpop.f32.mrf.mxu0
    %v1722 = vadd.f32 %v1708, %v1721
    %1723 = vdwg.mxu0
    %1724 = vmatpush.bf16.msra.mxu0 %v1182
    %1725 = vmatpush.bf16.msra.mxu0 %v1178
    %1726 = vmatpush.bf16.msra.mxu0 %v1174
    %1727 = vmatpush.bf16.msra.mxu0 %v1170
    %1728 = vmatpush.bf16.msra.mxu0 %v1166
    %1729 = vmatpush.bf16.msra.mxu0 %v1162
    %1730 = vmatpush.bf16.msra.mxu0 %v1158
    %1731 = vmatpush.bf16.msra.mxu0 %v1154
    %1732 = vmatmul.bf16.gmra.mxu0 %v342
    %v1733 = vpop.f32.mrf.mxu0
    %v1734 = vadd.f32 %v1720, %v1733
    %v1735 = vpop.f32.mrf.mxu0
    %v1736 = vadd.f32 %v1722, %v1735
    %1737 = vdwg.mxu0
    %1738 = vmatpush.bf16.msra.mxu0 %v1214
    %1739 = vmatpush.bf16.msra.mxu0 %v1210
    %1740 = vmatpush.bf16.msra.mxu0 %v1206
    %1741 = vmatpush.bf16.msra.mxu0 %v1202
    %1742 = vmatpush.bf16.msra.mxu0 %v1198
    %1743 = vmatpush.bf16.msra.mxu0 %v1194
    %1744 = vmatpush.bf16.msra.mxu0 %v1190
    %1745 = vmatpush.bf16.msra.mxu0 %v1186
    %1746 = vmatmul.bf16.gmra.mxu0 %v343
    %v1747 = vpop.f32.mrf.mxu0
    %v1748 = vadd.f32 %v1734, %v1747
    %v1749 = vpop.f32.mrf.mxu0
    %v1750 = vadd.f32 %v1736, %v1749
    %1751 = vdwg.mxu0
    %1752 = vmatpush.bf16.msra.mxu0 %v1246
    %1753 = vmatpush.bf16.msra.mxu0 %v1242
    %1754 = vmatpush.bf16.msra.mxu0 %v1238
    %1755 = vmatpush.bf16.msra.mxu0 %v1234
    %1756 = vmatpush.bf16.msra.mxu0 %v1230
    %1757 = vmatpush.bf16.msra.mxu0 %v1226
    %1758 = vmatpush.bf16.msra.mxu0 %v1222
    %1759 = vmatpush.bf16.msra.mxu0 %v1218
    %1760 = vmatmul.bf16.gmra.mxu0 %v344
    %v1761 = vpop.f32.mrf.mxu0
    %v1762 = vadd.f32 %v1748, %v1761
    %v1763 = vpop.f32.mrf.mxu0
    %v1764 = vadd.f32 %v1750, %v1763
    %1765 = vdwg.mxu0
    %1766 = vmatpush.bf16.msra.mxu0 %v1055
    %1767 = vmatpush.bf16.msra.mxu0 %v1051
    %1768 = vmatpush.bf16.msra.mxu0 %v1047
    %1769 = vmatpush.bf16.msra.mxu0 %v1043
    %1770 = vmatpush.bf16.msra.mxu0 %v1039
    %1771 = vmatpush.bf16.msra.mxu0 %v1035
    %1772 = vmatpush.bf16.msra.mxu0 %v1031
    %1773 = vmatpush.bf16.msra.mxu0 %v1027
    %1774 = vmatmul.bf16.gmra.mxu0 %v338
    %v1775 = vpop.f32.mrf.mxu0
    %v1776 = vadd.f32 %v311, %v1775
    %v1777 = vpop.f32.mrf.mxu0
    %v1778 = vadd.f32 %v311, %v1777
    %1779 = vdwg.mxu0
    %1780 = vmatpush.bf16.msra.mxu0 %v1087
    %1781 = vmatpush.bf16.msra.mxu0 %v1083
    %1782 = vmatpush.bf16.msra.mxu0 %v1079
    %1783 = vmatpush.bf16.msra.mxu0 %v1075
    %1784 = vmatpush.bf16.msra.mxu0 %v1071
    %1785 = vmatpush.bf16.msra.mxu0 %v1067
    %1786 = vmatpush.bf16.msra.mxu0 %v1063
    %1787 = vmatpush.bf16.msra.mxu0 %v1059
    %1788 = vmatmul.bf16.gmra.mxu0 %v339
    %v1789 = vpop.f32.mrf.mxu0
    %v1790 = vadd.f32 %v1776, %v1789
    %v1791 = vpop.f32.mrf.mxu0
    %v1792 = vadd.f32 %v1778, %v1791
    %1793 = vdwg.mxu0
    %1794 = vmatpush.bf16.msra.mxu0 %v1119
    %1795 = vmatpush.bf16.msra.mxu0 %v1115
    %1796 = vmatpush.bf16.msra.mxu0 %v1111
    %1797 = vmatpush.bf16.msra.mxu0 %v1107
    %1798 = vmatpush.bf16.msra.mxu0 %v1103
    %1799 = vmatpush.bf16.msra.mxu0 %v1099
    %1800 = vmatpush.bf16.msra.mxu0 %v1095
    %1801 = vmatpush.bf16.msra.mxu0 %v1091
    %1802 = vmatmul.bf16.gmra.mxu0 %v340
    %v1803 = vpop.f32.mrf.mxu0
    %v1804 = vadd.f32 %v1790, %v1803
    %v1805 = vpop.f32.mrf.mxu0
    %v1806 = vadd.f32 %v1792, %v1805
    %1807 = vdwg.mxu0
    %1808 = vmatpush.bf16.msra.mxu0 %v1151
    %1809 = vmatpush.bf16.msra.mxu0 %v1147
    %1810 = vmatpush.bf16.msra.mxu0 %v1143
    %1811 = vmatpush.bf16.msra.mxu0 %v1139
    %1812 = vmatpush.bf16.msra.mxu0 %v1135
    %1813 = vmatpush.bf16.msra.mxu0 %v1131
    %1814 = vmatpush.bf16.msra.mxu0 %v1127
    %1815 = vmatpush.bf16.msra.mxu0 %v1123
    %1816 = vmatmul.bf16.gmra.mxu0 %v341
    %v1817 = vpop.f32.mrf.mxu0
    %v1818 = vadd.f32 %v1804, %v1817
    %v1819 = vpop.f32.mrf.mxu0
    %v1820 = vadd.f32 %v1806, %v1819
    %1821 = vdwg.mxu0
    %1822 = vmatpush.bf16.msra.mxu0 %v1183
    %1823 = vmatpush.bf16.msra.mxu0 %v1179
    %1824 = vmatpush.bf16.msra.mxu0 %v1175
    %1825 = vmatpush.bf16.msra.mxu0 %v1171
    %1826 = vmatpush.bf16.msra.mxu0 %v1167
    %1827 = vmatpush.bf16.msra.mxu0 %v1163
    %1828 = vmatpush.bf16.msra.mxu0 %v1159
    %1829 = vmatpush.bf16.msra.mxu0 %v1155
    %1830 = vmatmul.bf16.gmra.mxu0 %v342
    %v1831 = vpop.f32.mrf.mxu0
    %v1832 = vadd.f32 %v1818, %v1831
    %v1833 = vpop.f32.mrf.mxu0
    %v1834 = vadd.f32 %v1820, %v1833
    %1835 = vdwg.mxu0
    %1836 = vmatpush.bf16.msra.mxu0 %v1215
    %1837 = vmatpush.bf16.msra.mxu0 %v1211
    %1838 = vmatpush.bf16.msra.mxu0 %v1207
    %1839 = vmatpush.bf16.msra.mxu0 %v1203
    %1840 = vmatpush.bf16.msra.mxu0 %v1199
    %1841 = vmatpush.bf16.msra.mxu0 %v1195
    %1842 = vmatpush.bf16.msra.mxu0 %v1191
    %1843 = vmatpush.bf16.msra.mxu0 %v1187
    %1844 = vmatmul.bf16.gmra.mxu0 %v343
    %v1845 = vpop.f32.mrf.mxu0
    %v1846 = vadd.f32 %v1832, %v1845
    %v1847 = vpop.f32.mrf.mxu0
    %v1848 = vadd.f32 %v1834, %v1847
    %1849 = vdwg.mxu0
    %1850 = vmatpush.bf16.msra.mxu0 %v1247
    %1851 = vmatpush.bf16.msra.mxu0 %v1243
    %1852 = vmatpush.bf16.msra.mxu0 %v1239
    %1853 = vmatpush.bf16.msra.mxu0 %v1235
    %1854 = vmatpush.bf16.msra.mxu0 %v1231
    %1855 = vmatpush.bf16.msra.mxu0 %v1227
    %1856 = vmatpush.bf16.msra.mxu0 %v1223
    %1857 = vmatpush.bf16.msra.mxu0 %v1219
    %1858 = vmatmul.bf16.gmra.mxu0 %v344
    %v1859 = vpop.f32.mrf.mxu0
    %v1860 = vadd.f32 %v1846, %v1859
    %v1861 = vpop.f32.mrf.mxu0
    %v1862 = vadd.f32 %v1848, %v1861
    %1863 = vdwg.mxu0
    %v1864 = vsub.f32 0.0, %v1566
    %v1865 = vsub.f32 0.0, %v1664
    %v1866 = vsub.f32 0.0, %v1762
    %v1867 = vsub.f32 0.0, %v1860
    %v1868 = vsub.f32 0.0, %v1568
    %v1869 = vsub.f32 0.0, %v1666
    %v1870 = vsub.f32 0.0, %v1764
    %v1871 = vsub.f32 0.0, %v1862
    %v1872 = vmul.f32 %v1864, 1.442695
    %v1873 = vpow.pop %v1872
    %v1874 = vmul.f32 %v1865, 1.442695
    %v1875 = vpow.pop %v1874
    %v1876 = vmul.f32 %v1866, 1.442695
    %v1877 = vpow.pop %v1876
    %v1878 = vmul.f32 %v1867, 1.442695
    %v1879 = vpow.pop %v1878
    %v1880 = vmul.f32 %v1868, 1.442695
    %v1881 = vpow.pop %v1880
    %v1882 = vmul.f32 %v1869, 1.442695
    %v1883 = vpow.pop %v1882
    %v1884 = vmul.f32 %v1870, 1.442695
    %v1885 = vpow.pop %v1884
    %v1886 = vmul.f32 %v1871, 1.442695
    %v1887 = vpow.pop %v1886
    %v1888 = vadd.f32 %v1873, 1.0
    %v1889 = vadd.f32 %v1875, 1.0
    %v1890 = vadd.f32 %v1877, 1.0
    %v1891 = vadd.f32 %v1879, 1.0
    %v1892 = vadd.f32 %v1881, 1.0
    %v1893 = vadd.f32 %v1883, 1.0
    %v1894 = vadd.f32 %v1885, 1.0
    %v1895 = vadd.f32 %v1887, 1.0
    %v1896 = vrcp.pop %v1888
    %v1897 = vrcp.pop %v1889
    %v1898 = vrcp.pop %v1890
    %v1899 = vrcp.pop %v1891
    %v1900 = vrcp.pop %v1892
    %v1901 = vrcp.pop %v1893
    %v1902 = vrcp.pop %v1894
    %v1903 = vrcp.pop %v1895
    %v1904 = vmul.f32 %v1566, %v1896
    %v1905 = vmul.f32 %v1664, %v1897
    %v1906 = vmul.f32 %v1762, %v1898
    %v1907 = vmul.f32 %v1860, %v1899
    %v1908 = vmul.f32 %v1568, %v1900
    %v1909 = vmul.f32 %v1666, %v1901
    %v1910 = vmul.f32 %v1764, %v1902
    %v1911 = vmul.f32 %v1862, %v1903
    %v1912 = vpack.c.bf16 %v1908, %v1904
    %v1913 = vpack.c.bf16 %v1909, %v1905
    %v1914 = vpack.c.bf16 %v1910, %v1906
    %v1915 = vpack.c.bf16 %v1911, %v1907
    %v1916 = vld [vmem:[#allocation5] sm:$0xff]
    %v1917 = vld [vmem:[#allocation5 + $0x8] sm:$0xff]
    %v1918 = vld [vmem:[#allocation5 + $0x10] sm:$0xff]
    %v1919 = vld [vmem:[#allocation5 + $0x18] sm:$0xff]
    %v1920 = vld [vmem:[#allocation5 + $0x20] sm:$0xff]
    %v1921 = vld [vmem:[#allocation5 + $0x28] sm:$0xff]
    %v1922 = vld [vmem:[#allocation5 + $0x30] sm:$0xff]
    %v1923 = vld [vmem:[#allocation5 + $0x38] sm:$0xff]
    %v1924 = vld [vmem:[#allocation5 + $0x40] sm:$0xff]
    %v1925 = vld [vmem:[#allocation5 + $0x48] sm:$0xff]
    %v1926 = vld [vmem:[#allocation5 + $0x50] sm:$0xff]
    %v1927 = vld [vmem:[#allocation5 + $0x58] sm:$0xff]
    %v1928 = vld [vmem:[#allocation5 + $0x60] sm:$0xff]
    %v1929 = vld [vmem:[#allocation5 + $0x68] sm:$0xff]
    %v1930 = vld [vmem:[#allocation5 + $0x70] sm:$0xff]
    %v1931 = vld [vmem:[#allocation5 + $0x78] sm:$0xff]
    %v1932 = vld [vmem:[#allocation5 + $0x80] sm:$0xff]
    %v1933 = vld [vmem:[#allocation5 + $0x88] sm:$0xff]
    %v1934 = vld [vmem:[#allocation5 + $0x90] sm:$0xff]
    %v1935 = vld [vmem:[#allocation5 + $0x98] sm:$0xff]
    %v1936 = vld [vmem:[#allocation5 + $0xa0] sm:$0xff]
    %v1937 = vld [vmem:[#allocation5 + $0xa8] sm:$0xff]
    %v1938 = vld [vmem:[#allocation5 + $0xb0] sm:$0xff]
    %v1939 = vld [vmem:[#allocation5 + $0xb8] sm:$0xff]
    %v1940 = vld [vmem:[#allocation5 + $0xc0] sm:$0xff]
    %v1941 = vld [vmem:[#allocation5 + $0xc8] sm:$0xff]
    %v1942 = vld [vmem:[#allocation5 + $0xd0] sm:$0xff]
    %v1943 = vld [vmem:[#allocation5 + $0xd8] sm:$0xff]
    %v1944 = vld [vmem:[#allocation5 + $0xe0] sm:$0xff]
    %v1945 = vld [vmem:[#allocation5 + $0xe8] sm:$0xff]
    %v1946 = vld [vmem:[#allocation5 + $0xf0] sm:$0xff]
    %v1947 = vld [vmem:[#allocation5 + $0xf8] sm:$0xff]
    %v1948 = vld [vmem:[#allocation5 + $0x100] sm:$0xff]
    %v1949 = vld [vmem:[#allocation5 + $0x108] sm:$0xff]
    %v1950 = vld [vmem:[#allocation5 + $0x110] sm:$0xff]
    %v1951 = vld [vmem:[#allocation5 + $0x118] sm:$0xff]
    %v1952 = vld [vmem:[#allocation5 + $0x120] sm:$0xff]
    %v1953 = vld [vmem:[#allocation5 + $0x128] sm:$0xff]
    %v1954 = vld [vmem:[#allocation5 + $0x130] sm:$0xff]
    %v1955 = vld [vmem:[#allocation5 + $0x138] sm:$0xff]
    %v1956 = vld [vmem:[#allocation5 + $0x140] sm:$0xff]
    %v1957 = vld [vmem:[#allocation5 + $0x148] sm:$0xff]
    %v1958 = vld [vmem:[#allocation5 + $0x150] sm:$0xff]
    %v1959 = vld [vmem:[#allocation5 + $0x158] sm:$0xff]
    %v1960 = vld [vmem:[#allocation5 + $0x160] sm:$0xff]
    %v1961 = vld [vmem:[#allocation5 + $0x168] sm:$0xff]
    %v1962 = vld [vmem:[#allocation5 + $0x170] sm:$0xff]
    %v1963 = vld [vmem:[#allocation5 + $0x178] sm:$0xff]
    %v1964 = vld [vmem:[#allocation5 + $0x180] sm:$0xff]
    %v1965 = vld [vmem:[#allocation5 + $0x188] sm:$0xff]
    %v1966 = vld [vmem:[#allocation5 + $0x190] sm:$0xff]
    %v1967 = vld [vmem:[#allocation5 + $0x198] sm:$0xff]
    %v1968 = vld [vmem:[#allocation5 + $0x1a0] sm:$0xff]
    %v1969 = vld [vmem:[#allocation5 + $0x1a8] sm:$0xff]
    %v1970 = vld [vmem:[#allocation5 + $0x1b0] sm:$0xff]
    %v1971 = vld [vmem:[#allocation5 + $0x1b8] sm:$0xff]
    %v1972 = vld [vmem:[#allocation5 + $0x1c0] sm:$0xff]
    %v1973 = vld [vmem:[#allocation5 + $0x1c8] sm:$0xff]
    %v1974 = vld [vmem:[#allocation5 + $0x1d0] sm:$0xff]
    %v1975 = vld [vmem:[#allocation5 + $0x1d8] sm:$0xff]
    %v1976 = vld [vmem:[#allocation5 + $0x1e0] sm:$0xff]
    %v1977 = vld [vmem:[#allocation5 + $0x1e8] sm:$0xff]
    %v1978 = vld [vmem:[#allocation5 + $0x1f0] sm:$0xff]
    %v1979 = vld [vmem:[#allocation5 + $0x1f8] sm:$0xff]
    %v1980 = vld [vmem:[#allocation5 + $0x200] sm:$0xff]
    %v1981 = vld [vmem:[#allocation5 + $0x208] sm:$0xff]
    %v1982 = vld [vmem:[#allocation5 + $0x210] sm:$0xff]
    %v1983 = vld [vmem:[#allocation5 + $0x218] sm:$0xff]
    %v1984 = vld [vmem:[#allocation5 + $0x220] sm:$0xff]
    %v1985 = vld [vmem:[#allocation5 + $0x228] sm:$0xff]
    %v1986 = vld [vmem:[#allocation5 + $0x230] sm:$0xff]
    %v1987 = vld [vmem:[#allocation5 + $0x238] sm:$0xff]
    %v1988 = vld [vmem:[#allocation5 + $0x240] sm:$0xff]
    %v1989 = vld [vmem:[#allocation5 + $0x248] sm:$0xff]
    %v1990 = vld [vmem:[#allocation5 + $0x250] sm:$0xff]
    %v1991 = vld [vmem:[#allocation5 + $0x258] sm:$0xff]
    %v1992 = vld [vmem:[#allocation5 + $0x260] sm:$0xff]
    %v1993 = vld [vmem:[#allocation5 + $0x268] sm:$0xff]
    %v1994 = vld [vmem:[#allocation5 + $0x270] sm:$0xff]
    %v1995 = vld [vmem:[#allocation5 + $0x278] sm:$0xff]
    %v1996 = vld [vmem:[#allocation5 + $0x280] sm:$0xff]
    %v1997 = vld [vmem:[#allocation5 + $0x288] sm:$0xff]
    %v1998 = vld [vmem:[#allocation5 + $0x290] sm:$0xff]
    %v1999 = vld [vmem:[#allocation5 + $0x298] sm:$0xff]
    %v2000 = vld [vmem:[#allocation5 + $0x2a0] sm:$0xff]
    %v2001 = vld [vmem:[#allocation5 + $0x2a8] sm:$0xff]
    %v2002 = vld [vmem:[#allocation5 + $0x2b0] sm:$0xff]
    %v2003 = vld [vmem:[#allocation5 + $0x2b8] sm:$0xff]
    %v2004 = vld [vmem:[#allocation5 + $0x2c0] sm:$0xff]
    %v2005 = vld [vmem:[#allocation5 + $0x2c8] sm:$0xff]
    %v2006 = vld [vmem:[#allocation5 + $0x2d0] sm:$0xff]
    %v2007 = vld [vmem:[#allocation5 + $0x2d8] sm:$0xff]
    %v2008 = vld [vmem:[#allocation5 + $0x2e0] sm:$0xff]
    %v2009 = vld [vmem:[#allocation5 + $0x2e8] sm:$0xff]
    %v2010 = vld [vmem:[#allocation5 + $0x2f0] sm:$0xff]
    %v2011 = vld [vmem:[#allocation5 + $0x2f8] sm:$0xff]
    %v2012 = vld [vmem:[#allocation5 + $0x300] sm:$0xff]
    %v2013 = vld [vmem:[#allocation5 + $0x308] sm:$0xff]
    %v2014 = vld [vmem:[#allocation5 + $0x310] sm:$0xff]
    %v2015 = vld [vmem:[#allocation5 + $0x318] sm:$0xff]
    %v2016 = vld [vmem:[#allocation5 + $0x320] sm:$0xff]
    %v2017 = vld [vmem:[#allocation5 + $0x328] sm:$0xff]
    %v2018 = vld [vmem:[#allocation5 + $0x330] sm:$0xff]
    %v2019 = vld [vmem:[#allocation5 + $0x338] sm:$0xff]
    %v2020 = vld [vmem:[#allocation5 + $0x340] sm:$0xff]
    %v2021 = vld [vmem:[#allocation5 + $0x348] sm:$0xff]
    %v2022 = vld [vmem:[#allocation5 + $0x350] sm:$0xff]
    %v2023 = vld [vmem:[#allocation5 + $0x358] sm:$0xff]
    %v2024 = vld [vmem:[#allocation5 + $0x360] sm:$0xff]
    %v2025 = vld [vmem:[#allocation5 + $0x368] sm:$0xff]
    %v2026 = vld [vmem:[#allocation5 + $0x370] sm:$0xff]
    %v2027 = vld [vmem:[#allocation5 + $0x378] sm:$0xff]
    %v2028 = vld [vmem:[#allocation5 + $0x380] sm:$0xff]
    %v2029 = vld [vmem:[#allocation5 + $0x388] sm:$0xff]
    %v2030 = vld [vmem:[#allocation5 + $0x390] sm:$0xff]
    %v2031 = vld [vmem:[#allocation5 + $0x398] sm:$0xff]
    %v2032 = vld [vmem:[#allocation5 + $0x3a0] sm:$0xff]
    %v2033 = vld [vmem:[#allocation5 + $0x3a8] sm:$0xff]
    %v2034 = vld [vmem:[#allocation5 + $0x3b0] sm:$0xff]
    %v2035 = vld [vmem:[#allocation5 + $0x3b8] sm:$0xff]
    %v2036 = vld [vmem:[#allocation5 + $0x3c0] sm:$0xff]
    %v2037 = vld [vmem:[#allocation5 + $0x3c8] sm:$0xff]
    %v2038 = vld [vmem:[#allocation5 + $0x3d0] sm:$0xff]
    %v2039 = vld [vmem:[#allocation5 + $0x3d8] sm:$0xff]
    %v2040 = vld [vmem:[#allocation5 + $0x3e0] sm:$0xff]
    %v2041 = vld [vmem:[#allocation5 + $0x3e8] sm:$0xff]
    %v2042 = vld [vmem:[#allocation5 + $0x3f0] sm:$0xff]
    %v2043 = vld [vmem:[#allocation5 + $0x3f8] sm:$0xff]
    %v2044 = vld [vmem:[%s4] sm:$0xf]
    %v2046 = vperm.slane %v2044, 0
    %v2047 = vperm.slane %v2044, 1
    %v2048 = vperm.slane %v2044, 2
    %v2049 = vperm.slane %v2044, 3
    %v2182 = vunpack.c.l.b16 %v1916
    %v2183 = vunpack.c.h.b16 %v1916
    %v2184 = vunpack.c.l.b16 %v1917
    %v2185 = vunpack.c.h.b16 %v1917
    %v2186 = vunpack.c.l.b16 %v1918
    %v2187 = vunpack.c.h.b16 %v1918
    %v2188 = vunpack.c.l.b16 %v1919
    %v2189 = vunpack.c.h.b16 %v1919
    %v2190 = vunpack.c.l.b16 %v1920
    %v2191 = vunpack.c.h.b16 %v1920
    %v2192 = vunpack.c.l.b16 %v1921
    %v2193 = vunpack.c.h.b16 %v1921
    %v2194 = vunpack.c.l.b16 %v1922
    %v2195 = vunpack.c.h.b16 %v1922
    %v2196 = vunpack.c.l.b16 %v1923
    %v2197 = vunpack.c.h.b16 %v1923
    %v2198 = vunpack.c.l.b16 %v1924
    %v2199 = vunpack.c.h.b16 %v1924
    %v2200 = vunpack.c.l.b16 %v1925
    %v2201 = vunpack.c.h.b16 %v1925
    %v2202 = vunpack.c.l.b16 %v1926
    %v2203 = vunpack.c.h.b16 %v1926
    %v2204 = vunpack.c.l.b16 %v1927
    %v2205 = vunpack.c.h.b16 %v1927
    %v2206 = vunpack.c.l.b16 %v1928
    %v2207 = vunpack.c.h.b16 %v1928
    %v2208 = vunpack.c.l.b16 %v1929
    %v2209 = vunpack.c.h.b16 %v1929
    %v2210 = vunpack.c.l.b16 %v1930
    %v2211 = vunpack.c.h.b16 %v1930
    %v2212 = vunpack.c.l.b16 %v1931
    %v2213 = vunpack.c.h.b16 %v1931
    %v2214 = vunpack.c.l.b16 %v1932
    %v2215 = vunpack.c.h.b16 %v1932
    %v2216 = vunpack.c.l.b16 %v1933
    %v2217 = vunpack.c.h.b16 %v1933
    %v2218 = vunpack.c.l.b16 %v1934
    %v2219 = vunpack.c.h.b16 %v1934
    %v2220 = vunpack.c.l.b16 %v1935
    %v2221 = vunpack.c.h.b16 %v1935
    %v2222 = vunpack.c.l.b16 %v1936
    %v2223 = vunpack.c.h.b16 %v1936
    %v2224 = vunpack.c.l.b16 %v1937
    %v2225 = vunpack.c.h.b16 %v1937
    %v2226 = vunpack.c.l.b16 %v1938
    %v2227 = vunpack.c.h.b16 %v1938
    %v2228 = vunpack.c.l.b16 %v1939
    %v2229 = vunpack.c.h.b16 %v1939
    %v2230 = vunpack.c.l.b16 %v1940
    %v2231 = vunpack.c.h.b16 %v1940
    %v2232 = vunpack.c.l.b16 %v1941
    %v2233 = vunpack.c.h.b16 %v1941
    %v2234 = vunpack.c.l.b16 %v1942
    %v2235 = vunpack.c.h.b16 %v1942
    %v2236 = vunpack.c.l.b16 %v1943
    %v2237 = vunpack.c.h.b16 %v1943
    %v2238 = vunpack.c.l.b16 %v1944
    %v2239 = vunpack.c.h.b16 %v1944
    %v2240 = vunpack.c.l.b16 %v1945
    %v2241 = vunpack.c.h.b16 %v1945
    %v2242 = vunpack.c.l.b16 %v1946
    %v2243 = vunpack.c.h.b16 %v1946
    %v2244 = vunpack.c.l.b16 %v1947
    %v2245 = vunpack.c.h.b16 %v1947
    %v2246 = vunpack.c.l.b16 %v1948
    %v2247 = vunpack.c.h.b16 %v1948
    %v2248 = vunpack.c.l.b16 %v1949
    %v2249 = vunpack.c.h.b16 %v1949
    %v2250 = vunpack.c.l.b16 %v1950
    %v2251 = vunpack.c.h.b16 %v1950
    %v2252 = vunpack.c.l.b16 %v1951
    %v2253 = vunpack.c.h.b16 %v1951
    %v2254 = vunpack.c.l.b16 %v1952
    %v2255 = vunpack.c.h.b16 %v1952
    %v2256 = vunpack.c.l.b16 %v1953
    %v2257 = vunpack.c.h.b16 %v1953
    %v2258 = vunpack.c.l.b16 %v1954
    %v2259 = vunpack.c.h.b16 %v1954
    %v2260 = vunpack.c.l.b16 %v1955
    %v2261 = vunpack.c.h.b16 %v1955
    %v2262 = vunpack.c.l.b16 %v1956
    %v2263 = vunpack.c.h.b16 %v1956
    %v2264 = vunpack.c.l.b16 %v1957
    %v2265 = vunpack.c.h.b16 %v1957
    %v2266 = vunpack.c.l.b16 %v1958
    %v2267 = vunpack.c.h.b16 %v1958
    %v2268 = vunpack.c.l.b16 %v1959
    %v2269 = vunpack.c.h.b16 %v1959
    %v2270 = vunpack.c.l.b16 %v1960
    %v2271 = vunpack.c.h.b16 %v1960
    %v2272 = vunpack.c.l.b16 %v1961
    %v2273 = vunpack.c.h.b16 %v1961
    %v2274 = vunpack.c.l.b16 %v1962
    %v2275 = vunpack.c.h.b16 %v1962
    %v2276 = vunpack.c.l.b16 %v1963
    %v2277 = vunpack.c.h.b16 %v1963
    %v2278 = vunpack.c.l.b16 %v1964
    %v2279 = vunpack.c.h.b16 %v1964
    %v2280 = vunpack.c.l.b16 %v1965
    %v2281 = vunpack.c.h.b16 %v1965
    %v2282 = vunpack.c.l.b16 %v1966
    %v2283 = vunpack.c.h.b16 %v1966
    %v2284 = vunpack.c.l.b16 %v1967
    %v2285 = vunpack.c.h.b16 %v1967
    %v2286 = vunpack.c.l.b16 %v1968
    %v2287 = vunpack.c.h.b16 %v1968
    %v2288 = vunpack.c.l.b16 %v1969
    %v2289 = vunpack.c.h.b16 %v1969
    %v2290 = vunpack.c.l.b16 %v1970
    %v2291 = vunpack.c.h.b16 %v1970
    %v2292 = vunpack.c.l.b16 %v1971
    %v2293 = vunpack.c.h.b16 %v1971
    %v2294 = vunpack.c.l.b16 %v1972
    %v2295 = vunpack.c.h.b16 %v1972
    %v2296 = vunpack.c.l.b16 %v1973
    %v2297 = vunpack.c.h.b16 %v1973
    %v2298 = vunpack.c.l.b16 %v1974
    %v2299 = vunpack.c.h.b16 %v1974
    %v2300 = vunpack.c.l.b16 %v1975
    %v2301 = vunpack.c.h.b16 %v1975
    %v2302 = vunpack.c.l.b16 %v1976
    %v2303 = vunpack.c.h.b16 %v1976
    %v2304 = vunpack.c.l.b16 %v1977
    %v2305 = vunpack.c.h.b16 %v1977
    %v2306 = vunpack.c.l.b16 %v1978
    %v2307 = vunpack.c.h.b16 %v1978
    %v2308 = vunpack.c.l.b16 %v1979
    %v2309 = vunpack.c.h.b16 %v1979
    %v2310 = vunpack.c.l.b16 %v1980
    %v2311 = vunpack.c.h.b16 %v1980
    %v2312 = vunpack.c.l.b16 %v1981
    %v2313 = vunpack.c.h.b16 %v1981
    %v2314 = vunpack.c.l.b16 %v1982
    %v2315 = vunpack.c.h.b16 %v1982
    %v2316 = vunpack.c.l.b16 %v1983
    %v2317 = vunpack.c.h.b16 %v1983
    %v2318 = vunpack.c.l.b16 %v1984
    %v2319 = vunpack.c.h.b16 %v1984
    %v2320 = vunpack.c.l.b16 %v1985
    %v2321 = vunpack.c.h.b16 %v1985
    %v2322 = vunpack.c.l.b16 %v1986
    %v2323 = vunpack.c.h.b16 %v1986
    %v2324 = vunpack.c.l.b16 %v1987
    %v2325 = vunpack.c.h.b16 %v1987
    %v2326 = vunpack.c.l.b16 %v1988
    %v2327 = vunpack.c.h.b16 %v1988
    %v2328 = vunpack.c.l.b16 %v1989
    %v2329 = vunpack.c.h.b16 %v1989
    %v2330 = vunpack.c.l.b16 %v1990
    %v2331 = vunpack.c.h.b16 %v1990
    %v2332 = vunpack.c.l.b16 %v1991
    %v2333 = vunpack.c.h.b16 %v1991
    %v2334 = vunpack.c.l.b16 %v1992
    %v2335 = vunpack.c.h.b16 %v1992
    %v2336 = vunpack.c.l.b16 %v1993
    %v2337 = vunpack.c.h.b16 %v1993
    %v2338 = vunpack.c.l.b16 %v1994
    %v2339 = vunpack.c.h.b16 %v1994
    %v2340 = vunpack.c.l.b16 %v1995
    %v2341 = vunpack.c.h.b16 %v1995
    %v2342 = vunpack.c.l.b16 %v1996
    %v2343 = vunpack.c.h.b16 %v1996
    %v2344 = vunpack.c.l.b16 %v1997
    %v2345 = vunpack.c.h.b16 %v1997
    %v2346 = vunpack.c.l.b16 %v1998
    %v2347 = vunpack.c.h.b16 %v1998
    %v2348 = vunpack.c.l.b16 %v1999
    %v2349 = vunpack.c.h.b16 %v1999
    %v2350 = vunpack.c.l.b16 %v2000
    %v2351 = vunpack.c.h.b16 %v2000
    %v2352 = vunpack.c.l.b16 %v2001
    %v2353 = vunpack.c.h.b16 %v2001
    %v2354 = vunpack.c.l.b16 %v2002
    %v2355 = vunpack.c.h.b16 %v2002
    %v2356 = vunpack.c.l.b16 %v2003
    %v2357 = vunpack.c.h.b16 %v2003
    %v2358 = vunpack.c.l.b16 %v2004
    %v2359 = vunpack.c.h.b16 %v2004
    %v2360 = vunpack.c.l.b16 %v2005
    %v2361 = vunpack.c.h.b16 %v2005
    %v2362 = vunpack.c.l.b16 %v2006
    %v2363 = vunpack.c.h.b16 %v2006
    %v2364 = vunpack.c.l.b16 %v2007
    %v2365 = vunpack.c.h.b16 %v2007
    %v2366 = vunpack.c.l.b16 %v2008
    %v2367 = vunpack.c.h.b16 %v2008
    %v2368 = vunpack.c.l.b16 %v2009
    %v2369 = vunpack.c.h.b16 %v2009
    %v2370 = vunpack.c.l.b16 %v2010
    %v2371 = vunpack.c.h.b16 %v2010
    %v2372 = vunpack.c.l.b16 %v2011
    %v2373 = vunpack.c.h.b16 %v2011
    %v2374 = vunpack.c.l.b16 %v2012
    %v2375 = vunpack.c.h.b16 %v2012
    %v2376 = vunpack.c.l.b16 %v2013
    %v2377 = vunpack.c.h.b16 %v2013
    %v2378 = vunpack.c.l.b16 %v2014
    %v2379 = vunpack.c.h.b16 %v2014
    %v2380 = vunpack.c.l.b16 %v2015
    %v2381 = vunpack.c.h.b16 %v2015
    %v2382 = vunpack.c.l.b16 %v2016
    %v2383 = vunpack.c.h.b16 %v2016
    %v2384 = vunpack.c.l.b16 %v2017
    %v2385 = vunpack.c.h.b16 %v2017
    %v2386 = vunpack.c.l.b16 %v2018
    %v2387 = vunpack.c.h.b16 %v2018
    %v2388 = vunpack.c.l.b16 %v2019
    %v2389 = vunpack.c.h.b16 %v2019
    %v2390 = vunpack.c.l.b16 %v2020
    %v2391 = vunpack.c.h.b16 %v2020
    %v2392 = vunpack.c.l.b16 %v2021
    %v2393 = vunpack.c.h.b16 %v2021
    %v2394 = vunpack.c.l.b16 %v2022
    %v2395 = vunpack.c.h.b16 %v2022
    %v2396 = vunpack.c.l.b16 %v2023
    %v2397 = vunpack.c.h.b16 %v2023
    %v2398 = vunpack.c.l.b16 %v2024
    %v2399 = vunpack.c.h.b16 %v2024
    %v2400 = vunpack.c.l.b16 %v2025
    %v2401 = vunpack.c.h.b16 %v2025
    %v2402 = vunpack.c.l.b16 %v2026
    %v2403 = vunpack.c.h.b16 %v2026
    %v2404 = vunpack.c.l.b16 %v2027
    %v2405 = vunpack.c.h.b16 %v2027
    %v2406 = vunpack.c.l.b16 %v2028
    %v2407 = vunpack.c.h.b16 %v2028
    %v2408 = vunpack.c.l.b16 %v2029
    %v2409 = vunpack.c.h.b16 %v2029
    %v2410 = vunpack.c.l.b16 %v2030
    %v2411 = vunpack.c.h.b16 %v2030
    %v2412 = vunpack.c.l.b16 %v2031
    %v2413 = vunpack.c.h.b16 %v2031
    %v2414 = vunpack.c.l.b16 %v2032
    %v2415 = vunpack.c.h.b16 %v2032
    %v2416 = vunpack.c.l.b16 %v2033
    %v2417 = vunpack.c.h.b16 %v2033
    %v2418 = vunpack.c.l.b16 %v2034
    %v2419 = vunpack.c.h.b16 %v2034
    %v2420 = vunpack.c.l.b16 %v2035
    %v2421 = vunpack.c.h.b16 %v2035
    %v2422 = vunpack.c.l.b16 %v2036
    %v2423 = vunpack.c.h.b16 %v2036
    %v2424 = vunpack.c.l.b16 %v2037
    %v2425 = vunpack.c.h.b16 %v2037
    %v2426 = vunpack.c.l.b16 %v2038
    %v2427 = vunpack.c.h.b16 %v2038
    %v2428 = vunpack.c.l.b16 %v2039
    %v2429 = vunpack.c.h.b16 %v2039
    %v2430 = vunpack.c.l.b16 %v2040
    %v2431 = vunpack.c.h.b16 %v2040
    %v2432 = vunpack.c.l.b16 %v2041
    %v2433 = vunpack.c.h.b16 %v2041
    %v2434 = vunpack.c.l.b16 %v2042
    %v2435 = vunpack.c.h.b16 %v2042
    %v2436 = vunpack.c.l.b16 %v2043
    %v2437 = vunpack.c.h.b16 %v2043
    %v2438 = vpack.c.b16 %v2186, %v2182
    %v2439 = vpack.c.b16 %v2187, %v2183
    %v2440 = vpack.c.b16 %v2188, %v2184
    %v2441 = vpack.c.b16 %v2189, %v2185
    %v2442 = vpack.c.b16 %v2194, %v2190
    %v2443 = vpack.c.b16 %v2195, %v2191
    %v2444 = vpack.c.b16 %v2196, %v2192
    %v2445 = vpack.c.b16 %v2197, %v2193
    %v2446 = vpack.c.b16 %v2202, %v2198
    %v2447 = vpack.c.b16 %v2203, %v2199
    %v2448 = vpack.c.b16 %v2204, %v2200
    %v2449 = vpack.c.b16 %v2205, %v2201
    %v2450 = vpack.c.b16 %v2210, %v2206
    %v2451 = vpack.c.b16 %v2211, %v2207
    %v2452 = vpack.c.b16 %v2212, %v2208
    %v2453 = vpack.c.b16 %v2213, %v2209
    %v2454 = vpack.c.b16 %v2218, %v2214
    %v2455 = vpack.c.b16 %v2219, %v2215
    %v2456 = vpack.c.b16 %v2220, %v2216
    %v2457 = vpack.c.b16 %v2221, %v2217
    %v2458 = vpack.c.b16 %v2226, %v2222
    %v2459 = vpack.c.b16 %v2227, %v2223
    %v2460 = vpack.c.b16 %v2228, %v2224
    %v2461 = vpack.c.b16 %v2229, %v2225
    %v2462 = vpack.c.b16 %v2234, %v2230
    %v2463 = vpack.c.b16 %v2235, %v2231
    %v2464 = vpack.c.b16 %v2236, %v2232
    %v2465 = vpack.c.b16 %v2237, %v2233
    %v2466 = vpack.c.b16 %v2242, %v2238
    %v2467 = vpack.c.b16 %v2243, %v2239
    %v2468 = vpack.c.b16 %v2244, %v2240
    %v2469 = vpack.c.b16 %v2245, %v2241
    %v2470 = vpack.c.b16 %v2250, %v2246
    %v2471 = vpack.c.b16 %v2251, %v2247
    %v2472 = vpack.c.b16 %v2252, %v2248
    %v2473 = vpack.c.b16 %v2253, %v2249
    %v2474 = vpack.c.b16 %v2258, %v2254
    %v2475 = vpack.c.b16 %v2259, %v2255
    %v2476 = vpack.c.b16 %v2260, %v2256
    %v2477 = vpack.c.b16 %v2261, %v2257
    %v2478 = vpack.c.b16 %v2266, %v2262
    %v2479 = vpack.c.b16 %v2267, %v2263
    %v2480 = vpack.c.b16 %v2268, %v2264
    %v2481 = vpack.c.b16 %v2269, %v2265
    %v2482 = vpack.c.b16 %v2274, %v2270
    %v2483 = vpack.c.b16 %v2275, %v2271
    %v2484 = vpack.c.b16 %v2276, %v2272
    %v2485 = vpack.c.b16 %v2277, %v2273
    %v2486 = vpack.c.b16 %v2282, %v2278
    %v2487 = vpack.c.b16 %v2283, %v2279
    %v2488 = vpack.c.b16 %v2284, %v2280
    %v2489 = vpack.c.b16 %v2285, %v2281
    %v2490 = vpack.c.b16 %v2290, %v2286
    %v2491 = vpack.c.b16 %v2291, %v2287
    %v2492 = vpack.c.b16 %v2292, %v2288
    %v2493 = vpack.c.b16 %v2293, %v2289
    %v2494 = vpack.c.b16 %v2298, %v2294
    %v2495 = vpack.c.b16 %v2299, %v2295
    %v2496 = vpack.c.b16 %v2300, %v2296
    %v2497 = vpack.c.b16 %v2301, %v2297
    %v2498 = vpack.c.b16 %v2306, %v2302
    %v2499 = vpack.c.b16 %v2307, %v2303
    %v2500 = vpack.c.b16 %v2308, %v2304
    %v2501 = vpack.c.b16 %v2309, %v2305
    %v2502 = vpack.c.b16 %v2314, %v2310
    %v2503 = vpack.c.b16 %v2315, %v2311
    %v2504 = vpack.c.b16 %v2316, %v2312
    %v2505 = vpack.c.b16 %v2317, %v2313
    %v2506 = vpack.c.b16 %v2322, %v2318
    %v2507 = vpack.c.b16 %v2323, %v2319
    %v2508 = vpack.c.b16 %v2324, %v2320
    %v2509 = vpack.c.b16 %v2325, %v2321
    %v2510 = vpack.c.b16 %v2330, %v2326
    %v2511 = vpack.c.b16 %v2331, %v2327
    %v2512 = vpack.c.b16 %v2332, %v2328
    %v2513 = vpack.c.b16 %v2333, %v2329
    %v2514 = vpack.c.b16 %v2338, %v2334
    %v2515 = vpack.c.b16 %v2339, %v2335
    %v2516 = vpack.c.b16 %v2340, %v2336
    %v2517 = vpack.c.b16 %v2341, %v2337
    %v2518 = vpack.c.b16 %v2346, %v2342
    %v2519 = vpack.c.b16 %v2347, %v2343
    %v2520 = vpack.c.b16 %v2348, %v2344
    %v2521 = vpack.c.b16 %v2349, %v2345
    %v2522 = vpack.c.b16 %v2354, %v2350
    %v2523 = vpack.c.b16 %v2355, %v2351
    %v2524 = vpack.c.b16 %v2356, %v2352
    %v2525 = vpack.c.b16 %v2357, %v2353
    %v2526 = vpack.c.b16 %v2362, %v2358
    %v2527 = vpack.c.b16 %v2363, %v2359
    %v2528 = vpack.c.b16 %v2364, %v2360
    %v2529 = vpack.c.b16 %v2365, %v2361
    %v2530 = vpack.c.b16 %v2370, %v2366
    %v2531 = vpack.c.b16 %v2371, %v2367
    %v2532 = vpack.c.b16 %v2372, %v2368
    %v2533 = vpack.c.b16 %v2373, %v2369
    %v2534 = vpack.c.b16 %v2378, %v2374
    %v2535 = vpack.c.b16 %v2379, %v2375
    %v2536 = vpack.c.b16 %v2380, %v2376
    %v2537 = vpack.c.b16 %v2381, %v2377
    %v2538 = vpack.c.b16 %v2386, %v2382
    %v2539 = vpack.c.b16 %v2387, %v2383
    %v2540 = vpack.c.b16 %v2388, %v2384
    %v2541 = vpack.c.b16 %v2389, %v2385
    %v2542 = vpack.c.b16 %v2394, %v2390
    %v2543 = vpack.c.b16 %v2395, %v2391
    %v2544 = vpack.c.b16 %v2396, %v2392
    %v2545 = vpack.c.b16 %v2397, %v2393
    %v2546 = vpack.c.b16 %v2402, %v2398
    %v2547 = vpack.c.b16 %v2403, %v2399
    %v2548 = vpack.c.b16 %v2404, %v2400
    %v2549 = vpack.c.b16 %v2405, %v2401
    %v2550 = vpack.c.b16 %v2410, %v2406
    %v2551 = vpack.c.b16 %v2411, %v2407
    %v2552 = vpack.c.b16 %v2412, %v2408
    %v2553 = vpack.c.b16 %v2413, %v2409
    %v2554 = vpack.c.b16 %v2418, %v2414
    %v2555 = vpack.c.b16 %v2419, %v2415
    %v2556 = vpack.c.b16 %v2420, %v2416
    %v2557 = vpack.c.b16 %v2421, %v2417
    %v2558 = vpack.c.b16 %v2426, %v2422
    %v2559 = vpack.c.b16 %v2427, %v2423
    %v2560 = vpack.c.b16 %v2428, %v2424
    %v2561 = vpack.c.b16 %v2429, %v2425
    %v2562 = vpack.c.b16 %v2434, %v2430
    %v2563 = vpack.c.b16 %v2435, %v2431
    %v2564 = vpack.c.b16 %v2436, %v2432
    %v2565 = vpack.c.b16 %v2437, %v2433
    %2694 = vmatpush.bf16.msra.mxu0 %v2466
    %2695 = vmatpush.bf16.msra.mxu0 %v2462
    %2696 = vmatpush.bf16.msra.mxu0 %v2458
    %2697 = vmatpush.bf16.msra.mxu0 %v2454
    %2698 = vmatpush.bf16.msra.mxu0 %v2450
    %2699 = vmatpush.bf16.msra.mxu0 %v2446
    %2700 = vmatpush.bf16.msra.mxu0 %v2442
    %2701 = vmatpush.bf16.msra.mxu0 %v2438
    %2702 = vmatmul.bf16.gmra.mxu0 %v1912
    %v2703 = vpop.f32.mrf.mxu0
    %v2704 = vadd.f32 %v2046, %v2703
    %v2705 = vpop.f32.mrf.mxu0
    %v2706 = vadd.f32 %v2046, %v2705
    %2707 = vdwg.mxu0
    %2708 = vmatpush.bf16.msra.mxu0 %v2498
    %2709 = vmatpush.bf16.msra.mxu0 %v2494
    %2710 = vmatpush.bf16.msra.mxu0 %v2490
    %2711 = vmatpush.bf16.msra.mxu0 %v2486
    %2712 = vmatpush.bf16.msra.mxu0 %v2482
    %2713 = vmatpush.bf16.msra.mxu0 %v2478
    %2714 = vmatpush.bf16.msra.mxu0 %v2474
    %2715 = vmatpush.bf16.msra.mxu0 %v2470
    %2716 = vmatmul.bf16.gmra.mxu0 %v1913
    %v2717 = vpop.f32.mrf.mxu0
    %v2718 = vadd.f32 %v2704, %v2717
    %v2719 = vpop.f32.mrf.mxu0
    %v2720 = vadd.f32 %v2706, %v2719
    %2721 = vdwg.mxu0
    %2722 = vmatpush.bf16.msra.mxu0 %v2530
    %2723 = vmatpush.bf16.msra.mxu0 %v2526
    %2724 = vmatpush.bf16.msra.mxu0 %v2522
    %2725 = vmatpush.bf16.msra.mxu0 %v2518
    %2726 = vmatpush.bf16.msra.mxu0 %v2514
    %2727 = vmatpush.bf16.msra.mxu0 %v2510
    %2728 = vmatpush.bf16.msra.mxu0 %v2506
    %2729 = vmatpush.bf16.msra.mxu0 %v2502
    %2730 = vmatmul.bf16.gmra.mxu0 %v1914
    %v2731 = vpop.f32.mrf.mxu0
    %v2732 = vadd.f32 %v2718, %v2731
    %v2733 = vpop.f32.mrf.mxu0
    %v2734 = vadd.f32 %v2720, %v2733
    %2735 = vdwg.mxu0
    %2736 = vmatpush.bf16.msra.mxu0 %v2562
    %2737 = vmatpush.bf16.msra.mxu0 %v2558
    %2738 = vmatpush.bf16.msra.mxu0 %v2554
    %2739 = vmatpush.bf16.msra.mxu0 %v2550
    %2740 = vmatpush.bf16.msra.mxu0 %v2546
    %2741 = vmatpush.bf16.msra.mxu0 %v2542
    %2742 = vmatpush.bf16.msra.mxu0 %v2538
    %2743 = vmatpush.bf16.msra.mxu0 %v2534
    %2744 = vmatmul.bf16.gmra.mxu0 %v1915
    %v2745 = vpop.f32.mrf.mxu0
    %v2746 = vadd.f32 %v2732, %v2745
    %v2747 = vpop.f32.mrf.mxu0
    %v2748 = vadd.f32 %v2734, %v2747
    %2749 = vdwg.mxu0
    %2750 = vmatpush.bf16.msra.mxu0 %v2467
    %2751 = vmatpush.bf16.msra.mxu0 %v2463
    %2752 = vmatpush.bf16.msra.mxu0 %v2459
    %2753 = vmatpush.bf16.msra.mxu0 %v2455
    %2754 = vmatpush.bf16.msra.mxu0 %v2451
    %2755 = vmatpush.bf16.msra.mxu0 %v2447
    %2756 = vmatpush.bf16.msra.mxu0 %v2443
    %2757 = vmatpush.bf16.msra.mxu0 %v2439
    %2758 = vmatmul.bf16.gmra.mxu0 %v1912
    %v2759 = vpop.f32.mrf.mxu0
    %v2760 = vadd.f32 %v2047, %v2759
    %v2761 = vpop.f32.mrf.mxu0
    %v2762 = vadd.f32 %v2047, %v2761
    %2763 = vdwg.mxu0
    %2764 = vmatpush.bf16.msra.mxu0 %v2499
    %2765 = vmatpush.bf16.msra.mxu0 %v2495
    %2766 = vmatpush.bf16.msra.mxu0 %v2491
    %2767 = vmatpush.bf16.msra.mxu0 %v2487
    %2768 = vmatpush.bf16.msra.mxu0 %v2483
    %2769 = vmatpush.bf16.msra.mxu0 %v2479
    %2770 = vmatpush.bf16.msra.mxu0 %v2475
    %2771 = vmatpush.bf16.msra.mxu0 %v2471
    %2772 = vmatmul.bf16.gmra.mxu0 %v1913
    %v2773 = vpop.f32.mrf.mxu0
    %v2774 = vadd.f32 %v2760, %v2773
    %v2775 = vpop.f32.mrf.mxu0
    %v2776 = vadd.f32 %v2762, %v2775
    %2777 = vdwg.mxu0
    %2778 = vmatpush.bf16.msra.mxu0 %v2531
    %2779 = vmatpush.bf16.msra.mxu0 %v2527
    %2780 = vmatpush.bf16.msra.mxu0 %v2523
    %2781 = vmatpush.bf16.msra.mxu0 %v2519
    %2782 = vmatpush.bf16.msra.mxu0 %v2515
    %2783 = vmatpush.bf16.msra.mxu0 %v2511
    %2784 = vmatpush.bf16.msra.mxu0 %v2507
    %2785 = vmatpush.bf16.msra.mxu0 %v2503
    %2786 = vmatmul.bf16.gmra.mxu0 %v1914
    %v2787 = vpop.f32.mrf.mxu0
    %v2788 = vadd.f32 %v2774, %v2787
    %v2789 = vpop.f32.mrf.mxu0
    %v2790 = vadd.f32 %v2776, %v2789
    %2791 = vdwg.mxu0
    %2792 = vmatpush.bf16.msra.mxu0 %v2563
    %2793 = vmatpush.bf16.msra.mxu0 %v2559
    %2794 = vmatpush.bf16.msra.mxu0 %v2555
    %2795 = vmatpush.bf16.msra.mxu0 %v2551
    %2796 = vmatpush.bf16.msra.mxu0 %v2547
    %2797 = vmatpush.bf16.msra.mxu0 %v2543
    %2798 = vmatpush.bf16.msra.mxu0 %v2539
    %2799 = vmatpush.bf16.msra.mxu0 %v2535
    %2800 = vmatmul.bf16.gmra.mxu0 %v1915
    %v2801 = vpop.f32.mrf.mxu0
    %v2802 = vadd.f32 %v2788, %v2801
    %v2803 = vpop.f32.mrf.mxu0
    %v2804 = vadd.f32 %v2790, %v2803
    %2805 = vdwg.mxu0
    %2806 = vmatpush.bf16.msra.mxu0 %v2468
    %2807 = vmatpush.bf16.msra.mxu0 %v2464
    %2808 = vmatpush.bf16.msra.mxu0 %v2460
    %2809 = vmatpush.bf16.msra.mxu0 %v2456
    %2810 = vmatpush.bf16.msra.mxu0 %v2452
    %2811 = vmatpush.bf16.msra.mxu0 %v2448
    %2812 = vmatpush.bf16.msra.mxu0 %v2444
    %2813 = vmatpush.bf16.msra.mxu0 %v2440
    %2814 = vmatmul.bf16.gmra.mxu0 %v1912
    %v2815 = vpop.f32.mrf.mxu0
    %v2816 = vadd.f32 %v2048, %v2815
    %v2817 = vpop.f32.mrf.mxu0
    %v2818 = vadd.f32 %v2048, %v2817
    %2819 = vdwg.mxu0
    %2820 = vmatpush.bf16.msra.mxu0 %v2500
    %2821 = vmatpush.bf16.msra.mxu0 %v2496
    %2822 = vmatpush.bf16.msra.mxu0 %v2492
    %2823 = vmatpush.bf16.msra.mxu0 %v2488
    %2824 = vmatpush.bf16.msra.mxu0 %v2484
    %2825 = vmatpush.bf16.msra.mxu0 %v2480
    %2826 = vmatpush.bf16.msra.mxu0 %v2476
    %2827 = vmatpush.bf16.msra.mxu0 %v2472
    %2828 = vmatmul.bf16.gmra.mxu0 %v1913
    %v2829 = vpop.f32.mrf.mxu0
    %v2830 = vadd.f32 %v2816, %v2829
    %v2831 = vpop.f32.mrf.mxu0
    %v2832 = vadd.f32 %v2818, %v2831
    %2833 = vdwg.mxu0
    %2834 = vmatpush.bf16.msra.mxu0 %v2532
    %2835 = vmatpush.bf16.msra.mxu0 %v2528
    %2836 = vmatpush.bf16.msra.mxu0 %v2524
    %2837 = vmatpush.bf16.msra.mxu0 %v2520
    %2838 = vmatpush.bf16.msra.mxu0 %v2516
    %2839 = vmatpush.bf16.msra.mxu0 %v2512
    %2840 = vmatpush.bf16.msra.mxu0 %v2508
    %2841 = vmatpush.bf16.msra.mxu0 %v2504
    %2842 = vmatmul.bf16.gmra.mxu0 %v1914
    %v2843 = vpop.f32.mrf.mxu0
    %v2844 = vadd.f32 %v2830, %v2843
    %v2845 = vpop.f32.mrf.mxu0
    %v2846 = vadd.f32 %v2832, %v2845
    %2847 = vdwg.mxu0
    %2848 = vmatpush.bf16.msra.mxu0 %v2564
    %2849 = vmatpush.bf16.msra.mxu0 %v2560
    %2850 = vmatpush.bf16.msra.mxu0 %v2556
    %2851 = vmatpush.bf16.msra.mxu0 %v2552
    %2852 = vmatpush.bf16.msra.mxu0 %v2548
    %2853 = vmatpush.bf16.msra.mxu0 %v2544
    %2854 = vmatpush.bf16.msra.mxu0 %v2540
    %2855 = vmatpush.bf16.msra.mxu0 %v2536
    %2856 = vmatmul.bf16.gmra.mxu0 %v1915
    %v2857 = vpop.f32.mrf.mxu0
    %v2858 = vadd.f32 %v2844, %v2857
    %v2859 = vpop.f32.mrf.mxu0
    %v2860 = vadd.f32 %v2846, %v2859
    %2861 = vdwg.mxu0
    %2862 = vmatpush.bf16.msra.mxu0 %v2469
    %2863 = vmatpush.bf16.msra.mxu0 %v2465
    %2864 = vmatpush.bf16.msra.mxu0 %v2461
    %2865 = vmatpush.bf16.msra.mxu0 %v2457
    %2866 = vmatpush.bf16.msra.mxu0 %v2453
    %2867 = vmatpush.bf16.msra.mxu0 %v2449
    %2868 = vmatpush.bf16.msra.mxu0 %v2445
    %2869 = vmatpush.bf16.msra.mxu0 %v2441
    %2870 = vmatmul.bf16.gmra.mxu0 %v1912
    %v2871 = vpop.f32.mrf.mxu0
    %v2872 = vadd.f32 %v2049, %v2871
    %v2873 = vpop.f32.mrf.mxu0
    %v2874 = vadd.f32 %v2049, %v2873
    %2875 = vdwg.mxu0
    %2876 = vmatpush.bf16.msra.mxu0 %v2501
    %2877 = vmatpush.bf16.msra.mxu0 %v2497
    %2878 = vmatpush.bf16.msra.mxu0 %v2493
    %2879 = vmatpush.bf16.msra.mxu0 %v2489
    %2880 = vmatpush.bf16.msra.mxu0 %v2485
    %2881 = vmatpush.bf16.msra.mxu0 %v2481
    %2882 = vmatpush.bf16.msra.mxu0 %v2477
    %2883 = vmatpush.bf16.msra.mxu0 %v2473
    %2884 = vmatmul.bf16.gmra.mxu0 %v1913
    %v2885 = vpop.f32.mrf.mxu0
    %v2886 = vadd.f32 %v2872, %v2885
    %v2887 = vpop.f32.mrf.mxu0
    %v2888 = vadd.f32 %v2874, %v2887
    %2889 = vdwg.mxu0
    %2890 = vmatpush.bf16.msra.mxu0 %v2533
    %2891 = vmatpush.bf16.msra.mxu0 %v2529
    %2892 = vmatpush.bf16.msra.mxu0 %v2525
    %2893 = vmatpush.bf16.msra.mxu0 %v2521
    %2894 = vmatpush.bf16.msra.mxu0 %v2517
    %2895 = vmatpush.bf16.msra.mxu0 %v2513
    %2896 = vmatpush.bf16.msra.mxu0 %v2509
    %2897 = vmatpush.bf16.msra.mxu0 %v2505
    %2898 = vmatmul.bf16.gmra.mxu0 %v1914
    %v2899 = vpop.f32.mrf.mxu0
    %v2900 = vadd.f32 %v2886, %v2899
    %v2901 = vpop.f32.mrf.mxu0
    %v2902 = vadd.f32 %v2888, %v2901
    %2903 = vdwg.mxu0
    %2904 = vmatpush.bf16.msra.mxu0 %v2565
    %2905 = vmatpush.bf16.msra.mxu0 %v2561
    %2906 = vmatpush.bf16.msra.mxu0 %v2557
    %2907 = vmatpush.bf16.msra.mxu0 %v2553
    %2908 = vmatpush.bf16.msra.mxu0 %v2549
    %2909 = vmatpush.bf16.msra.mxu0 %v2545
    %2910 = vmatpush.bf16.msra.mxu0 %v2541
    %2911 = vmatpush.bf16.msra.mxu0 %v2537
    %2912 = vmatmul.bf16.gmra.mxu0 %v1915
    %v2913 = vpop.f32.mrf.mxu0
    %v2914 = vadd.f32 %v2900, %v2913
    %v2915 = vpop.f32.mrf.mxu0
    %v2916 = vadd.f32 %v2902, %v2915
    %2917 = vdwg.mxu0
    %v2918 = vsub.f32 0.0, %v2746
    %v2919 = vsub.f32 0.0, %v2802
    %v2920 = vsub.f32 0.0, %v2858
    %v2921 = vsub.f32 0.0, %v2914
    %v2922 = vsub.f32 0.0, %v2748
    %v2923 = vsub.f32 0.0, %v2804
    %v2924 = vsub.f32 0.0, %v2860
    %v2925 = vsub.f32 0.0, %v2916
    %v2926 = vmul.f32 %v2918, 1.442695
    %v2927 = vpow.pop %v2926
    %v2928 = vmul.f32 %v2919, 1.442695
    %v2929 = vpow.pop %v2928
    %v2930 = vmul.f32 %v2920, 1.442695
    %v2931 = vpow.pop %v2930
    %v2932 = vmul.f32 %v2921, 1.442695
    %v2933 = vpow.pop %v2932
    %v2934 = vmul.f32 %v2922, 1.442695
    %v2935 = vpow.pop %v2934
    %v2936 = vmul.f32 %v2923, 1.442695
    %v2937 = vpow.pop %v2936
    %v2938 = vmul.f32 %v2924, 1.442695
    %v2939 = vpow.pop %v2938
    %v2940 = vmul.f32 %v2925, 1.442695
    %v2941 = vpow.pop %v2940
    %v2942 = vadd.f32 %v2927, 1.0
    %v2943 = vadd.f32 %v2929, 1.0
    %v2944 = vadd.f32 %v2931, 1.0
    %v2945 = vadd.f32 %v2933, 1.0
    %v2946 = vadd.f32 %v2935, 1.0
    %v2947 = vadd.f32 %v2937, 1.0
    %v2948 = vadd.f32 %v2939, 1.0
    %v2949 = vadd.f32 %v2941, 1.0
    %v2950 = vrcp.pop %v2942
    %v2951 = vrcp.pop %v2943
    %v2952 = vrcp.pop %v2944
    %v2953 = vrcp.pop %v2945
    %v2954 = vrcp.pop %v2946
    %v2955 = vrcp.pop %v2947
    %v2956 = vrcp.pop %v2948
    %v2957 = vrcp.pop %v2949
    %v2958 = vmul.f32 %v2746, %v2950
    %v2959 = vmul.f32 %v2802, %v2951
    %v2960 = vmul.f32 %v2858, %v2952
    %v2961 = vmul.f32 %v2914, %v2953
    %v2962 = vmul.f32 %v2748, %v2954
    %v2963 = vmul.f32 %v2804, %v2955
    %v2964 = vmul.f32 %v2860, %v2956
    %v2965 = vmul.f32 %v2916, %v2957
    %v2966 = vpack.c.bf16 %v2962, %v2958
    %v2967 = vpack.c.bf16 %v2963, %v2959
    %v2968 = vpack.c.bf16 %v2964, %v2960
    %v2969 = vpack.c.bf16 %v2965, %v2961
    %v2970 = vld [vmem:[#allocation7] sm:$0xff]
    %v2971 = vld [vmem:[#allocation7 + $0x8] sm:$0xff]
    %v2972 = vld [vmem:[#allocation7 + $0x10] sm:$0xff]
    %v2973 = vld [vmem:[#allocation7 + $0x18] sm:$0xff]
    %v2974 = vld [vmem:[#allocation7 + $0x20] sm:$0xff]
    %v2975 = vld [vmem:[#allocation7 + $0x28] sm:$0xff]
    %v2976 = vld [vmem:[#allocation7 + $0x30] sm:$0xff]
    %v2977 = vld [vmem:[#allocation7 + $0x38] sm:$0xff]
    %v2978 = vld [vmem:[#allocation7 + $0x40] sm:$0xff]
    %v2979 = vld [vmem:[#allocation7 + $0x48] sm:$0xff]
    %v2980 = vld [vmem:[#allocation7 + $0x50] sm:$0xff]
    %v2981 = vld [vmem:[#allocation7 + $0x58] sm:$0xff]
    %v2982 = vld [vmem:[#allocation7 + $0x60] sm:$0xff]
    %v2983 = vld [vmem:[#allocation7 + $0x68] sm:$0xff]
    %v2984 = vld [vmem:[#allocation7 + $0x70] sm:$0xff]
    %v2985 = vld [vmem:[#allocation7 + $0x78] sm:$0xff]
    %v2986 = vld [vmem:[#allocation7 + $0x80] sm:$0xff]
    %v2987 = vld [vmem:[#allocation7 + $0x88] sm:$0xff]
    %v2988 = vld [vmem:[#allocation7 + $0x90] sm:$0xff]
    %v2989 = vld [vmem:[#allocation7 + $0x98] sm:$0xff]
    %v2990 = vld [vmem:[#allocation7 + $0xa0] sm:$0xff]
    %v2991 = vld [vmem:[#allocation7 + $0xa8] sm:$0xff]
    %v2992 = vld [vmem:[#allocation7 + $0xb0] sm:$0xff]
    %v2993 = vld [vmem:[#allocation7 + $0xb8] sm:$0xff]
    %v2994 = vld [vmem:[#allocation7 + $0xc0] sm:$0xff]
    %v2995 = vld [vmem:[#allocation7 + $0xc8] sm:$0xff]
    %v2996 = vld [vmem:[#allocation7 + $0xd0] sm:$0xff]
    %v2997 = vld [vmem:[#allocation7 + $0xd8] sm:$0xff]
    %v2998 = vld [vmem:[#allocation7 + $0xe0] sm:$0xff]
    %v2999 = vld [vmem:[#allocation7 + $0xe8] sm:$0xff]
    %v3000 = vld [vmem:[#allocation7 + $0xf0] sm:$0xff]
    %v3001 = vld [vmem:[#allocation7 + $0xf8] sm:$0xff]
    %v3002 = vld [vmem:[#allocation7 + $0x100] sm:$0xff]
    %v3003 = vld [vmem:[#allocation7 + $0x108] sm:$0xff]
    %v3004 = vld [vmem:[#allocation7 + $0x110] sm:$0xff]
    %v3005 = vld [vmem:[#allocation7 + $0x118] sm:$0xff]
    %v3006 = vld [vmem:[#allocation7 + $0x120] sm:$0xff]
    %v3007 = vld [vmem:[#allocation7 + $0x128] sm:$0xff]
    %v3008 = vld [vmem:[#allocation7 + $0x130] sm:$0xff]
    %v3009 = vld [vmem:[#allocation7 + $0x138] sm:$0xff]
    %v3010 = vld [vmem:[#allocation7 + $0x140] sm:$0xff]
    %v3011 = vld [vmem:[#allocation7 + $0x148] sm:$0xff]
    %v3012 = vld [vmem:[#allocation7 + $0x150] sm:$0xff]
    %v3013 = vld [vmem:[#allocation7 + $0x158] sm:$0xff]
    %v3014 = vld [vmem:[#allocation7 + $0x160] sm:$0xff]
    %v3015 = vld [vmem:[#allocation7 + $0x168] sm:$0xff]
    %v3016 = vld [vmem:[#allocation7 + $0x170] sm:$0xff]
    %v3017 = vld [vmem:[#allocation7 + $0x178] sm:$0xff]
    %v3018 = vld [vmem:[#allocation7 + $0x180] sm:$0xff]
    %v3019 = vld [vmem:[#allocation7 + $0x188] sm:$0xff]
    %v3020 = vld [vmem:[#allocation7 + $0x190] sm:$0xff]
    %v3021 = vld [vmem:[#allocation7 + $0x198] sm:$0xff]
    %v3022 = vld [vmem:[#allocation7 + $0x1a0] sm:$0xff]
    %v3023 = vld [vmem:[#allocation7 + $0x1a8] sm:$0xff]
    %v3024 = vld [vmem:[#allocation7 + $0x1b0] sm:$0xff]
    %v3025 = vld [vmem:[#allocation7 + $0x1b8] sm:$0xff]
    %v3026 = vld [vmem:[#allocation7 + $0x1c0] sm:$0xff]
    %v3027 = vld [vmem:[#allocation7 + $0x1c8] sm:$0xff]
    %v3028 = vld [vmem:[#allocation7 + $0x1d0] sm:$0xff]
    %v3029 = vld [vmem:[#allocation7 + $0x1d8] sm:$0xff]
    %v3030 = vld [vmem:[#allocation7 + $0x1e0] sm:$0xff]
    %v3031 = vld [vmem:[#allocation7 + $0x1e8] sm:$0xff]
    %v3032 = vld [vmem:[#allocation7 + $0x1f0] sm:$0xff]
    %v3033 = vld [vmem:[#allocation7 + $0x1f8] sm:$0xff]
    %v3034 = vld [vmem:[#allocation7 + $0x200] sm:$0xff]
    %v3035 = vld [vmem:[#allocation7 + $0x208] sm:$0xff]
    %v3036 = vld [vmem:[#allocation7 + $0x210] sm:$0xff]
    %v3037 = vld [vmem:[#allocation7 + $0x218] sm:$0xff]
    %v3038 = vld [vmem:[#allocation7 + $0x220] sm:$0xff]
    %v3039 = vld [vmem:[#allocation7 + $0x228] sm:$0xff]
    %v3040 = vld [vmem:[#allocation7 + $0x230] sm:$0xff]
    %v3041 = vld [vmem:[#allocation7 + $0x238] sm:$0xff]
    %v3042 = vld [vmem:[#allocation7 + $0x240] sm:$0xff]
    %v3043 = vld [vmem:[#allocation7 + $0x248] sm:$0xff]
    %v3044 = vld [vmem:[#allocation7 + $0x250] sm:$0xff]
    %v3045 = vld [vmem:[#allocation7 + $0x258] sm:$0xff]
    %v3046 = vld [vmem:[#allocation7 + $0x260] sm:$0xff]
    %v3047 = vld [vmem:[#allocation7 + $0x268] sm:$0xff]
    %v3048 = vld [vmem:[#allocation7 + $0x270] sm:$0xff]
    %v3049 = vld [vmem:[#allocation7 + $0x278] sm:$0xff]
    %v3050 = vld [vmem:[#allocation7 + $0x280] sm:$0xff]
    %v3051 = vld [vmem:[#allocation7 + $0x288] sm:$0xff]
    %v3052 = vld [vmem:[#allocation7 + $0x290] sm:$0xff]
    %v3053 = vld [vmem:[#allocation7 + $0x298] sm:$0xff]
    %v3054 = vld [vmem:[#allocation7 + $0x2a0] sm:$0xff]
    %v3055 = vld [vmem:[#allocation7 + $0x2a8] sm:$0xff]
    %v3056 = vld [vmem:[#allocation7 + $0x2b0] sm:$0xff]
    %v3057 = vld [vmem:[#allocation7 + $0x2b8] sm:$0xff]
    %v3058 = vld [vmem:[#allocation7 + $0x2c0] sm:$0xff]
    %v3059 = vld [vmem:[#allocation7 + $0x2c8] sm:$0xff]
    %v3060 = vld [vmem:[#allocation7 + $0x2d0] sm:$0xff]
    %v3061 = vld [vmem:[#allocation7 + $0x2d8] sm:$0xff]
    %v3062 = vld [vmem:[#allocation7 + $0x2e0] sm:$0xff]
    %v3063 = vld [vmem:[#allocation7 + $0x2e8] sm:$0xff]
    %v3064 = vld [vmem:[#allocation7 + $0x2f0] sm:$0xff]
    %v3065 = vld [vmem:[#allocation7 + $0x2f8] sm:$0xff]
    %v3066 = vld [vmem:[#allocation7 + $0x300] sm:$0xff]
    %v3067 = vld [vmem:[#allocation7 + $0x308] sm:$0xff]
    %v3068 = vld [vmem:[#allocation7 + $0x310] sm:$0xff]
    %v3069 = vld [vmem:[#allocation7 + $0x318] sm:$0xff]
    %v3070 = vld [vmem:[#allocation7 + $0x320] sm:$0xff]
    %v3071 = vld [vmem:[#allocation7 + $0x328] sm:$0xff]
    %v3072 = vld [vmem:[#allocation7 + $0x330] sm:$0xff]
    %v3073 = vld [vmem:[#allocation7 + $0x338] sm:$0xff]
    %v3074 = vld [vmem:[#allocation7 + $0x340] sm:$0xff]
    %v3075 = vld [vmem:[#allocation7 + $0x348] sm:$0xff]
    %v3076 = vld [vmem:[#allocation7 + $0x350] sm:$0xff]
    %v3077 = vld [vmem:[#allocation7 + $0x358] sm:$0xff]
    %v3078 = vld [vmem:[#allocation7 + $0x360] sm:$0xff]
    %v3079 = vld [vmem:[#allocation7 + $0x368] sm:$0xff]
    %v3080 = vld [vmem:[#allocation7 + $0x370] sm:$0xff]
    %v3081 = vld [vmem:[#allocation7 + $0x378] sm:$0xff]
    %v3082 = vld [vmem:[#allocation7 + $0x380] sm:$0xff]
    %v3083 = vld [vmem:[#allocation7 + $0x388] sm:$0xff]
    %v3084 = vld [vmem:[#allocation7 + $0x390] sm:$0xff]
    %v3085 = vld [vmem:[#allocation7 + $0x398] sm:$0xff]
    %v3086 = vld [vmem:[#allocation7 + $0x3a0] sm:$0xff]
    %v3087 = vld [vmem:[#allocation7 + $0x3a8] sm:$0xff]
    %v3088 = vld [vmem:[#allocation7 + $0x3b0] sm:$0xff]
    %v3089 = vld [vmem:[#allocation7 + $0x3b8] sm:$0xff]
    %v3090 = vld [vmem:[#allocation7 + $0x3c0] sm:$0xff]
    %v3091 = vld [vmem:[#allocation7 + $0x3c8] sm:$0xff]
    %v3092 = vld [vmem:[#allocation7 + $0x3d0] sm:$0xff]
    %v3093 = vld [vmem:[#allocation7 + $0x3d8] sm:$0xff]
    %v3094 = vld [vmem:[#allocation7 + $0x3e0] sm:$0xff]
    %v3095 = vld [vmem:[#allocation7 + $0x3e8] sm:$0xff]
    %v3096 = vld [vmem:[#allocation7 + $0x3f0] sm:$0xff]
    %v3097 = vld [vmem:[#allocation7 + $0x3f8] sm:$0xff]
    %v3098 = vld [vmem:[#allocation7 + $0x400] sm:$0xff]
    %v3099 = vld [vmem:[#allocation7 + $0x408] sm:$0xff]
    %v3100 = vld [vmem:[#allocation7 + $0x410] sm:$0xff]
    %v3101 = vld [vmem:[#allocation7 + $0x418] sm:$0xff]
    %v3102 = vld [vmem:[#allocation7 + $0x420] sm:$0xff]
    %v3103 = vld [vmem:[#allocation7 + $0x428] sm:$0xff]
    %v3104 = vld [vmem:[#allocation7 + $0x430] sm:$0xff]
    %v3105 = vld [vmem:[#allocation7 + $0x438] sm:$0xff]
    %v3106 = vld [vmem:[#allocation7 + $0x440] sm:$0xff]
    %v3107 = vld [vmem:[#allocation7 + $0x448] sm:$0xff]
    %v3108 = vld [vmem:[#allocation7 + $0x450] sm:$0xff]
    %v3109 = vld [vmem:[#allocation7 + $0x458] sm:$0xff]
    %v3110 = vld [vmem:[#allocation7 + $0x460] sm:$0xff]
    %v3111 = vld [vmem:[#allocation7 + $0x468] sm:$0xff]
    %v3112 = vld [vmem:[#allocation7 + $0x470] sm:$0xff]
    %v3113 = vld [vmem:[#allocation7 + $0x478] sm:$0xff]
    %v3114 = vld [vmem:[#allocation7 + $0x480] sm:$0xff]
    %v3115 = vld [vmem:[#allocation7 + $0x488] sm:$0xff]
    %v3116 = vld [vmem:[#allocation7 + $0x490] sm:$0xff]
    %v3117 = vld [vmem:[#allocation7 + $0x498] sm:$0xff]
    %v3118 = vld [vmem:[#allocation7 + $0x4a0] sm:$0xff]
    %v3119 = vld [vmem:[#allocation7 + $0x4a8] sm:$0xff]
    %v3120 = vld [vmem:[#allocation7 + $0x4b0] sm:$0xff]
    %v3121 = vld [vmem:[#allocation7 + $0x4b8] sm:$0xff]
    %v3122 = vld [vmem:[#allocation7 + $0x4c0] sm:$0xff]
    %v3123 = vld [vmem:[#allocation7 + $0x4c8] sm:$0xff]
    %v3124 = vld [vmem:[#allocation7 + $0x4d0] sm:$0xff]
    %v3125 = vld [vmem:[#allocation7 + $0x4d8] sm:$0xff]
    %v3126 = vld [vmem:[#allocation7 + $0x4e0] sm:$0xff]
    %v3127 = vld [vmem:[#allocation7 + $0x4e8] sm:$0xff]
    %v3128 = vld [vmem:[#allocation7 + $0x4f0] sm:$0xff]
    %v3129 = vld [vmem:[#allocation7 + $0x4f8] sm:$0xff]
    %v3130 = vld [vmem:[#allocation7 + $0x500] sm:$0xff]
    %v3131 = vld [vmem:[#allocation7 + $0x508] sm:$0xff]
    %v3132 = vld [vmem:[#allocation7 + $0x510] sm:$0xff]
    %v3133 = vld [vmem:[#allocation7 + $0x518] sm:$0xff]
    %v3134 = vld [vmem:[#allocation7 + $0x520] sm:$0xff]
    %v3135 = vld [vmem:[#allocation7 + $0x528] sm:$0xff]
    %v3136 = vld [vmem:[#allocation7 + $0x530] sm:$0xff]
    %v3137 = vld [vmem:[#allocation7 + $0x538] sm:$0xff]
    %v3138 = vld [vmem:[#allocation7 + $0x540] sm:$0xff]
    %v3139 = vld [vmem:[#allocation7 + $0x548] sm:$0xff]
    %v3140 = vld [vmem:[#allocation7 + $0x550] sm:$0xff]
    %v3141 = vld [vmem:[#allocation7 + $0x558] sm:$0xff]
    %v3142 = vld [vmem:[#allocation7 + $0x560] sm:$0xff]
    %v3143 = vld [vmem:[#allocation7 + $0x568] sm:$0xff]
    %v3144 = vld [vmem:[#allocation7 + $0x570] sm:$0xff]
    %v3145 = vld [vmem:[#allocation7 + $0x578] sm:$0xff]
    %v3146 = vld [vmem:[#allocation7 + $0x580] sm:$0xff]
    %v3147 = vld [vmem:[#allocation7 + $0x588] sm:$0xff]
    %v3148 = vld [vmem:[#allocation7 + $0x590] sm:$0xff]
    %v3149 = vld [vmem:[#allocation7 + $0x598] sm:$0xff]
    %v3150 = vld [vmem:[#allocation7 + $0x5a0] sm:$0xff]
    %v3151 = vld [vmem:[#allocation7 + $0x5a8] sm:$0xff]
    %v3152 = vld [vmem:[#allocation7 + $0x5b0] sm:$0xff]
    %v3153 = vld [vmem:[#allocation7 + $0x5b8] sm:$0xff]
    %v3154 = vld [vmem:[#allocation7 + $0x5c0] sm:$0xff]
    %v3155 = vld [vmem:[#allocation7 + $0x5c8] sm:$0xff]
    %v3156 = vld [vmem:[#allocation7 + $0x5d0] sm:$0xff]
    %v3157 = vld [vmem:[#allocation7 + $0x5d8] sm:$0xff]
    %v3158 = vld [vmem:[#allocation7 + $0x5e0] sm:$0xff]
    %v3159 = vld [vmem:[#allocation7 + $0x5e8] sm:$0xff]
    %v3160 = vld [vmem:[#allocation7 + $0x5f0] sm:$0xff]
    %v3161 = vld [vmem:[#allocation7 + $0x5f8] sm:$0xff]
    %v3162 = vld [vmem:[%s6] sm:$0x3f]
    %v3164 = vperm.slane %v3162, 0
    %v3165 = vperm.slane %v3162, 1
    %v3166 = vperm.slane %v3162, 2
    %v3167 = vperm.slane %v3162, 3
    %v3168 = vperm.slane %v3162, 4
    %v3169 = vperm.slane %v3162, 5
    %v3368 = vunpack.c.l.b16 %v2970
    %v3369 = vunpack.c.h.b16 %v2970
    %v3370 = vunpack.c.l.b16 %v2971
    %v3371 = vunpack.c.h.b16 %v2971
    %v3372 = vunpack.c.l.b16 %v2972
    %v3373 = vunpack.c.h.b16 %v2972
    %v3374 = vunpack.c.l.b16 %v2973
    %v3375 = vunpack.c.h.b16 %v2973
    %v3376 = vunpack.c.l.b16 %v2974
    %v3377 = vunpack.c.h.b16 %v2974
    %v3378 = vunpack.c.l.b16 %v2975
    %v3379 = vunpack.c.h.b16 %v2975
    %v3380 = vunpack.c.l.b16 %v2976
    %v3381 = vunpack.c.h.b16 %v2976
    %v3382 = vunpack.c.l.b16 %v2977
    %v3383 = vunpack.c.h.b16 %v2977
    %v3384 = vunpack.c.l.b16 %v2978
    %v3385 = vunpack.c.h.b16 %v2978
    %v3386 = vunpack.c.l.b16 %v2979
    %v3387 = vunpack.c.h.b16 %v2979
    %v3388 = vunpack.c.l.b16 %v2980
    %v3389 = vunpack.c.h.b16 %v2980
    %v3390 = vunpack.c.l.b16 %v2981
    %v3391 = vunpack.c.h.b16 %v2981
    %v3392 = vunpack.c.l.b16 %v2982
    %v3393 = vunpack.c.h.b16 %v2982
    %v3394 = vunpack.c.l.b16 %v2983
    %v3395 = vunpack.c.h.b16 %v2983
    %v3396 = vunpack.c.l.b16 %v2984
    %v3397 = vunpack.c.h.b16 %v2984
    %v3398 = vunpack.c.l.b16 %v2985
    %v3399 = vunpack.c.h.b16 %v2985
    %v3400 = vunpack.c.l.b16 %v2986
    %v3401 = vunpack.c.h.b16 %v2986
    %v3402 = vunpack.c.l.b16 %v2987
    %v3403 = vunpack.c.h.b16 %v2987
    %v3404 = vunpack.c.l.b16 %v2988
    %v3405 = vunpack.c.h.b16 %v2988
    %v3406 = vunpack.c.l.b16 %v2989
    %v3407 = vunpack.c.h.b16 %v2989
    %v3408 = vunpack.c.l.b16 %v2990
    %v3409 = vunpack.c.h.b16 %v2990
    %v3410 = vunpack.c.l.b16 %v2991
    %v3411 = vunpack.c.h.b16 %v2991
    %v3412 = vunpack.c.l.b16 %v2992
    %v3413 = vunpack.c.h.b16 %v2992
    %v3414 = vunpack.c.l.b16 %v2993
    %v3415 = vunpack.c.h.b16 %v2993
    %v3416 = vunpack.c.l.b16 %v2994
    %v3417 = vunpack.c.h.b16 %v2994
    %v3418 = vunpack.c.l.b16 %v2995
    %v3419 = vunpack.c.h.b16 %v2995
    %v3420 = vunpack.c.l.b16 %v2996
    %v3421 = vunpack.c.h.b16 %v2996
    %v3422 = vunpack.c.l.b16 %v2997
    %v3423 = vunpack.c.h.b16 %v2997
    %v3424 = vunpack.c.l.b16 %v2998
    %v3425 = vunpack.c.h.b16 %v2998
    %v3426 = vunpack.c.l.b16 %v2999
    %v3427 = vunpack.c.h.b16 %v2999
    %v3428 = vunpack.c.l.b16 %v3000
    %v3429 = vunpack.c.h.b16 %v3000
    %v3430 = vunpack.c.l.b16 %v3001
    %v3431 = vunpack.c.h.b16 %v3001
    %v3432 = vunpack.c.l.b16 %v3002
    %v3433 = vunpack.c.h.b16 %v3002
    %v3434 = vunpack.c.l.b16 %v3003
    %v3435 = vunpack.c.h.b16 %v3003
    %v3436 = vunpack.c.l.b16 %v3004
    %v3437 = vunpack.c.h.b16 %v3004
    %v3438 = vunpack.c.l.b16 %v3005
    %v3439 = vunpack.c.h.b16 %v3005
    %v3440 = vunpack.c.l.b16 %v3006
    %v3441 = vunpack.c.h.b16 %v3006
    %v3442 = vunpack.c.l.b16 %v3007
    %v3443 = vunpack.c.h.b16 %v3007
    %v3444 = vunpack.c.l.b16 %v3008
    %v3445 = vunpack.c.h.b16 %v3008
    %v3446 = vunpack.c.l.b16 %v3009
    %v3447 = vunpack.c.h.b16 %v3009
    %v3448 = vunpack.c.l.b16 %v3010
    %v3449 = vunpack.c.h.b16 %v3010
    %v3450 = vunpack.c.l.b16 %v3011
    %v3451 = vunpack.c.h.b16 %v3011
    %v3452 = vunpack.c.l.b16 %v3012
    %v3453 = vunpack.c.h.b16 %v3012
    %v3454 = vunpack.c.l.b16 %v3013
    %v3455 = vunpack.c.h.b16 %v3013
    %v3456 = vunpack.c.l.b16 %v3014
    %v3457 = vunpack.c.h.b16 %v3014
    %v3458 = vunpack.c.l.b16 %v3015
    %v3459 = vunpack.c.h.b16 %v3015
    %v3460 = vunpack.c.l.b16 %v3016
    %v3461 = vunpack.c.h.b16 %v3016
    %v3462 = vunpack.c.l.b16 %v3017
    %v3463 = vunpack.c.h.b16 %v3017
    %v3464 = vunpack.c.l.b16 %v3018
    %v3465 = vunpack.c.h.b16 %v3018
    %v3466 = vunpack.c.l.b16 %v3019
    %v3467 = vunpack.c.h.b16 %v3019
    %v3468 = vunpack.c.l.b16 %v3020
    %v3469 = vunpack.c.h.b16 %v3020
    %v3470 = vunpack.c.l.b16 %v3021
    %v3471 = vunpack.c.h.b16 %v3021
    %v3472 = vunpack.c.l.b16 %v3022
    %v3473 = vunpack.c.h.b16 %v3022
    %v3474 = vunpack.c.l.b16 %v3023
    %v3475 = vunpack.c.h.b16 %v3023
    %v3476 = vunpack.c.l.b16 %v3024
    %v3477 = vunpack.c.h.b16 %v3024
    %v3478 = vunpack.c.l.b16 %v3025
    %v3479 = vunpack.c.h.b16 %v3025
    %v3480 = vunpack.c.l.b16 %v3026
    %v3481 = vunpack.c.h.b16 %v3026
    %v3482 = vunpack.c.l.b16 %v3027
    %v3483 = vunpack.c.h.b16 %v3027
    %v3484 = vunpack.c.l.b16 %v3028
    %v3485 = vunpack.c.h.b16 %v3028
    %v3486 = vunpack.c.l.b16 %v3029
    %v3487 = vunpack.c.h.b16 %v3029
    %v3488 = vunpack.c.l.b16 %v3030
    %v3489 = vunpack.c.h.b16 %v3030
    %v3490 = vunpack.c.l.b16 %v3031
    %v3491 = vunpack.c.h.b16 %v3031
    %v3492 = vunpack.c.l.b16 %v3032
    %v3493 = vunpack.c.h.b16 %v3032
    %v3494 = vunpack.c.l.b16 %v3033
    %v3495 = vunpack.c.h.b16 %v3033
    %v3496 = vunpack.c.l.b16 %v3034
    %v3497 = vunpack.c.h.b16 %v3034
    %v3498 = vunpack.c.l.b16 %v3035
    %v3499 = vunpack.c.h.b16 %v3035
    %v3500 = vunpack.c.l.b16 %v3036
    %v3501 = vunpack.c.h.b16 %v3036
    %v3502 = vunpack.c.l.b16 %v3037
    %v3503 = vunpack.c.h.b16 %v3037
    %v3504 = vunpack.c.l.b16 %v3038
    %v3505 = vunpack.c.h.b16 %v3038
    %v3506 = vunpack.c.l.b16 %v3039
    %v3507 = vunpack.c.h.b16 %v3039
    %v3508 = vunpack.c.l.b16 %v3040
    %v3509 = vunpack.c.h.b16 %v3040
    %v3510 = vunpack.c.l.b16 %v3041
    %v3511 = vunpack.c.h.b16 %v3041
    %v3512 = vunpack.c.l.b16 %v3042
    %v3513 = vunpack.c.h.b16 %v3042
    %v3514 = vunpack.c.l.b16 %v3043
    %v3515 = vunpack.c.h.b16 %v3043
    %v3516 = vunpack.c.l.b16 %v3044
    %v3517 = vunpack.c.h.b16 %v3044
    %v3518 = vunpack.c.l.b16 %v3045
    %v3519 = vunpack.c.h.b16 %v3045
    %v3520 = vunpack.c.l.b16 %v3046
    %v3521 = vunpack.c.h.b16 %v3046
    %v3522 = vunpack.c.l.b16 %v3047
    %v3523 = vunpack.c.h.b16 %v3047
    %v3524 = vunpack.c.l.b16 %v3048
    %v3525 = vunpack.c.h.b16 %v3048
    %v3526 = vunpack.c.l.b16 %v3049
    %v3527 = vunpack.c.h.b16 %v3049
    %v3528 = vunpack.c.l.b16 %v3050
    %v3529 = vunpack.c.h.b16 %v3050
    %v3530 = vunpack.c.l.b16 %v3051
    %v3531 = vunpack.c.h.b16 %v3051
    %v3532 = vunpack.c.l.b16 %v3052
    %v3533 = vunpack.c.h.b16 %v3052
    %v3534 = vunpack.c.l.b16 %v3053
    %v3535 = vunpack.c.h.b16 %v3053
    %v3536 = vunpack.c.l.b16 %v3054
    %v3537 = vunpack.c.h.b16 %v3054
    %v3538 = vunpack.c.l.b16 %v3055
    %v3539 = vunpack.c.h.b16 %v3055
    %v3540 = vunpack.c.l.b16 %v3056
    %v3541 = vunpack.c.h.b16 %v3056
    %v3542 = vunpack.c.l.b16 %v3057
    %v3543 = vunpack.c.h.b16 %v3057
    %v3544 = vunpack.c.l.b16 %v3058
    %v3545 = vunpack.c.h.b16 %v3058
    %v3546 = vunpack.c.l.b16 %v3059
    %v3547 = vunpack.c.h.b16 %v3059
    %v3548 = vunpack.c.l.b16 %v3060
    %v3549 = vunpack.c.h.b16 %v3060
    %v3550 = vunpack.c.l.b16 %v3061
    %v3551 = vunpack.c.h.b16 %v3061
    %v3552 = vunpack.c.l.b16 %v3062
    %v3553 = vunpack.c.h.b16 %v3062
    %v3554 = vunpack.c.l.b16 %v3063
    %v3555 = vunpack.c.h.b16 %v3063
    %v3556 = vunpack.c.l.b16 %v3064
    %v3557 = vunpack.c.h.b16 %v3064
    %v3558 = vunpack.c.l.b16 %v3065
    %v3559 = vunpack.c.h.b16 %v3065
    %v3560 = vunpack.c.l.b16 %v3066
    %v3561 = vunpack.c.h.b16 %v3066
    %v3562 = vunpack.c.l.b16 %v3067
    %v3563 = vunpack.c.h.b16 %v3067
    %v3564 = vunpack.c.l.b16 %v3068
    %v3565 = vunpack.c.h.b16 %v3068
    %v3566 = vunpack.c.l.b16 %v3069
    %v3567 = vunpack.c.h.b16 %v3069
    %v3568 = vunpack.c.l.b16 %v3070
    %v3569 = vunpack.c.h.b16 %v3070
    %v3570 = vunpack.c.l.b16 %v3071
    %v3571 = vunpack.c.h.b16 %v3071
    %v3572 = vunpack.c.l.b16 %v3072
    %v3573 = vunpack.c.h.b16 %v3072
    %v3574 = vunpack.c.l.b16 %v3073
    %v3575 = vunpack.c.h.b16 %v3073
    %v3576 = vunpack.c.l.b16 %v3074
    %v3577 = vunpack.c.h.b16 %v3074
    %v3578 = vunpack.c.l.b16 %v3075
    %v3579 = vunpack.c.h.b16 %v3075
    %v3580 = vunpack.c.l.b16 %v3076
    %v3581 = vunpack.c.h.b16 %v3076
    %v3582 = vunpack.c.l.b16 %v3077
    %v3583 = vunpack.c.h.b16 %v3077
    %v3584 = vunpack.c.l.b16 %v3078
    %v3585 = vunpack.c.h.b16 %v3078
    %v3586 = vunpack.c.l.b16 %v3079
    %v3587 = vunpack.c.h.b16 %v3079
    %v3588 = vunpack.c.l.b16 %v3080
    %v3589 = vunpack.c.h.b16 %v3080
    %v3590 = vunpack.c.l.b16 %v3081
    %v3591 = vunpack.c.h.b16 %v3081
    %v3592 = vunpack.c.l.b16 %v3082
    %v3593 = vunpack.c.h.b16 %v3082
    %v3594 = vunpack.c.l.b16 %v3083
    %v3595 = vunpack.c.h.b16 %v3083
    %v3596 = vunpack.c.l.b16 %v3084
    %v3597 = vunpack.c.h.b16 %v3084
    %v3598 = vunpack.c.l.b16 %v3085
    %v3599 = vunpack.c.h.b16 %v3085
    %v3600 = vunpack.c.l.b16 %v3086
    %v3601 = vunpack.c.h.b16 %v3086
    %v3602 = vunpack.c.l.b16 %v3087
    %v3603 = vunpack.c.h.b16 %v3087
    %v3604 = vunpack.c.l.b16 %v3088
    %v3605 = vunpack.c.h.b16 %v3088
    %v3606 = vunpack.c.l.b16 %v3089
    %v3607 = vunpack.c.h.b16 %v3089
    %v3608 = vunpack.c.l.b16 %v3090
    %v3609 = vunpack.c.h.b16 %v3090
    %v3610 = vunpack.c.l.b16 %v3091
    %v3611 = vunpack.c.h.b16 %v3091
    %v3612 = vunpack.c.l.b16 %v3092
    %v3613 = vunpack.c.h.b16 %v3092
    %v3614 = vunpack.c.l.b16 %v3093
    %v3615 = vunpack.c.h.b16 %v3093
    %v3616 = vunpack.c.l.b16 %v3094
    %v3617 = vunpack.c.h.b16 %v3094
    %v3618 = vunpack.c.l.b16 %v3095
    %v3619 = vunpack.c.h.b16 %v3095
    %v3620 = vunpack.c.l.b16 %v3096
    %v3621 = vunpack.c.h.b16 %v3096
    %v3622 = vunpack.c.l.b16 %v3097
    %v3623 = vunpack.c.h.b16 %v3097
    %v3624 = vunpack.c.l.b16 %v3098
    %v3625 = vunpack.c.h.b16 %v3098
    %v3626 = vunpack.c.l.b16 %v3099
    %v3627 = vunpack.c.h.b16 %v3099
    %v3628 = vunpack.c.l.b16 %v3100
    %v3629 = vunpack.c.h.b16 %v3100
    %v3630 = vunpack.c.l.b16 %v3101
    %v3631 = vunpack.c.h.b16 %v3101
    %v3632 = vunpack.c.l.b16 %v3102
    %v3633 = vunpack.c.h.b16 %v3102
    %v3634 = vunpack.c.l.b16 %v3103
    %v3635 = vunpack.c.h.b16 %v3103
    %v3636 = vunpack.c.l.b16 %v3104
    %v3637 = vunpack.c.h.b16 %v3104
    %v3638 = vunpack.c.l.b16 %v3105
    %v3639 = vunpack.c.h.b16 %v3105
    %v3640 = vunpack.c.l.b16 %v3106
    %v3641 = vunpack.c.h.b16 %v3106
    %v3642 = vunpack.c.l.b16 %v3107
    %v3643 = vunpack.c.h.b16 %v3107
    %v3644 = vunpack.c.l.b16 %v3108
    %v3645 = vunpack.c.h.b16 %v3108
    %v3646 = vunpack.c.l.b16 %v3109
    %v3647 = vunpack.c.h.b16 %v3109
    %v3648 = vunpack.c.l.b16 %v3110
    %v3649 = vunpack.c.h.b16 %v3110
    %v3650 = vunpack.c.l.b16 %v3111
    %v3651 = vunpack.c.h.b16 %v3111
    %v3652 = vunpack.c.l.b16 %v3112
    %v3653 = vunpack.c.h.b16 %v3112
    %v3654 = vunpack.c.l.b16 %v3113
    %v3655 = vunpack.c.h.b16 %v3113
    %v3656 = vunpack.c.l.b16 %v3114
    %v3657 = vunpack.c.h.b16 %v3114
    %v3658 = vunpack.c.l.b16 %v3115
    %v3659 = vunpack.c.h.b16 %v3115
    %v3660 = vunpack.c.l.b16 %v3116
    %v3661 = vunpack.c.h.b16 %v3116
    %v3662 = vunpack.c.l.b16 %v3117
    %v3663 = vunpack.c.h.b16 %v3117
    %v3664 = vunpack.c.l.b16 %v3118
    %v3665 = vunpack.c.h.b16 %v3118
    %v3666 = vunpack.c.l.b16 %v3119
    %v3667 = vunpack.c.h.b16 %v3119
    %v3668 = vunpack.c.l.b16 %v3120
    %v3669 = vunpack.c.h.b16 %v3120
    %v3670 = vunpack.c.l.b16 %v3121
    %v3671 = vunpack.c.h.b16 %v3121
    %v3672 = vunpack.c.l.b16 %v3122
    %v3673 = vunpack.c.h.b16 %v3122
    %v3674 = vunpack.c.l.b16 %v3123
    %v3675 = vunpack.c.h.b16 %v3123
    %v3676 = vunpack.c.l.b16 %v3124
    %v3677 = vunpack.c.h.b16 %v3124
    %v3678 = vunpack.c.l.b16 %v3125
    %v3679 = vunpack.c.h.b16 %v3125
    %v3680 = vunpack.c.l.b16 %v3126
    %v3681 = vunpack.c.h.b16 %v3126
    %v3682 = vunpack.c.l.b16 %v3127
    %v3683 = vunpack.c.h.b16 %v3127
    %v3684 = vunpack.c.l.b16 %v3128
    %v3685 = vunpack.c.h.b16 %v3128
    %v3686 = vunpack.c.l.b16 %v3129
    %v3687 = vunpack.c.h.b16 %v3129
    %v3688 = vunpack.c.l.b16 %v3130
    %v3689 = vunpack.c.h.b16 %v3130
    %v3690 = vunpack.c.l.b16 %v3131
    %v3691 = vunpack.c.h.b16 %v3131
    %v3692 = vunpack.c.l.b16 %v3132
    %v3693 = vunpack.c.h.b16 %v3132
    %v3694 = vunpack.c.l.b16 %v3133
    %v3695 = vunpack.c.h.b16 %v3133
    %v3696 = vunpack.c.l.b16 %v3134
    %v3697 = vunpack.c.h.b16 %v3134
    %v3698 = vunpack.c.l.b16 %v3135
    %v3699 = vunpack.c.h.b16 %v3135
    %v3700 = vunpack.c.l.b16 %v3136
    %v3701 = vunpack.c.h.b16 %v3136
    %v3702 = vunpack.c.l.b16 %v3137
    %v3703 = vunpack.c.h.b16 %v3137
    %v3704 = vunpack.c.l.b16 %v3138
    %v3705 = vunpack.c.h.b16 %v3138
    %v3706 = vunpack.c.l.b16 %v3139
    %v3707 = vunpack.c.h.b16 %v3139
    %v3708 = vunpack.c.l.b16 %v3140
    %v3709 = vunpack.c.h.b16 %v3140
    %v3710 = vunpack.c.l.b16 %v3141
    %v3711 = vunpack.c.h.b16 %v3141
    %v3712 = vunpack.c.l.b16 %v3142
    %v3713 = vunpack.c.h.b16 %v3142
    %v3714 = vunpack.c.l.b16 %v3143
    %v3715 = vunpack.c.h.b16 %v3143
    %v3716 = vunpack.c.l.b16 %v3144
    %v3717 = vunpack.c.h.b16 %v3144
    %v3718 = vunpack.c.l.b16 %v3145
    %v3719 = vunpack.c.h.b16 %v3145
    %v3720 = vunpack.c.l.b16 %v3146
    %v3721 = vunpack.c.h.b16 %v3146
    %v3722 = vunpack.c.l.b16 %v3147
    %v3723 = vunpack.c.h.b16 %v3147
    %v3724 = vunpack.c.l.b16 %v3148
    %v3725 = vunpack.c.h.b16 %v3148
    %v3726 = vunpack.c.l.b16 %v3149
    %v3727 = vunpack.c.h.b16 %v3149
    %v3728 = vunpack.c.l.b16 %v3150
    %v3729 = vunpack.c.h.b16 %v3150
    %v3730 = vunpack.c.l.b16 %v3151
    %v3731 = vunpack.c.h.b16 %v3151
    %v3732 = vunpack.c.l.b16 %v3152
    %v3733 = vunpack.c.h.b16 %v3152
    %v3734 = vunpack.c.l.b16 %v3153
    %v3735 = vunpack.c.h.b16 %v3153
    %v3736 = vunpack.c.l.b16 %v3154
    %v3737 = vunpack.c.h.b16 %v3154
    %v3738 = vunpack.c.l.b16 %v3155
    %v3739 = vunpack.c.h.b16 %v3155
    %v3740 = vunpack.c.l.b16 %v3156
    %v3741 = vunpack.c.h.b16 %v3156
    %v3742 = vunpack.c.l.b16 %v3157
    %v3743 = vunpack.c.h.b16 %v3157
    %v3744 = vunpack.c.l.b16 %v3158
    %v3745 = vunpack.c.h.b16 %v3158
    %v3746 = vunpack.c.l.b16 %v3159
    %v3747 = vunpack.c.h.b16 %v3159
    %v3748 = vunpack.c.l.b16 %v3160
    %v3749 = vunpack.c.h.b16 %v3160
    %v3750 = vunpack.c.l.b16 %v3161
    %v3751 = vunpack.c.h.b16 %v3161
    %v3752 = vpack.c.b16 %v3374, %v3368
    %v3753 = vpack.c.b16 %v3375, %v3369
    %v3754 = vpack.c.b16 %v3376, %v3370
    %v3755 = vpack.c.b16 %v3377, %v3371
    %v3756 = vpack.c.b16 %v3378, %v3372
    %v3757 = vpack.c.b16 %v3379, %v3373
    %v3758 = vpack.c.b16 %v3386, %v3380
    %v3759 = vpack.c.b16 %v3387, %v3381
    %v3760 = vpack.c.b16 %v3388, %v3382
    %v3761 = vpack.c.b16 %v3389, %v3383
    %v3762 = vpack.c.b16 %v3390, %v3384
    %v3763 = vpack.c.b16 %v3391, %v3385
    %v3764 = vpack.c.b16 %v3398, %v3392
    %v3765 = vpack.c.b16 %v3399, %v3393
    %v3766 = vpack.c.b16 %v3400, %v3394
    %v3767 = vpack.c.b16 %v3401, %v3395
    %v3768 = vpack.c.b16 %v3402, %v3396
    %v3769 = vpack.c.b16 %v3403, %v3397
    %v3770 = vpack.c.b16 %v3410, %v3404
    %v3771 = vpack.c.b16 %v3411, %v3405
    %v3772 = vpack.c.b16 %v3412, %v3406
    %v3773 = vpack.c.b16 %v3413, %v3407
    %v3774 = vpack.c.b16 %v3414, %v3408
    %v3775 = vpack.c.b16 %v3415, %v3409
    %v3776 = vpack.c.b16 %v3422, %v3416
    %v3777 = vpack.c.b16 %v3423, %v3417
    %v3778 = vpack.c.b16 %v3424, %v3418
    %v3779 = vpack.c.b16 %v3425, %v3419
    %v3780 = vpack.c.b16 %v3426, %v3420
    %v3781 = vpack.c.b16 %v3427, %v3421
    %v3782 = vpack.c.b16 %v3434, %v3428
    %v3783 = vpack.c.b16 %v3435, %v3429
    %v3784 = vpack.c.b16 %v3436, %v3430
    %v3785 = vpack.c.b16 %v3437, %v3431
    %v3786 = vpack.c.b16 %v3438, %v3432
    %v3787 = vpack.c.b16 %v3439, %v3433
    %v3788 = vpack.c.b16 %v3446, %v3440
    %v3789 = vpack.c.b16 %v3447, %v3441
    %v3790 = vpack.c.b16 %v3448, %v3442
    %v3791 = vpack.c.b16 %v3449, %v3443
    %v3792 = vpack.c.b16 %v3450, %v3444
    %v3793 = vpack.c.b16 %v3451, %v3445
    %v3794 = vpack.c.b16 %v3458, %v3452
    %v3795 = vpack.c.b16 %v3459, %v3453
    %v3796 = vpack.c.b16 %v3460, %v3454
    %v3797 = vpack.c.b16 %v3461, %v3455
    %v3798 = vpack.c.b16 %v3462, %v3456
    %v3799 = vpack.c.b16 %v3463, %v3457
    %v3800 = vpack.c.b16 %v3470, %v3464
    %v3801 = vpack.c.b16 %v3471, %v3465
    %v3802 = vpack.c.b16 %v3472, %v3466
    %v3803 = vpack.c.b16 %v3473, %v3467
    %v3804 = vpack.c.b16 %v3474, %v3468
    %v3805 = vpack.c.b16 %v3475, %v3469
    %v3806 = vpack.c.b16 %v3482, %v3476
    %v3807 = vpack.c.b16 %v3483, %v3477
    %v3808 = vpack.c.b16 %v3484, %v3478
    %v3809 = vpack.c.b16 %v3485, %v3479
    %v3810 = vpack.c.b16 %v3486, %v3480
    %v3811 = vpack.c.b16 %v3487, %v3481
    %v3812 = vpack.c.b16 %v3494, %v3488
    %v3813 = vpack.c.b16 %v3495, %v3489
    %v3814 = vpack.c.b16 %v3496, %v3490
    %v3815 = vpack.c.b16 %v3497, %v3491
    %v3816 = vpack.c.b16 %v3498, %v3492
    %v3817 = vpack.c.b16 %v3499, %v3493
    %v3818 = vpack.c.b16 %v3506, %v3500
    %v3819 = vpack.c.b16 %v3507, %v3501
    %v3820 = vpack.c.b16 %v3508, %v3502
    %v3821 = vpack.c.b16 %v3509, %v3503
    %v3822 = vpack.c.b16 %v3510, %v3504
    %v3823 = vpack.c.b16 %v3511, %v3505
    %v3824 = vpack.c.b16 %v3518, %v3512
    %v3825 = vpack.c.b16 %v3519, %v3513
    %v3826 = vpack.c.b16 %v3520, %v3514
    %v3827 = vpack.c.b16 %v3521, %v3515
    %v3828 = vpack.c.b16 %v3522, %v3516
    %v3829 = vpack.c.b16 %v3523, %v3517
    %v3830 = vpack.c.b16 %v3530, %v3524
    %v3831 = vpack.c.b16 %v3531, %v3525
    %v3832 = vpack.c.b16 %v3532, %v3526
    %v3833 = vpack.c.b16 %v3533, %v3527
    %v3834 = vpack.c.b16 %v3534, %v3528
    %v3835 = vpack.c.b16 %v3535, %v3529
    %v3836 = vpack.c.b16 %v3542, %v3536
    %v3837 = vpack.c.b16 %v3543, %v3537
    %v3838 = vpack.c.b16 %v3544, %v3538
    %v3839 = vpack.c.b16 %v3545, %v3539
    %v3840 = vpack.c.b16 %v3546, %v3540
    %v3841 = vpack.c.b16 %v3547, %v3541
    %v3842 = vpack.c.b16 %v3554, %v3548
    %v3843 = vpack.c.b16 %v3555, %v3549
    %v3844 = vpack.c.b16 %v3556, %v3550
    %v3845 = vpack.c.b16 %v3557, %v3551
    %v3846 = vpack.c.b16 %v3558, %v3552
    %v3847 = vpack.c.b16 %v3559, %v3553
    %v3848 = vpack.c.b16 %v3566, %v3560
    %v3849 = vpack.c.b16 %v3567, %v3561
    %v3850 = vpack.c.b16 %v3568, %v3562
    %v3851 = vpack.c.b16 %v3569, %v3563
    %v3852 = vpack.c.b16 %v3570, %v3564
    %v3853 = vpack.c.b16 %v3571, %v3565
    %v3854 = vpack.c.b16 %v3578, %v3572
    %v3855 = vpack.c.b16 %v3579, %v3573
    %v3856 = vpack.c.b16 %v3580, %v3574
    %v3857 = vpack.c.b16 %v3581, %v3575
    %v3858 = vpack.c.b16 %v3582, %v3576
    %v3859 = vpack.c.b16 %v3583, %v3577
    %v3860 = vpack.c.b16 %v3590, %v3584
    %v3861 = vpack.c.b16 %v3591, %v3585
    %v3862 = vpack.c.b16 %v3592, %v3586
    %v3863 = vpack.c.b16 %v3593, %v3587
    %v3864 = vpack.c.b16 %v3594, %v3588
    %v3865 = vpack.c.b16 %v3595, %v3589
    %v3866 = vpack.c.b16 %v3602, %v3596
    %v3867 = vpack.c.b16 %v3603, %v3597
    %v3868 = vpack.c.b16 %v3604, %v3598
    %v3869 = vpack.c.b16 %v3605, %v3599
    %v3870 = vpack.c.b16 %v3606, %v3600
    %v3871 = vpack.c.b16 %v3607, %v3601
    %v3872 = vpack.c.b16 %v3614, %v3608
    %v3873 = vpack.c.b16 %v3615, %v3609
    %v3874 = vpack.c.b16 %v3616, %v3610
    %v3875 = vpack.c.b16 %v3617, %v3611
    %v3876 = vpack.c.b16 %v3618, %v3612
    %v3877 = vpack.c.b16 %v3619, %v3613
    %v3878 = vpack.c.b16 %v3626, %v3620
    %v3879 = vpack.c.b16 %v3627, %v3621
    %v3880 = vpack.c.b16 %v3628, %v3622
    %v3881 = vpack.c.b16 %v3629, %v3623
    %v3882 = vpack.c.b16 %v3630, %v3624
    %v3883 = vpack.c.b16 %v3631, %v3625
    %v3884 = vpack.c.b16 %v3638, %v3632
    %v3885 = vpack.c.b16 %v3639, %v3633
    %v3886 = vpack.c.b16 %v3640, %v3634
    %v3887 = vpack.c.b16 %v3641, %v3635
    %v3888 = vpack.c.b16 %v3642, %v3636
    %v3889 = vpack.c.b16 %v3643, %v3637
    %v3890 = vpack.c.b16 %v3650, %v3644
    %v3891 = vpack.c.b16 %v3651, %v3645
    %v3892 = vpack.c.b16 %v3652, %v3646
    %v3893 = vpack.c.b16 %v3653, %v3647
    %v3894 = vpack.c.b16 %v3654, %v3648
    %v3895 = vpack.c.b16 %v3655, %v3649
    %v3896 = vpack.c.b16 %v3662, %v3656
    %v3897 = vpack.c.b16 %v3663, %v3657
    %v3898 = vpack.c.b16 %v3664, %v3658
    %v3899 = vpack.c.b16 %v3665, %v3659
    %v3900 = vpack.c.b16 %v3666, %v3660
    %v3901 = vpack.c.b16 %v3667, %v3661
    %v3902 = vpack.c.b16 %v3674, %v3668
    %v3903 = vpack.c.b16 %v3675, %v3669
    %v3904 = vpack.c.b16 %v3676, %v3670
    %v3905 = vpack.c.b16 %v3677, %v3671
    %v3906 = vpack.c.b16 %v3678, %v3672
    %v3907 = vpack.c.b16 %v3679, %v3673
    %v3908 = vpack.c.b16 %v3686, %v3680
    %v3909 = vpack.c.b16 %v3687, %v3681
    %v3910 = vpack.c.b16 %v3688, %v3682
    %v3911 = vpack.c.b16 %v3689, %v3683
    %v3912 = vpack.c.b16 %v3690, %v3684
    %v3913 = vpack.c.b16 %v3691, %v3685
    %v3914 = vpack.c.b16 %v3698, %v3692
    %v3915 = vpack.c.b16 %v3699, %v3693
    %v3916 = vpack.c.b16 %v3700, %v3694
    %v3917 = vpack.c.b16 %v3701, %v3695
    %v3918 = vpack.c.b16 %v3702, %v3696
    %v3919 = vpack.c.b16 %v3703, %v3697
    %v3920 = vpack.c.b16 %v3710, %v3704
    %v3921 = vpack.c.b16 %v3711, %v3705
    %v3922 = vpack.c.b16 %v3712, %v3706
    %v3923 = vpack.c.b16 %v3713, %v3707
    %v3924 = vpack.c.b16 %v3714, %v3708
    %v3925 = vpack.c.b16 %v3715, %v3709
    %v3926 = vpack.c.b16 %v3722, %v3716
    %v3927 = vpack.c.b16 %v3723, %v3717
    %v3928 = vpack.c.b16 %v3724, %v3718
    %v3929 = vpack.c.b16 %v3725, %v3719
    %v3930 = vpack.c.b16 %v3726, %v3720
    %v3931 = vpack.c.b16 %v3727, %v3721
    %v3932 = vpack.c.b16 %v3734, %v3728
    %v3933 = vpack.c.b16 %v3735, %v3729
    %v3934 = vpack.c.b16 %v3736, %v3730
    %v3935 = vpack.c.b16 %v3737, %v3731
    %v3936 = vpack.c.b16 %v3738, %v3732
    %v3937 = vpack.c.b16 %v3739, %v3733
    %v3938 = vpack.c.b16 %v3746, %v3740
    %v3939 = vpack.c.b16 %v3747, %v3741
    %v3940 = vpack.c.b16 %v3748, %v3742
    %v3941 = vpack.c.b16 %v3749, %v3743
    %v3942 = vpack.c.b16 %v3750, %v3744
    %v3943 = vpack.c.b16 %v3751, %v3745
    %4136 = vmatpush.bf16.msra.mxu0 %v3794
    %4137 = vmatpush.bf16.msra.mxu0 %v3788
    %4138 = vmatpush.bf16.msra.mxu0 %v3782
    %4139 = vmatpush.bf16.msra.mxu0 %v3776
    %4140 = vmatpush.bf16.msra.mxu0 %v3770
    %4141 = vmatpush.bf16.msra.mxu0 %v3764
    %4142 = vmatpush.bf16.msra.mxu0 %v3758
    %4143 = vmatpush.bf16.msra.mxu0 %v3752
    %4144 = vmatmul.bf16.gmra.mxu0 %v2966
    %v4145 = vpop.f32.mrf.mxu0
    %v4146 = vadd.f32 %v3164, %v4145
    %v4147 = vpop.f32.mrf.mxu0
    %v4148 = vadd.f32 %v3164, %v4147
    %4149 = vdwg.mxu0
    %4150 = vmatpush.bf16.msra.mxu0 %v3842
    %4151 = vmatpush.bf16.msra.mxu0 %v3836
    %4152 = vmatpush.bf16.msra.mxu0 %v3830
    %4153 = vmatpush.bf16.msra.mxu0 %v3824
    %4154 = vmatpush.bf16.msra.mxu0 %v3818
    %4155 = vmatpush.bf16.msra.mxu0 %v3812
    %4156 = vmatpush.bf16.msra.mxu0 %v3806
    %4157 = vmatpush.bf16.msra.mxu0 %v3800
    %4158 = vmatmul.bf16.gmra.mxu0 %v2967
    %v4159 = vpop.f32.mrf.mxu0
    %v4160 = vadd.f32 %v4146, %v4159
    %v4161 = vpop.f32.mrf.mxu0
    %v4162 = vadd.f32 %v4148, %v4161
    %4163 = vdwg.mxu0
    %4164 = vmatpush.bf16.msra.mxu0 %v3890
    %4165 = vmatpush.bf16.msra.mxu0 %v3884
    %4166 = vmatpush.bf16.msra.mxu0 %v3878
    %4167 = vmatpush.bf16.msra.mxu0 %v3872
    %4168 = vmatpush.bf16.msra.mxu0 %v3866
    %4169 = vmatpush.bf16.msra.mxu0 %v3860
    %4170 = vmatpush.bf16.msra.mxu0 %v3854
    %4171 = vmatpush.bf16.msra.mxu0 %v3848
    %4172 = vmatmul.bf16.gmra.mxu0 %v2968
    %v4173 = vpop.f32.mrf.mxu0
    %v4174 = vadd.f32 %v4160, %v4173
    %v4175 = vpop.f32.mrf.mxu0
    %v4176 = vadd.f32 %v4162, %v4175
    %4177 = vdwg.mxu0
    %4178 = vmatpush.bf16.msra.mxu0 %v3938
    %4179 = vmatpush.bf16.msra.mxu0 %v3932
    %4180 = vmatpush.bf16.msra.mxu0 %v3926
    %4181 = vmatpush.bf16.msra.mxu0 %v3920
    %4182 = vmatpush.bf16.msra.mxu0 %v3914
    %4183 = vmatpush.bf16.msra.mxu0 %v3908
    %4184 = vmatpush.bf16.msra.mxu0 %v3902
    %4185 = vmatpush.bf16.msra.mxu0 %v3896
    %4186 = vmatmul.bf16.gmra.mxu0 %v2969
    %v4187 = vpop.f32.mrf.mxu0
    %v4188 = vadd.f32 %v4174, %v4187
    %v4189 = vpop.f32.mrf.mxu0
    %v4190 = vadd.f32 %v4176, %v4189
    %4191 = vdwg.mxu0
    %4192 = vmatpush.bf16.msra.mxu0 %v3795
    %4193 = vmatpush.bf16.msra.mxu0 %v3789
    %4194 = vmatpush.bf16.msra.mxu0 %v3783
    %4195 = vmatpush.bf16.msra.mxu0 %v3777
    %4196 = vmatpush.bf16.msra.mxu0 %v3771
    %4197 = vmatpush.bf16.msra.mxu0 %v3765
    %4198 = vmatpush.bf16.msra.mxu0 %v3759
    %4199 = vmatpush.bf16.msra.mxu0 %v3753
    %4200 = vmatmul.bf16.gmra.mxu0 %v2966
    %v4201 = vpop.f32.mrf.mxu0
    %v4202 = vadd.f32 %v3165, %v4201
    %v4203 = vpop.f32.mrf.mxu0
    %v4204 = vadd.f32 %v3165, %v4203
    %4205 = vdwg.mxu0
    %4206 = vmatpush.bf16.msra.mxu0 %v3843
    %4207 = vmatpush.bf16.msra.mxu0 %v3837
    %4208 = vmatpush.bf16.msra.mxu0 %v3831
    %4209 = vmatpush.bf16.msra.mxu0 %v3825
    %4210 = vmatpush.bf16.msra.mxu0 %v3819
    %4211 = vmatpush.bf16.msra.mxu0 %v3813
    %4212 = vmatpush.bf16.msra.mxu0 %v3807
    %4213 = vmatpush.bf16.msra.mxu0 %v3801
    %4214 = vmatmul.bf16.gmra.mxu0 %v2967
    %v4215 = vpop.f32.mrf.mxu0
    %v4216 = vadd.f32 %v4202, %v4215
    %v4217 = vpop.f32.mrf.mxu0
    %v4218 = vadd.f32 %v4204, %v4217
    %4219 = vdwg.mxu0
    %4220 = vmatpush.bf16.msra.mxu0 %v3891
    %4221 = vmatpush.bf16.msra.mxu0 %v3885
    %4222 = vmatpush.bf16.msra.mxu0 %v3879
    %4223 = vmatpush.bf16.msra.mxu0 %v3873
    %4224 = vmatpush.bf16.msra.mxu0 %v3867
    %4225 = vmatpush.bf16.msra.mxu0 %v3861
    %4226 = vmatpush.bf16.msra.mxu0 %v3855
    %4227 = vmatpush.bf16.msra.mxu0 %v3849
    %4228 = vmatmul.bf16.gmra.mxu0 %v2968
    %v4229 = vpop.f32.mrf.mxu0
    %v4230 = vadd.f32 %v4216, %v4229
    %v4231 = vpop.f32.mrf.mxu0
    %v4232 = vadd.f32 %v4218, %v4231
    %4233 = vdwg.mxu0
    %4234 = vmatpush.bf16.msra.mxu0 %v3939
    %4235 = vmatpush.bf16.msra.mxu0 %v3933
    %4236 = vmatpush.bf16.msra.mxu0 %v3927
    %4237 = vmatpush.bf16.msra.mxu0 %v3921
    %4238 = vmatpush.bf16.msra.mxu0 %v3915
    %4239 = vmatpush.bf16.msra.mxu0 %v3909
    %4240 = vmatpush.bf16.msra.mxu0 %v3903
    %4241 = vmatpush.bf16.msra.mxu0 %v3897
    %4242 = vmatmul.bf16.gmra.mxu0 %v2969
    %v4243 = vpop.f32.mrf.mxu0
    %v4244 = vadd.f32 %v4230, %v4243
    %v4245 = vpop.f32.mrf.mxu0
    %v4246 = vadd.f32 %v4232, %v4245
    %4247 = vdwg.mxu0
    %4248 = vmatpush.bf16.msra.mxu0 %v3796
    %4249 = vmatpush.bf16.msra.mxu0 %v3790
    %4250 = vmatpush.bf16.msra.mxu0 %v3784
    %4251 = vmatpush.bf16.msra.mxu0 %v3778
    %4252 = vmatpush.bf16.msra.mxu0 %v3772
    %4253 = vmatpush.bf16.msra.mxu0 %v3766
    %4254 = vmatpush.bf16.msra.mxu0 %v3760
    %4255 = vmatpush.bf16.msra.mxu0 %v3754
    %4256 = vmatmul.bf16.gmra.mxu0 %v2966
    %v4257 = vpop.f32.mrf.mxu0
    %v4258 = vadd.f32 %v3166, %v4257
    %v4259 = vpop.f32.mrf.mxu0
    %v4260 = vadd.f32 %v3166, %v4259
    %4261 = vdwg.mxu0
    %4262 = vmatpush.bf16.msra.mxu0 %v3844
    %4263 = vmatpush.bf16.msra.mxu0 %v3838
    %4264 = vmatpush.bf16.msra.mxu0 %v3832
    %4265 = vmatpush.bf16.msra.mxu0 %v3826
    %4266 = vmatpush.bf16.msra.mxu0 %v3820
    %4267 = vmatpush.bf16.msra.mxu0 %v3814
    %4268 = vmatpush.bf16.msra.mxu0 %v3808
    %4269 = vmatpush.bf16.msra.mxu0 %v3802
    %4270 = vmatmul.bf16.gmra.mxu0 %v2967
    %v4271 = vpop.f32.mrf.mxu0
    %v4272 = vadd.f32 %v4258, %v4271
    %v4273 = vpop.f32.mrf.mxu0
    %v4274 = vadd.f32 %v4260, %v4273
    %4275 = vdwg.mxu0
    %4276 = vmatpush.bf16.msra.mxu0 %v3892
    %4277 = vmatpush.bf16.msra.mxu0 %v3886
    %4278 = vmatpush.bf16.msra.mxu0 %v3880
    %4279 = vmatpush.bf16.msra.mxu0 %v3874
    %4280 = vmatpush.bf16.msra.mxu0 %v3868
    %4281 = vmatpush.bf16.msra.mxu0 %v3862
    %4282 = vmatpush.bf16.msra.mxu0 %v3856
    %4283 = vmatpush.bf16.msra.mxu0 %v3850
    %4284 = vmatmul.bf16.gmra.mxu0 %v2968
    %v4285 = vpop.f32.mrf.mxu0
    %v4286 = vadd.f32 %v4272, %v4285
    %v4287 = vpop.f32.mrf.mxu0
    %v4288 = vadd.f32 %v4274, %v4287
    %4289 = vdwg.mxu0
    %4290 = vmatpush.bf16.msra.mxu0 %v3940
    %4291 = vmatpush.bf16.msra.mxu0 %v3934
    %4292 = vmatpush.bf16.msra.mxu0 %v3928
    %4293 = vmatpush.bf16.msra.mxu0 %v3922
    %4294 = vmatpush.bf16.msra.mxu0 %v3916
    %4295 = vmatpush.bf16.msra.mxu0 %v3910
    %4296 = vmatpush.bf16.msra.mxu0 %v3904
    %4297 = vmatpush.bf16.msra.mxu0 %v3898
    %4298 = vmatmul.bf16.gmra.mxu0 %v2969
    %v4299 = vpop.f32.mrf.mxu0
    %v4300 = vadd.f32 %v4286, %v4299
    %v4301 = vpop.f32.mrf.mxu0
    %v4302 = vadd.f32 %v4288, %v4301
    %4303 = vdwg.mxu0
    %4304 = vmatpush.bf16.msra.mxu0 %v3797
    %4305 = vmatpush.bf16.msra.mxu0 %v3791
    %4306 = vmatpush.bf16.msra.mxu0 %v3785
    %4307 = vmatpush.bf16.msra.mxu0 %v3779
    %4308 = vmatpush.bf16.msra.mxu0 %v3773
    %4309 = vmatpush.bf16.msra.mxu0 %v3767
    %4310 = vmatpush.bf16.msra.mxu0 %v3761
    %4311 = vmatpush.bf16.msra.mxu0 %v3755
    %4312 = vmatmul.bf16.gmra.mxu0 %v2966
    %v4313 = vpop.f32.mrf.mxu0
    %v4314 = vadd.f32 %v3167, %v4313
    %v4315 = vpop.f32.mrf.mxu0
    %v4316 = vadd.f32 %v3167, %v4315
    %4317 = vdwg.mxu0
    %4318 = vmatpush.bf16.msra.mxu0 %v3845
    %4319 = vmatpush.bf16.msra.mxu0 %v3839
    %4320 = vmatpush.bf16.msra.mxu0 %v3833
    %4321 = vmatpush.bf16.msra.mxu0 %v3827
    %4322 = vmatpush.bf16.msra.mxu0 %v3821
    %4323 = vmatpush.bf16.msra.mxu0 %v3815
    %4324 = vmatpush.bf16.msra.mxu0 %v3809
    %4325 = vmatpush.bf16.msra.mxu0 %v3803
    %4326 = vmatmul.bf16.gmra.mxu0 %v2967
    %v4327 = vpop.f32.mrf.mxu0
    %v4328 = vadd.f32 %v4314, %v4327
    %v4329 = vpop.f32.mrf.mxu0
    %v4330 = vadd.f32 %v4316, %v4329
    %4331 = vdwg.mxu0
    %4332 = vmatpush.bf16.msra.mxu0 %v3893
    %4333 = vmatpush.bf16.msra.mxu0 %v3887
    %4334 = vmatpush.bf16.msra.mxu0 %v3881
    %4335 = vmatpush.bf16.msra.mxu0 %v3875
    %4336 = vmatpush.bf16.msra.mxu0 %v3869
    %4337 = vmatpush.bf16.msra.mxu0 %v3863
    %4338 = vmatpush.bf16.msra.mxu0 %v3857
    %4339 = vmatpush.bf16.msra.mxu0 %v3851
    %4340 = vmatmul.bf16.gmra.mxu0 %v2968
    %v4341 = vpop.f32.mrf.mxu0
    %v4342 = vadd.f32 %v4328, %v4341
    %v4343 = vpop.f32.mrf.mxu0
    %v4344 = vadd.f32 %v4330, %v4343
    %4345 = vdwg.mxu0
    %4346 = vmatpush.bf16.msra.mxu0 %v3941
    %4347 = vmatpush.bf16.msra.mxu0 %v3935
    %4348 = vmatpush.bf16.msra.mxu0 %v3929
    %4349 = vmatpush.bf16.msra.mxu0 %v3923
    %4350 = vmatpush.bf16.msra.mxu0 %v3917
    %4351 = vmatpush.bf16.msra.mxu0 %v3911
    %4352 = vmatpush.bf16.msra.mxu0 %v3905
    %4353 = vmatpush.bf16.msra.mxu0 %v3899
    %4354 = vmatmul.bf16.gmra.mxu0 %v2969
    %v4355 = vpop.f32.mrf.mxu0
    %v4356 = vadd.f32 %v4342, %v4355
    %v4357 = vpop.f32.mrf.mxu0
    %v4358 = vadd.f32 %v4344, %v4357
    %4359 = vdwg.mxu0
    %4360 = vmatpush.bf16.msra.mxu0 %v3798
    %4361 = vmatpush.bf16.msra.mxu0 %v3792
    %4362 = vmatpush.bf16.msra.mxu0 %v3786
    %4363 = vmatpush.bf16.msra.mxu0 %v3780
    %4364 = vmatpush.bf16.msra.mxu0 %v3774
    %4365 = vmatpush.bf16.msra.mxu0 %v3768
    %4366 = vmatpush.bf16.msra.mxu0 %v3762
    %4367 = vmatpush.bf16.msra.mxu0 %v3756
    %4368 = vmatmul.bf16.gmra.mxu0 %v2966
    %v4369 = vpop.f32.mrf.mxu0
    %v4370 = vadd.f32 %v3168, %v4369
    %v4371 = vpop.f32.mrf.mxu0
    %v4372 = vadd.f32 %v3168, %v4371
    %4373 = vdwg.mxu0
    %4374 = vmatpush.bf16.msra.mxu0 %v3846
    %4375 = vmatpush.bf16.msra.mxu0 %v3840
    %4376 = vmatpush.bf16.msra.mxu0 %v3834
    %4377 = vmatpush.bf16.msra.mxu0 %v3828
    %4378 = vmatpush.bf16.msra.mxu0 %v3822
    %4379 = vmatpush.bf16.msra.mxu0 %v3816
    %4380 = vmatpush.bf16.msra.mxu0 %v3810
    %4381 = vmatpush.bf16.msra.mxu0 %v3804
    %4382 = vmatmul.bf16.gmra.mxu0 %v2967
    %v4383 = vpop.f32.mrf.mxu0
    %v4384 = vadd.f32 %v4370, %v4383
    %v4385 = vpop.f32.mrf.mxu0
    %v4386 = vadd.f32 %v4372, %v4385
    %4387 = vdwg.mxu0
    %4388 = vmatpush.bf16.msra.mxu0 %v3894
    %4389 = vmatpush.bf16.msra.mxu0 %v3888
    %4390 = vmatpush.bf16.msra.mxu0 %v3882
    %4391 = vmatpush.bf16.msra.mxu0 %v3876
    %4392 = vmatpush.bf16.msra.mxu0 %v3870
    %4393 = vmatpush.bf16.msra.mxu0 %v3864
    %4394 = vmatpush.bf16.msra.mxu0 %v3858
    %4395 = vmatpush.bf16.msra.mxu0 %v3852
    %4396 = vmatmul.bf16.gmra.mxu0 %v2968
    %v4397 = vpop.f32.mrf.mxu0
    %v4398 = vadd.f32 %v4384, %v4397
    %v4399 = vpop.f32.mrf.mxu0
    %v4400 = vadd.f32 %v4386, %v4399
    %4401 = vdwg.mxu0
    %4402 = vmatpush.bf16.msra.mxu0 %v3942
    %4403 = vmatpush.bf16.msra.mxu0 %v3936
    %4404 = vmatpush.bf16.msra.mxu0 %v3930
    %4405 = vmatpush.bf16.msra.mxu0 %v3924
    %4406 = vmatpush.bf16.msra.mxu0 %v3918
    %4407 = vmatpush.bf16.msra.mxu0 %v3912
    %4408 = vmatpush.bf16.msra.mxu0 %v3906
    %4409 = vmatpush.bf16.msra.mxu0 %v3900
    %4410 = vmatmul.bf16.gmra.mxu0 %v2969
    %v4411 = vpop.f32.mrf.mxu0
    %v4412 = vadd.f32 %v4398, %v4411
    %v4413 = vpop.f32.mrf.mxu0
    %v4414 = vadd.f32 %v4400, %v4413
    %4415 = vdwg.mxu0
    %4416 = vmatpush.bf16.msra.mxu0 %v3799
    %4417 = vmatpush.bf16.msra.mxu0 %v3793
    %4418 = vmatpush.bf16.msra.mxu0 %v3787
    %4419 = vmatpush.bf16.msra.mxu0 %v3781
    %4420 = vmatpush.bf16.msra.mxu0 %v3775
    %4421 = vmatpush.bf16.msra.mxu0 %v3769
    %4422 = vmatpush.bf16.msra.mxu0 %v3763
    %4423 = vmatpush.bf16.msra.mxu0 %v3757
    %4424 = vmatmul.bf16.gmra.mxu0 %v2966
    %v4425 = vpop.f32.mrf.mxu0
    %v4426 = vadd.f32 %v3169, %v4425
    %v4427 = vpop.f32.mrf.mxu0
    %v4428 = vadd.f32 %v3169, %v4427
    %4429 = vdwg.mxu0
    %4430 = vmatpush.bf16.msra.mxu0 %v3847
    %4431 = vmatpush.bf16.msra.mxu0 %v3841
    %4432 = vmatpush.bf16.msra.mxu0 %v3835
    %4433 = vmatpush.bf16.msra.mxu0 %v3829
    %4434 = vmatpush.bf16.msra.mxu0 %v3823
    %4435 = vmatpush.bf16.msra.mxu0 %v3817
    %4436 = vmatpush.bf16.msra.mxu0 %v3811
    %4437 = vmatpush.bf16.msra.mxu0 %v3805
    %4438 = vmatmul.bf16.gmra.mxu0 %v2967
    %v4439 = vpop.f32.mrf.mxu0
    %v4440 = vadd.f32 %v4426, %v4439
    %v4441 = vpop.f32.mrf.mxu0
    %v4442 = vadd.f32 %v4428, %v4441
    %4443 = vdwg.mxu0
    %4444 = vmatpush.bf16.msra.mxu0 %v3895
    %4445 = vmatpush.bf16.msra.mxu0 %v3889
    %4446 = vmatpush.bf16.msra.mxu0 %v3883
    %4447 = vmatpush.bf16.msra.mxu0 %v3877
    %4448 = vmatpush.bf16.msra.mxu0 %v3871
    %4449 = vmatpush.bf16.msra.mxu0 %v3865
    %4450 = vmatpush.bf16.msra.mxu0 %v3859
    %4451 = vmatpush.bf16.msra.mxu0 %v3853
    %4452 = vmatmul.bf16.gmra.mxu0 %v2968
    %v4453 = vpop.f32.mrf.mxu0
    %v4454 = vadd.f32 %v4440, %v4453
    %v4455 = vpop.f32.mrf.mxu0
    %v4456 = vadd.f32 %v4442, %v4455
    %4457 = vdwg.mxu0
    %4458 = vmatpush.bf16.msra.mxu0 %v3943
    %4459 = vmatpush.bf16.msra.mxu0 %v3937
    %4460 = vmatpush.bf16.msra.mxu0 %v3931
    %4461 = vmatpush.bf16.msra.mxu0 %v3925
    %4462 = vmatpush.bf16.msra.mxu0 %v3919
    %4463 = vmatpush.bf16.msra.mxu0 %v3913
    %4464 = vmatpush.bf16.msra.mxu0 %v3907
    %4465 = vmatpush.bf16.msra.mxu0 %v3901
    %4466 = vmatmul.bf16.gmra.mxu0 %v2969
    %v4467 = vpop.f32.mrf.mxu0
    %v4468 = vadd.f32 %v4454, %v4467
    %v4469 = vpop.f32.mrf.mxu0
    %v4470 = vadd.f32 %v4456, %v4469
    %4471 = vdwg.mxu0
    %4472 = vst [vmem:[#allocation8] sm:$0xff] %v4188
    %4473 = vst [vmem:[#allocation8 + $0x8] sm:$0xff] %v4244
    %4474 = vst [vmem:[#allocation8 + $0x10] sm:$0xff] %v4300
    %4475 = vst [vmem:[#allocation8 + $0x18] sm:$0xff] %v4356
    %4476 = vst [vmem:[#allocation8 + $0x20] sm:$0xff] %v4412
    %4477 = vst [vmem:[#allocation8 + $0x28] sm:$0xff] %v4468
    %4478 = vst [vmem:[#allocation8 + $0x30] sm:$0xff] %v4190
    %4479 = vst [vmem:[#allocation8 + $0x38] sm:$0xff] %v4246
    %4480 = vst [vmem:[#allocation8 + $0x40] sm:$0xff] %v4302
    %4481 = vst [vmem:[#allocation8 + $0x48] sm:$0xff] %v4358
    %4482 = vst [vmem:[#allocation8 + $0x50] sm:$0xff] %v4414
    %4483 = vst [vmem:[#allocation8 + $0x58] sm:$0xff] %v4470
    // Predicated region
    $region42: #{mlp_forward.1} parent=1 // pred_check
      _
    $region43: #{mlp_forward.1} parent=1 // pred_check_branch
      %4485 = sbr.rel (0) target = $region45
    $region44: #{mlp_forward.1} parent=1 // pred_region
      %4487 = vsyncadd [#allocation4], 0
      %s4488 = sshll.u32 [#allocation8], 4
      %s4489 = int_to_ptr.vmem [resolvable:$true] %s4488
      %s4490 = sshll.u32 %s7, 4
      %s4491 = int_to_ptr.hbm [resolvable:$true] %s4490
      %4496 = dma.vmem_to_hbm [thread:$0]  %s4489, 1536, %s4491, [#allocation4], 768, 768, 48
    $region45: #{mlp_forward.1} parent=1 // pred_fallthru
      _
    // Predicated region
    $region46: #{mlp_forward.1} parent=1 // pred_check
      _
    $region47: #{mlp_forward.1} parent=1 // pred_check_branch
      %4498 = sbr.rel (0) target = $region49
    $region48: #{mlp_forward.1} parent=1 // pred_region
      %4500 = dma.done [#allocation4], 1536
    $region49: #{mlp_forward.1} parent=1 // pred_fallthru
      _
    %4501 = vsyncpa [#allocation3], 1
    %4502 = vsyncpa [#allocation6], 1
    %4503 = vsyncpa [#allocation4], 1

</llo_original>
